<compile_context>
chip_gen: v5e
topology: v5e:2x2
jax: 0.10.0
libtpu: 0.0.40
codegen_flags: <defaults>
</compile_context>

<pallas_src>
import jax
import jax.numpy as jnp
import numpy as np
from jax.experimental import pallas as pl
from jax.experimental.pallas import tpu as pltpu

C_IN, C1, C2 = 200, 150, 100      # fixed by the module definition
C2P = 128                         # conv2 channels padded to one lane tile
BN_EPS = 1e-5


def _round_up(x, m):
    return (x + m - 1) // m * m


def _pick_tb(n, block_batch):
    """Batch tile: multiple of 128; keep >=2 grid blocks when batch allows (v7x)."""
    bb = max(128, (block_batch // 128) * 128)
    tb = min(bb, _round_up(n, 128))
    if n > 128 and _round_up(n, tb) // tb < 2:
        tb = max(128, _round_up((n + 1) // 2, 128))
    assert tb % 128 == 0
    return tb


def _make_kernel(tb, nh_pad, no_pad):
    """Kernel closure over static sizes (tb = samples per block)."""

    def kernel(x_ref, w1_ref, w2c_ref, wf2_ref, wf3_ref, sh_ref, out_ref):
        # Packed per-channel shift vectors (folded BN shifts + biases), f32.
        t1 = sh_ref[0:1, 0:C1]                  # (1, 150)
        t2 = sh_ref[1:2, 0:C2P]                 # (1, 128)  lanes >= 100 are zero
        bf2 = sh_ref[2:3, 0:nh_pad]             # (1, nh_pad)
        bf3 = sh_ref[3:4, 0:no_pad]             # (1, no_pad)

        # --- Conv1d(200->150, k=1, pad=1) + folded BN + ReLU ------------------
        # x block is (2, tb, 200) position-major (no length padding streamed);
        # merging the leading dims is layout-preserving (tb % 128 == 0), giving
        # one (2*tb, 200) x (200, 150) matmul for the two real positions.
        xp = x_ref[...].reshape(2 * tb, C_IN)
        h1 = jnp.maximum(
            jnp.dot(xp, w1_ref[...], preferred_element_type=jnp.float32) + t1, 0.0)

        # --- MaxPool1d(2) over length, in registers ----------------------------
        # Conv1 output positions 0 and 3 come from the zero padding; their
        # BN+ReLU output is the constant row relu(t1), folded into the maxes.
        pad_row = jnp.maximum(t1, 0.0)                              # (1, 150)
        p0 = jnp.maximum(pad_row, h1[0 * tb:1 * tb, :])             # pooled pos 0
        p1 = jnp.maximum(h1[1 * tb:2 * tb, :], pad_row)             # pooled pos 1
        # TODO(synk): nn.Dropout is identity in eval mode; stochastic dropout not emitted.

        # --- Conv1d(150->100, k=2, pad=1) + folded BN + ReLU + MaxPool1d(2) ----
        # Only conv2 positions 0 and 1 survive the second pool (Flatten ->
        # Linear(100,.) forces a single output position).  w2c packs
        # [W_k1 | 0 | W_k0 | 0] into two aligned 128-lane halves, so one matmul
        # on p0 yields both of its terms; second matmul is p1 @ W_k1.
        w2c = w2c_ref[...]
        c0 = jnp.dot(p0, w2c, preferred_element_type=jnp.float32)           # (tb, 256)
        d1 = jnp.dot(p1, w2c[:, 0:C2P], preferred_element_type=jnp.float32)  # (tb, 128)
        h2_0 = jnp.maximum(c0[:, 0:C2P] + t2, 0.0)
        h2_1 = jnp.maximum(c0[:, C2P:2 * C2P] + d1 + t2, 0.0)
        feat = jnp.maximum(h2_0, h2_1)          # (tb, 128); lanes 100:128 are exactly 0

        # --- Linear(100, n_hidden) -> ReLU -> Linear(n_hidden, n_outputs) ------
        # FC weights are zero-padded to 128 lanes so the final store is a dense
        # (tb, no_pad) slab (unmasked, full-lane writeback).
        z = jnp.maximum(
            jnp.dot(feat, wf2_ref[...], preferred_element_type=jnp.float32) + bf2, 0.0)
        out_ref[...] = (
            jnp.dot(z, wf3_ref[...], preferred_element_type=jnp.float32) + bf3)

    return kernel


def fold_params(params, stream_dtype=jnp.bfloat16):
    """One-time folding of BN (eval) + biases into weights / shift vectors.

    Returns only device arrays: (w1f, w2cat, wf2p, wf3p, shifts).
    """
    (w1, b1, g1, be1, m1, v1,
     w2, b2, g2, be2, m2, v2,
     wf2, bf2, wf3, bf3) = params
    n_hidden, n_outputs = int(wf2.shape[0]), int(wf3.shape[0])
    nh_pad = _round_up(n_hidden, 128)
    no_pad = _round_up(n_outputs, 128)

    s1 = g1 / jnp.sqrt(v1 + BN_EPS)
    s2 = g2 / jnp.sqrt(v2 + BN_EPS)

    # conv1 weight folded with BN scale; streamed dtype (bf16 for the fast path).
    w1f = (jnp.transpose(w1[:, :, 0]) * s1[None, :]).astype(stream_dtype)     # (200, 150)

    # conv2 folded weights packed into aligned 128-lane halves: [W_k1 | W_k0].
    w20f = jnp.transpose(w2[:, :, 0]) * s2[None, :]                           # (150, 100)
    w21f = jnp.transpose(w2[:, :, 1]) * s2[None, :]                           # (150, 100)
    w2cat = jnp.zeros((C1, 2 * C2P), jnp.float32)
    w2cat = w2cat.at[:, 0:C2].set(w21f).at[:, C2P:C2P + C2].set(w20f)

    # FC weights zero-padded to 128-lane multiples (keeps every store lane-dense).
    wf2p = jnp.zeros((C2P, nh_pad), jnp.float32).at[0:C2, 0:n_hidden].set(jnp.transpose(wf2))
    wf3p = jnp.zeros((nh_pad, no_pad), jnp.float32).at[0:n_hidden, 0:n_outputs].set(jnp.transpose(wf3))

    # Per-channel shift vectors packed into one small block.
    t1p = b1 * s1 + (be1 - m1 * s1)                                           # (150,)
    t2p = b2 * s2 + (be2 - m2 * s2)                                           # (100,)
    padw = _round_up(max(C1, C2P, nh_pad, no_pad), 128)
    shifts = jnp.zeros((4, padw), jnp.float32)
    shifts = shifts.at[0, :C1].set(t1p)
    shifts = shifts.at[1, :C2].set(t2p)
    shifts = shifts.at[2, :n_hidden].set(bf2)
    shifts = shifts.at[3, :n_outputs].set(bf3)

    return (w1f, w2cat, wf2p, wf3p, shifts)


def cnn_regression_2_forward(x_ncl, folded, n_outputs, block_batch=512):
    """Eval-mode forward. x_ncl: (N, 200, 2) as in PyTorch NCL layout.

    Note: if the producer can keep activations position-major (L, N, 200), the
    transpose below disappears; it is the only remaining per-call wrapper work.
    """
    w1f, w2cat, wf2p, wf3p, shifts = folded
    n, c_in, l_in = x_ncl.shape
    assert c_in == C_IN
    assert l_in == 2, "Flatten dim must equal Linear(100, .) input => L must be 2"
    nh_pad = wf2p.shape[1]
    no_pad = wf3p.shape[1]

    tb = _pick_tb(n, block_batch)
    n_pad = _round_up(n, tb)
    grid = n_pad // tb

    # Cast first (halves transpose bytes for bf16), then go position-major.
    x_lnc = jnp.transpose(x_ncl.astype(w1f.dtype), (2, 0, 1))        # (2, n, 200)
    if n_pad != n:
        x_lnc = jnp.pad(x_lnc, ((0, 0), (0, n_pad - n), (0, 0)))     # batch tail only

    def const(shape):
        return pl.BlockSpec(shape, lambda i, _s=shape: (0,) * len(_s))

    kernel = _make_kernel(tb, nh_pad, no_pad)
    out = pl.pallas_call(
        kernel,
        out_shape=jax.ShapeDtypeStruct((n_pad, no_pad), jnp.float32),
        grid=(grid,),
        in_specs=[
            pl.BlockSpec((2, tb, C_IN), lambda i: (0, i, 0)),
            const(w1f.shape),
            const(w2cat.shape),
            const(wf2p.shape),
            const(wf3p.shape),
            const(shifts.shape),
        ],
        out_specs=pl.BlockSpec((tb, no_pad), lambda i: (i, 0)),
        compiler_params=pltpu.CompilerParams(dimension_semantics=("parallel",)),
    )(x_lnc, w1f, w2cat, wf2p, wf3p, shifts)

    return out[:n, :n_outputs]


def forward_ref(x_ncl, params):
    """Pure-JAX f32 reference of the eval-mode PyTorch forward (for validation)."""
    (w1, b1, g1, be1, m1, v1,
     w2, b2, g2, be2, m2, v2,
     wf2, bf2, wf3, bf3) = params
    x = x_ncl.astype(jnp.float32)
    xp = jnp.pad(x, ((0, 0), (0, 0), (1, 1)))
    c1 = jnp.einsum('ncl,oc->nol', xp, w1[:, :, 0]) + b1[None, :, None]
    h1 = (c1 - m1[None, :, None]) / jnp.sqrt(v1 + BN_EPS)[None, :, None]
    h1 = jnp.maximum(h1 * g1[None, :, None] + be1[None, :, None], 0.0)
    n, c, l = h1.shape
    h1 = jnp.max(h1[:, :, :(l // 2) * 2].reshape(n, c, l // 2, 2), axis=-1)
    p2 = jnp.pad(h1, ((0, 0), (0, 0), (1, 1)))
    c2 = (jnp.einsum('ncl,oc->nol', p2[:, :, :-1], w2[:, :, 0])
          + jnp.einsum('ncl,oc->nol', p2[:, :, 1:], w2[:, :, 1])
          + b2[None, :, None])
    h2 = (c2 - m2[None, :, None]) / jnp.sqrt(v2 + BN_EPS)[None, :, None]
    h2 = jnp.maximum(h2 * g2[None, :, None] + be2[None, :, None], 0.0)
    n, c, l = h2.shape
    h2 = jnp.max(h2[:, :, :(l // 2) * 2].reshape(n, c, l // 2, 2), axis=-1)
    flat = h2.reshape(n, -1)
    z = jnp.maximum(flat @ wf2.T + bf2, 0.0)
    return z @ wf3.T + bf3


if __name__ == "__main__":
    n_hidden, n_outputs = 32, 3
    L = 2                                            # L=2 keeps Flatten dim == 100
    f32 = jnp.float32
    key = jax.random.PRNGKey(0)
    ks = jax.random.split(key, 18)
    params = (
        0.05 * jax.random.normal(ks[0], (C1, C_IN, 1), f32),          # conv1 weight
        0.05 * jax.random.normal(ks[1], (C1,), f32),                  # conv1 bias
        1.0 + 0.1 * jax.random.normal(ks[2], (C1,), f32),             # bn1 gamma
        0.1 * jax.random.normal(ks[3], (C1,), f32),                   # bn1 beta
        0.1 * jax.random.normal(ks[4], (C1,), f32),                   # bn1 running_mean
        1.0 + 0.5 * jax.random.uniform(ks[5], (C1,), f32),            # bn1 running_var
        0.05 * jax.random.normal(ks[6], (C2, C1, 2), f32),            # conv2 weight
        0.05 * jax.random.normal(ks[7], (C2,), f32),                  # conv2 bias
        1.0 + 0.1 * jax.random.normal(ks[8], (C2,), f32),             # bn2 gamma
        0.1 * jax.random.normal(ks[9], (C2,), f32),                   # bn2 beta
        0.1 * jax.random.normal(ks[10], (C2,), f32),                  # bn2 running_mean
        1.0 + 0.5 * jax.random.uniform(ks[11], (C2,), f32),           # bn2 running_var
        0.1 * jax.random.normal(ks[12], (n_hidden, C2), f32),         # f2 weight
        0.1 * jax.random.normal(ks[13], (n_hidden,), f32),            # f2 bias
        0.1 * jax.random.normal(ks[14], (n_outputs, n_hidden), f32),  # f3 weight
        0.1 * jax.random.normal(ks[15], (n_outputs,), f32),           # f3 bias
    )

    # Param folding is hoisted: done once, reused across forward calls.
    folded_f32 = fold_params(params, stream_dtype=jnp.float32)
    folded_bf16 = fold_params(params, stream_dtype=jnp.bfloat16)

    # Main check: 2 grid blocks (tb=256) + batch-tail padding.
    N = 300
    x = jax.random.normal(ks[16], (N, C_IN, L), f32)
    ref = forward_ref(x, params)

    # (a) Exact-algebra check: f32 streaming path vs f32 reference (tight tol).
    out_f32 = jax.block_until_ready(cnn_regression_2_forward(x, folded_f32, n_outputs))
    assert out_f32.shape == (N, n_outputs)
    np.testing.assert_allclose(np.asarray(out_f32), np.asarray(ref), rtol=1e-4, atol=1e-4)

    # (b) Perf path: bf16-streamed x / conv1 weight, f32 accumulation (looser tol).
    out_bf16 = jax.block_until_ready(cnn_regression_2_forward(x, folded_bf16, n_outputs))
    np.testing.assert_allclose(np.asarray(out_bf16), np.asarray(ref), rtol=2e-2, atol=2e-2)

    # Tiny-batch sanity check (single padded block).
    x_small = jax.random.normal(ks[17], (3, C_IN, L), f32)
    out_s = jax.block_until_ready(cnn_regression_2_forward(x_small, folded_bf16, n_outputs))
    np.testing.assert_allclose(np.asarray(out_s), np.asarray(forward_ref(x_small, params)),
                               rtol=2e-2, atol=2e-2)

    print("KERNEL_OK")
</pallas_src>

<mosaic_0001>
module attributes {stable_mosaic.version = 11 : i64} {
  func.func @kernel(%arg0: i32, %arg1: memref<2x256x200xf32, #tpu.memory_space<vmem>>, %arg2: memref<200x150xf32, #tpu.memory_space<vmem>>, %arg3: memref<150x256xf32, #tpu.memory_space<vmem>>, %arg4: memref<128x128xf32, #tpu.memory_space<vmem>>, %arg5: memref<128x128xf32, #tpu.memory_space<vmem>>, %arg6: memref<4x256xf32, #tpu.memory_space<vmem>>, %arg7: memref<256x128xf32, #tpu.memory_space<vmem>>) attributes {dimension_semantics = [#tpu.dimension_semantics<parallel>], iteration_bounds = array<i64: 2>, scalar_prefetch = 0 : i64, scratch_operands = 0 : i64, tpu.core_type = #tpu.core_type<tc>, window_params = [{transform_indices = @transform_0, window_bounds = array<i64: 2, 256, 200>}, {pipeline_mode = #tpu.pipeline_mode<synchronous>, transform_indices = @transform_1, window_bounds = array<i64: 200, 150>}, {pipeline_mode = #tpu.pipeline_mode<synchronous>, transform_indices = @transform_2, window_bounds = array<i64: 150, 256>}, {pipeline_mode = #tpu.pipeline_mode<synchronous>, transform_indices = @transform_3, window_bounds = array<i64: 128, 128>}, {pipeline_mode = #tpu.pipeline_mode<synchronous>, transform_indices = @transform_4, window_bounds = array<i64: 128, 128>}, {pipeline_mode = #tpu.pipeline_mode<synchronous>, transform_indices = @transform_5, window_bounds = array<i64: 4, 256>}, {transform_indices = @transform_6, window_bounds = array<i64: 256, 128>}]} {
    %c0 = arith.constant 0 : index
    %c0_0 = arith.constant 0 : index
    %0 = vector.load %arg6[%c0, %c0_0] : memref<4x256xf32, #tpu.memory_space<vmem>>, vector<1x150xf32>
    %c1 = arith.constant 1 : index
    %c0_1 = arith.constant 0 : index
    %1 = vector.load %arg6[%c1, %c0_1] : memref<4x256xf32, #tpu.memory_space<vmem>>, vector<1x128xf32>
    %c2 = arith.constant 2 : index
    %c0_2 = arith.constant 0 : index
    %2 = vector.load %arg6[%c2, %c0_2] : memref<4x256xf32, #tpu.memory_space<vmem>>, vector<1x128xf32>
    %c3 = arith.constant 3 : index
    %c0_3 = arith.constant 0 : index
    %3 = vector.load %arg6[%c3, %c0_3] : memref<4x256xf32, #tpu.memory_space<vmem>>, vector<1x128xf32>
    %c0_4 = arith.constant 0 : index
    %c0_5 = arith.constant 0 : index
    %c0_6 = arith.constant 0 : index
    %4 = vector.load %arg1[%c0_4, %c0_5, %c0_6] : memref<2x256x200xf32, #tpu.memory_space<vmem>>, vector<2x256x200xf32>
    %5 = vector.shape_cast %4 : vector<2x256x200xf32> to vector<512x200xf32>
    %c0_7 = arith.constant 0 : index
    %c0_8 = arith.constant 0 : index
    %6 = vector.load %arg2[%c0_7, %c0_8] : memref<200x150xf32, #tpu.memory_space<vmem>>, vector<200x150xf32>
    %cst = arith.constant dense<0.000000e+00> : vector<512x150xf32>
    %7 = tpu.matmul %5, %6, %cst {dimension_numbers = #tpu.dot_dimension_numbers<[1], [0], [0], [1], [0, 0, 1, 1], [], []>} : vector<512x200xf32>, vector<200x150xf32>, vector<512x150xf32> -> vector<512x150xf32>
    %8 = vector.broadcast %0 : vector<1x150xf32> to vector<512x150xf32>
    %9 = arith.addf %7, %8 : vector<512x150xf32>
    %cst_9 = arith.constant 0.000000e+00 : f32
    %10 = vector.broadcast %cst_9 : f32 to vector<512x150xf32>
    %11 = arith.maximumf %9, %10 : vector<512x150xf32>
    %cst_10 = arith.constant 0.000000e+00 : f32
    %12 = vector.broadcast %cst_10 : f32 to vector<1x150xf32>
    %13 = arith.maximumf %0, %12 : vector<1x150xf32>
    %14 = vector.extract_strided_slice %11 {offsets = [0, 0], sizes = [256, 150], strides = [1, 1]} : vector<512x150xf32> to vector<256x150xf32>
    %15 = vector.broadcast %13 : vector<1x150xf32> to vector<256x150xf32>
    %16 = arith.maximumf %15, %14 : vector<256x150xf32>
    %17 = vector.extract_strided_slice %11 {offsets = [256, 0], sizes = [256, 150], strides = [1, 1]} : vector<512x150xf32> to vector<256x150xf32>
    %18 = vector.broadcast %13 : vector<1x150xf32> to vector<256x150xf32>
    %19 = arith.maximumf %17, %18 : vector<256x150xf32>
    %c0_11 = arith.constant 0 : index
    %c0_12 = arith.constant 0 : index
    %20 = vector.load %arg3[%c0_11, %c0_12] : memref<150x256xf32, #tpu.memory_space<vmem>>, vector<150x256xf32>
    %cst_13 = arith.constant dense<0.000000e+00> : vector<256x256xf32>
    %21 = tpu.matmul %16, %20, %cst_13 {dimension_numbers = #tpu.dot_dimension_numbers<[1], [0], [0], [1], [0, 0, 1, 1], [], []>} : vector<256x150xf32>, vector<150x256xf32>, vector<256x256xf32> -> vector<256x256xf32>
    %22 = vector.extract_strided_slice %20 {offsets = [0, 0], sizes = [150, 128], strides = [1, 1]} : vector<150x256xf32> to vector<150x128xf32>
    %cst_14 = arith.constant dense<0.000000e+00> : vector<256x128xf32>
    %23 = tpu.matmul %19, %22, %cst_14 {dimension_numbers = #tpu.dot_dimension_numbers<[1], [0], [0], [1], [0, 0, 1, 1], [], []>} : vector<256x150xf32>, vector<150x128xf32>, vector<256x128xf32> -> vector<256x128xf32>
    %24 = vector.extract_strided_slice %21 {offsets = [0, 0], sizes = [256, 128], strides = [1, 1]} : vector<256x256xf32> to vector<256x128xf32>
    %25 = vector.broadcast %1 : vector<1x128xf32> to vector<256x128xf32>
    %26 = arith.addf %24, %25 : vector<256x128xf32>
    %cst_15 = arith.constant 0.000000e+00 : f32
    %27 = vector.broadcast %cst_15 : f32 to vector<256x128xf32>
    %28 = arith.maximumf %26, %27 : vector<256x128xf32>
    %29 = vector.extract_strided_slice %21 {offsets = [0, 128], sizes = [256, 128], strides = [1, 1]} : vector<256x256xf32> to vector<256x128xf32>
    %30 = arith.addf %29, %23 : vector<256x128xf32>
    %31 = vector.broadcast %1 : vector<1x128xf32> to vector<256x128xf32>
    %32 = arith.addf %30, %31 : vector<256x128xf32>
    %cst_16 = arith.constant 0.000000e+00 : f32
    %33 = vector.broadcast %cst_16 : f32 to vector<256x128xf32>
    %34 = arith.maximumf %32, %33 : vector<256x128xf32>
    %35 = arith.maximumf %28, %34 : vector<256x128xf32>
    %c0_17 = arith.constant 0 : index
    %c0_18 = arith.constant 0 : index
    %36 = vector.load %arg4[%c0_17, %c0_18] : memref<128x128xf32, #tpu.memory_space<vmem>>, vector<128x128xf32>
    %cst_19 = arith.constant dense<0.000000e+00> : vector<256x128xf32>
    %37 = tpu.matmul %35, %36, %cst_19 {dimension_numbers = #tpu.dot_dimension_numbers<[1], [0], [0], [1], [0, 0, 1, 1], [], []>} : vector<256x128xf32>, vector<128x128xf32>, vector<256x128xf32> -> vector<256x128xf32>
    %38 = vector.broadcast %2 : vector<1x128xf32> to vector<256x128xf32>
    %39 = arith.addf %37, %38 : vector<256x128xf32>
    %cst_20 = arith.constant 0.000000e+00 : f32
    %40 = vector.broadcast %cst_20 : f32 to vector<256x128xf32>
    %41 = arith.maximumf %39, %40 : vector<256x128xf32>
    %c0_21 = arith.constant 0 : index
    %c0_22 = arith.constant 0 : index
    %42 = vector.load %arg5[%c0_21, %c0_22] : memref<128x128xf32, #tpu.memory_space<vmem>>, vector<128x128xf32>
    %cst_23 = arith.constant dense<0.000000e+00> : vector<256x128xf32>
    %43 = tpu.matmul %41, %42, %cst_23 {dimension_numbers = #tpu.dot_dimension_numbers<[1], [0], [0], [1], [0, 0, 1, 1], [], []>} : vector<256x128xf32>, vector<128x128xf32>, vector<256x128xf32> -> vector<256x128xf32>
    %44 = vector.broadcast %3 : vector<1x128xf32> to vector<256x128xf32>
    %45 = arith.addf %43, %44 : vector<256x128xf32>
    %c0_24 = arith.constant 0 : index
    %c0_25 = arith.constant 0 : index
    %46 = vector.load %arg7[%c0_24, %c0_25] : memref<256x128xf32, #tpu.memory_space<vmem>>, vector<256x128xf32>
    tpu.vector_store %arg7[%c0_24, %c0_25], %45 {strides = array<i32>} : memref<256x128xf32, #tpu.memory_space<vmem>>, vector<256x128xf32>,
    return
  }
  func.func @transform_0(%arg0: i32) -> (i32, i32, i32) {
    %c0_i32 = arith.constant 0 : i32
    %c0_i32_0 = arith.constant 0 : i32
    %c0_i32_1 = arith.constant 0 : i32
    return %c0_i32, %arg0, %c0_i32_0 : i32, i32, i32
  }
  func.func @transform_1(%arg0: i32) -> (i32, i32) {
    %c0_i32 = arith.constant 0 : i32
    %c0_i32_0 = arith.constant 0 : i32
    %c0_i32_1 = arith.constant 0 : i32
    return %c0_i32, %c0_i32_0 : i32, i32
  }
  func.func @transform_2(%arg0: i32) -> (i32, i32) {
    %c0_i32 = arith.constant 0 : i32
    %c0_i32_0 = arith.constant 0 : i32
    %c0_i32_1 = arith.constant 0 : i32
    return %c0_i32, %c0_i32_0 : i32, i32
  }
  func.func @transform_3(%arg0: i32) -> (i32, i32) {
    %c0_i32 = arith.constant 0 : i32
    %c0_i32_0 = arith.constant 0 : i32
    %c0_i32_1 = arith.constant 0 : i32
    return %c0_i32, %c0_i32_0 : i32, i32
  }
  func.func @transform_4(%arg0: i32) -> (i32, i32) {
    %c0_i32 = arith.constant 0 : i32
    %c0_i32_0 = arith.constant 0 : i32
    %c0_i32_1 = arith.constant 0 : i32
    return %c0_i32, %c0_i32_0 : i32, i32
  }
  func.func @transform_5(%arg0: i32) -> (i32, i32) {
    %c0_i32 = arith.constant 0 : i32
    %c0_i32_0 = arith.constant 0 : i32
    %c0_i32_1 = arith.constant 0 : i32
    return %c0_i32, %c0_i32_0 : i32, i32
  }
  func.func @transform_6(%arg0: i32) -> (i32, i32) {
    %c0_i32 = arith.constant 0 : i32
    %c0_i32_0 = arith.constant 0 : i32
    return %arg0, %c0_i32 : i32, i32
  }
}

</mosaic_0001>

<llo_original>
// kernel: tpu_custom_call.1
$region0: #{tpu_custom_call.1}
  #allocation0 [shape = 'u32[]', space=smem, size = 0x4, offset = 0x4, fixed_abs, tag = 'smem constant byte address 0x4 - core index']
  #allocation1 [shape = 'u32[72,128]{1,0:T(1,128)}', space=vmem, size = 0x9000, scoped, tag = 'internal scratch']
  %s0 = inlined_call_operand.vmem [shape: f32[2,512,200], index: 0, kind: input, shape index: {}]
  %s1 = inlined_call_operand.vmem [shape: f32[200,150], index: 1, kind: input, shape index: {}]
  %s2 = inlined_call_operand.vmem [shape: f32[150,256], index: 2, kind: input, shape index: {}]
  %s3 = inlined_call_operand.vmem [shape: f32[128,128], index: 3, kind: input, shape index: {}]
  %s4 = inlined_call_operand.vmem [shape: f32[128,128], index: 4, kind: input, shape index: {}]
  %s5 = inlined_call_operand.vmem [shape: f32[4,256], index: 5, kind: input, shape index: {}]
  %s6 = inlined_call_operand.hbm [shape: f32[512,128], index: 6, kind: output, shape index: {}]
  %s7 = sld [smem:[#allocation0]]
  $region80: #{tpu_custom_call.1} parent=0
    _
  %s9 = ssub.s32 1, %s7
  %s10 = scalar_select 0, %s9, %s7
  $region1: #{tpu_custom_call.1} parent=0
    #allocation2 [shape = 'u8[1048576]{0}', space=vmem, size = 0x100000, scoped, tag = 'input window, operand 0']
    #allocation3 [shape = 'u8[262144]{0}', space=vmem, size = 0x40000, scoped, tag = 'output window, operand 0']
    #allocation4 [shape = 's32[2]{0}', space=sflag, size = 0x8, scoped, tag = 'scoped memory for tpu_custom_call.1']
    %11 = vsyncpa [#allocation4], 0
    %s12 = scalar_lea.sflag [#allocation4], 1
    %13 = vsyncpa %s12, 0
    loop: start=0, step=1, limit=4
    $region2: #{tpu_custom_call.1} parent=1 // loop_pre_header
      _
    $region3: #{tpu_custom_call.1} parent=1 // loop_header
      %s15 = sphi 0, %s19
      %p16 = scmp.ge.s32.totalorder %s15, 4
      %s25 = sphi 0, %s27
      %s28 = sphi 0, %s25
      %s29 = sphi 0, %s28
      %s45 = sphi 0, %s29
      %s49 = sphi 0, %s49
      %s51 = sphi 0, %s49
      %s52 = sphi 0, %s51
      %s66 = sphi 0, %s52
      %s70 = sphi 0, %s70
      %s72 = sphi 0, %s70
      %s73 = sphi 0, %s72
      %s87 = sphi 0, %s73
      %s91 = sphi 0, %s91
      %s93 = sphi 0, %s91
      %s94 = sphi 0, %s93
      %s108 = sphi 0, %s94
      %s112 = sphi 0, %s112
      %s114 = sphi 0, %s112
      %s115 = sphi 0, %s114
      %s129 = sphi 0, %s115
      %s133 = sphi 0, %s133
      %s135 = sphi 0, %s133
      %s136 = sphi 0, %s135
      %s150 = sphi 0, %s136
      %s156 = sphi 0, %s158
      %s159 = sphi 0, %s156
      %s160 = sphi 0, %s159
      %s176 = sphi 0, %s160
    $region4: #{tpu_custom_call.1} parent=1 // loop_header_branch
      %18 = sbr.rel (%p16) target = $region8
    $region5: #{tpu_custom_call.1} parent=1 // loop_body
      %s20 = ssub.s32 %s15, 1
      %s21 = ssub.s32 %s15, 2
      %s22 = sadd.s32 %s15, 1
      %s23 = ssub.s32 %s15, %s22
      %p24 = scmp.eq.s32.totalorder %s23, 0
      %s26 = sadd.s32 %s25, 1
      %s27 = scalar_select %p24, %s25, %s26
      %p30 = pneg %p24
      %p31 = scmp.eq.s32.totalorder %s15, 1
      %p32 = por %p30, %p31
      %p33 = scmp.ne.s32.totalorder %s25, %s28
      %p34 = scmp.eq.s32.totalorder %s15, 0
      %p35 = por %p33, %p34
      %p36 = scmp.ne.s32.totalorder %s25, %s28
      %p37 = scmp.eq.s32.totalorder %s20, 1
      %p38 = por %p36, %p37
      %p39 = scmp.ne.s32.totalorder %s28, %s29
      %p40 = scmp.eq.s32.totalorder %s20, 0
      %p41 = por %p39, %p40
      %p42 = scmp.ne.s32.totalorder %s28, %s29
      %p43 = scmp.eq.s32.totalorder %s21, 1
      %p44 = por %p42, %p43
      %p46 = scmp.ne.s32.totalorder %s29, %s45
      %p47 = scmp.eq.s32.totalorder %s21, 0
      %p48 = por %p46, %p47
      %s50 = sadd.s32 %s49, 1
      %p53 = scmp.eq.s32.totalorder %s15, 1
      %p54 = scmp.ne.s32.totalorder %s49, %s51
      %p55 = scmp.eq.s32.totalorder %s15, 0
      %p56 = por %p54, %p55
      %p57 = scmp.ne.s32.totalorder %s49, %s51
      %p58 = scmp.eq.s32.totalorder %s20, 1
      %p59 = por %p57, %p58
      %p60 = scmp.ne.s32.totalorder %s51, %s52
      %p61 = scmp.eq.s32.totalorder %s20, 0
      %p62 = por %p60, %p61
      %p63 = scmp.ne.s32.totalorder %s51, %s52
      %p64 = scmp.eq.s32.totalorder %s21, 1
      %p65 = por %p63, %p64
      %p67 = scmp.ne.s32.totalorder %s52, %s66
      %p68 = scmp.eq.s32.totalorder %s21, 0
      %p69 = por %p67, %p68
      %s71 = sadd.s32 %s70, 1
      %p74 = scmp.eq.s32.totalorder %s15, 1
      %p75 = scmp.ne.s32.totalorder %s70, %s72
      %p76 = scmp.eq.s32.totalorder %s15, 0
      %p77 = por %p75, %p76
      %p78 = scmp.ne.s32.totalorder %s70, %s72
      %p79 = scmp.eq.s32.totalorder %s20, 1
      %p80 = por %p78, %p79
      %p81 = scmp.ne.s32.totalorder %s72, %s73
      %p82 = scmp.eq.s32.totalorder %s20, 0
      %p83 = por %p81, %p82
      %p84 = scmp.ne.s32.totalorder %s72, %s73
      %p85 = scmp.eq.s32.totalorder %s21, 1
      %p86 = por %p84, %p85
      %p88 = scmp.ne.s32.totalorder %s73, %s87
      %p89 = scmp.eq.s32.totalorder %s21, 0
      %p90 = por %p88, %p89
      %s92 = sadd.s32 %s91, 1
      %p95 = scmp.eq.s32.totalorder %s15, 1
      %p96 = scmp.ne.s32.totalorder %s91, %s93
      %p97 = scmp.eq.s32.totalorder %s15, 0
      %p98 = por %p96, %p97
      %p99 = scmp.ne.s32.totalorder %s91, %s93
      %p100 = scmp.eq.s32.totalorder %s20, 1
      %p101 = por %p99, %p100
      %p102 = scmp.ne.s32.totalorder %s93, %s94
      %p103 = scmp.eq.s32.totalorder %s20, 0
      %p104 = por %p102, %p103
      %p105 = scmp.ne.s32.totalorder %s93, %s94
      %p106 = scmp.eq.s32.totalorder %s21, 1
      %p107 = por %p105, %p106
      %p109 = scmp.ne.s32.totalorder %s94, %s108
      %p110 = scmp.eq.s32.totalorder %s21, 0
      %p111 = por %p109, %p110
      %s113 = sadd.s32 %s112, 1
      %p116 = scmp.eq.s32.totalorder %s15, 1
      %p117 = scmp.ne.s32.totalorder %s112, %s114
      %p118 = scmp.eq.s32.totalorder %s15, 0
      %p119 = por %p117, %p118
      %p120 = scmp.ne.s32.totalorder %s112, %s114
      %p121 = scmp.eq.s32.totalorder %s20, 1
      %p122 = por %p120, %p121
      %p123 = scmp.ne.s32.totalorder %s114, %s115
      %p124 = scmp.eq.s32.totalorder %s20, 0
      %p125 = por %p123, %p124
      %p126 = scmp.ne.s32.totalorder %s114, %s115
      %p127 = scmp.eq.s32.totalorder %s21, 1
      %p128 = por %p126, %p127
      %p130 = scmp.ne.s32.totalorder %s115, %s129
      %p131 = scmp.eq.s32.totalorder %s21, 0
      %p132 = por %p130, %p131
      %s134 = sadd.s32 %s133, 1
      %p137 = scmp.eq.s32.totalorder %s15, 1
      %p138 = scmp.ne.s32.totalorder %s133, %s135
      %p139 = scmp.eq.s32.totalorder %s15, 0
      %p140 = por %p138, %p139
      %p141 = scmp.ne.s32.totalorder %s133, %s135
      %p142 = scmp.eq.s32.totalorder %s20, 1
      %p143 = por %p141, %p142
      %p144 = scmp.ne.s32.totalorder %s135, %s136
      %p145 = scmp.eq.s32.totalorder %s20, 0
      %p146 = por %p144, %p145
      %p147 = scmp.ne.s32.totalorder %s135, %s136
      %p148 = scmp.eq.s32.totalorder %s21, 1
      %p149 = por %p147, %p148
      %p151 = scmp.ne.s32.totalorder %s136, %s150
      %p152 = scmp.eq.s32.totalorder %s21, 0
      %p153 = por %p151, %p152
      %s154 = ssub.s32 %s15, %s22
      %p155 = scmp.eq.s32.totalorder %s154, 0
      %s157 = sadd.s32 %s156, 1
      %s158 = scalar_select %p155, %s156, %s157
      %p161 = pneg %p155
      %p162 = scmp.eq.s32.totalorder %s15, 1
      %p163 = por %p161, %p162
      %p164 = scmp.ne.s32.totalorder %s156, %s159
      %p165 = scmp.eq.s32.totalorder %s15, 0
      %p166 = por %p164, %p165
      %p167 = scmp.ne.s32.totalorder %s156, %s159
      %p168 = scmp.eq.s32.totalorder %s20, 1
      %p169 = por %p167, %p168
      %p170 = scmp.ne.s32.totalorder %s159, %s160
      %p171 = scmp.eq.s32.totalorder %s20, 0
      %p172 = por %p170, %p171
      %p173 = scmp.ne.s32.totalorder %s159, %s160
      %p174 = scmp.eq.s32.totalorder %s21, 1
      %p175 = por %p173, %p174
      %p177 = scmp.ne.s32.totalorder %s160, %s176
      %p178 = scmp.eq.s32.totalorder %s21, 0
      %p179 = por %p177, %p178
      %p180 = scmp.le.s32.totalorder 1, %s15
      %p181 = scmp.lt.s32.totalorder %s15, 3
      %p182 = pnand %p180, %p181
      %p183 = pneg %p182
      // Predicated region
      $region9: #{tpu_custom_call.1} parent=5 // pred_check
        _
      $region10: #{tpu_custom_call.1} parent=5 // pred_check_branch
        %185 = sbr.rel (%p182) target = $region12
      $region11: #{tpu_custom_call.1} parent=5 // pred_region
        %s186 = ssub.s32 %s15, 1
        // Predicated region
        $region13: #{tpu_custom_call.1} parent=11 // pred_check
          %p187 = pneg %p62
        $region14: #{tpu_custom_call.1} parent=11 // pred_check_branch
          %189 = sbr.rel (%p187) target = $region16
        $region15: #{tpu_custom_call.1} parent=11 // pred_region
          _
        $region16: #{tpu_custom_call.1} parent=11 // pred_fallthru
          _
        // Predicated region
        $region17: #{tpu_custom_call.1} parent=11 // pred_check
          %p190 = pneg %p83
        $region18: #{tpu_custom_call.1} parent=11 // pred_check_branch
          %192 = sbr.rel (%p190) target = $region20
        $region19: #{tpu_custom_call.1} parent=11 // pred_region
          _
        $region20: #{tpu_custom_call.1} parent=11 // pred_fallthru
          _
        // Predicated region
        $region21: #{tpu_custom_call.1} parent=11 // pred_check
          %p193 = pneg %p104
        $region22: #{tpu_custom_call.1} parent=11 // pred_check_branch
          %195 = sbr.rel (%p193) target = $region24
        $region23: #{tpu_custom_call.1} parent=11 // pred_region
          _
        $region24: #{tpu_custom_call.1} parent=11 // pred_fallthru
          _
        // Predicated region
        $region25: #{tpu_custom_call.1} parent=11 // pred_check
          %p196 = pneg %p125
        $region26: #{tpu_custom_call.1} parent=11 // pred_check_branch
          %198 = sbr.rel (%p196) target = $region28
        $region27: #{tpu_custom_call.1} parent=11 // pred_region
          _
        $region28: #{tpu_custom_call.1} parent=11 // pred_fallthru
          _
        // Predicated region
        $region29: #{tpu_custom_call.1} parent=11 // pred_check
          %p199 = pneg %p146
        $region30: #{tpu_custom_call.1} parent=11 // pred_check_branch
          %201 = sbr.rel (%p199) target = $region32
        $region31: #{tpu_custom_call.1} parent=11 // pred_region
          _
        $region32: #{tpu_custom_call.1} parent=11 // pred_fallthru
          _
      $region12: #{tpu_custom_call.1} parent=5 // pred_fallthru
        _
      %p202 = scmp.lt.s32.totalorder %s15, 2
      // Predicated region
      $region33: #{tpu_custom_call.1} parent=5 // pred_check
        %p203 = pneg %p202
      $region34: #{tpu_custom_call.1} parent=5 // pred_check_branch
        %205 = sbr.rel (%p203) target = $region36
      $region35: #{tpu_custom_call.1} parent=5 // pred_region
        // Predicated region
        $region37: #{tpu_custom_call.1} parent=35 // pred_check
          %p206 = pneg %p35
        $region38: #{tpu_custom_call.1} parent=35 // pred_check_branch
          %208 = sbr.rel (%p206) target = $region40
        $region39: #{tpu_custom_call.1} parent=35 // pred_region
          %s209 = sand.u32 %s25, 1
          %s210 = sand.u32 %s25, 1
          %s211 = smul.addr %s210, 1024
          %s212 = scalar_lea.vmem [#allocation2], %s211
          %s213 = smul.u32 32, %s15
          %s214 = smul.addr %s213, 2
          %s215 = smul.addr %s214, 8
          %s216 = scalar_lea.vmem %s0, %s215
          // Predicated region
          $region41: #{tpu_custom_call.1} parent=39 // pred_check
            _
          $region42: #{tpu_custom_call.1} parent=39 // pred_check_branch
            %218 = sbr.rel (0) target = $region44
          $region43: #{tpu_custom_call.1} parent=39 // pred_region
            // Predicated region
            $region45: #{tpu_custom_call.1} parent=43 // pred_check
              _
            $region46: #{tpu_custom_call.1} parent=43 // pred_check_branch
              %220 = sbr.rel (0) target = $region48
            $region47: #{tpu_custom_call.1} parent=43 // pred_region
              loop: start=0, step=1, limit=1
              $region49: #{tpu_custom_call.1} parent=47 // loop_pre_header
                _
              $region50: #{tpu_custom_call.1} parent=47 // loop_header
                %s222 = sphi 0, %s226
                %p223 = scmp.ge.s32.totalorder %s222, 1
                %s227 = sphi %s216, %s216
                %s228 = sphi %s212, %s212
              $region51: #{tpu_custom_call.1} parent=47 // loop_header_branch
                %225 = sbr.rel (%p223) target = $region55
              $region52: #{tpu_custom_call.1} parent=47 // loop_body
                %v229 = vld [vmem:[%s227] sm:$0xff]
                %230 = vst [vmem:[%s228] sm:$0xff] %v229
                %v231 = vld [vmem:[%s227 + $0x8] sm:$0xff]
                %232 = vst [vmem:[%s228 + $0x8] sm:$0xff] %v231
                %v233 = vld [vmem:[%s227 + $0x10] sm:$0xff]
                %234 = vst [vmem:[%s228 + $0x10] sm:$0xff] %v233
                %v235 = vld [vmem:[%s227 + $0x18] sm:$0xff]
                %236 = vst [vmem:[%s228 + $0x18] sm:$0xff] %v235
                %v237 = vld [vmem:[%s227 + $0x20] sm:$0xff]
                %238 = vst [vmem:[%s228 + $0x20] sm:$0xff] %v237
                %v239 = vld [vmem:[%s227 + $0x28] sm:$0xff]
                %240 = vst [vmem:[%s228 + $0x28] sm:$0xff] %v239
                %v241 = vld [vmem:[%s227 + $0x30] sm:$0xff]
                %242 = vst [vmem:[%s228 + $0x30] sm:$0xff] %v241
                %v243 = vld [vmem:[%s227 + $0x38] sm:$0xff]
                %244 = vst [vmem:[%s228 + $0x38] sm:$0xff] %v243
                %v245 = vld [vmem:[%s227 + $0x40] sm:$0xff]
                %246 = vst [vmem:[%s228 + $0x40] sm:$0xff] %v245
                %v247 = vld [vmem:[%s227 + $0x48] sm:$0xff]
                %248 = vst [vmem:[%s228 + $0x48] sm:$0xff] %v247
                %v249 = vld [vmem:[%s227 + $0x50] sm:$0xff]
                %250 = vst [vmem:[%s228 + $0x50] sm:$0xff] %v249
                %v251 = vld [vmem:[%s227 + $0x58] sm:$0xff]
                %252 = vst [vmem:[%s228 + $0x58] sm:$0xff] %v251
                %v253 = vld [vmem:[%s227 + $0x60] sm:$0xff]
                %254 = vst [vmem:[%s228 + $0x60] sm:$0xff] %v253
                %v255 = vld [vmem:[%s227 + $0x68] sm:$0xff]
                %256 = vst [vmem:[%s228 + $0x68] sm:$0xff] %v255
                %v257 = vld [vmem:[%s227 + $0x70] sm:$0xff]
                %258 = vst [vmem:[%s228 + $0x70] sm:$0xff] %v257
                %v259 = vld [vmem:[%s227 + $0x78] sm:$0xff]
                %260 = vst [vmem:[%s228 + $0x78] sm:$0xff] %v259
                %v261 = vld [vmem:[%s227 + $0x80] sm:$0xff]
                %262 = vst [vmem:[%s228 + $0x80] sm:$0xff] %v261
                %v263 = vld [vmem:[%s227 + $0x88] sm:$0xff]
                %264 = vst [vmem:[%s228 + $0x88] sm:$0xff] %v263
                %v265 = vld [vmem:[%s227 + $0x90] sm:$0xff]
                %266 = vst [vmem:[%s228 + $0x90] sm:$0xff] %v265
                %v267 = vld [vmem:[%s227 + $0x98] sm:$0xff]
                %268 = vst [vmem:[%s228 + $0x98] sm:$0xff] %v267
                %v269 = vld [vmem:[%s227 + $0xa0] sm:$0xff]
                %270 = vst [vmem:[%s228 + $0xa0] sm:$0xff] %v269
                %v271 = vld [vmem:[%s227 + $0xa8] sm:$0xff]
                %272 = vst [vmem:[%s228 + $0xa8] sm:$0xff] %v271
                %v273 = vld [vmem:[%s227 + $0xb0] sm:$0xff]
                %274 = vst [vmem:[%s228 + $0xb0] sm:$0xff] %v273
                %v275 = vld [vmem:[%s227 + $0xb8] sm:$0xff]
                %276 = vst [vmem:[%s228 + $0xb8] sm:$0xff] %v275
                %v277 = vld [vmem:[%s227 + $0xc0] sm:$0xff]
                %278 = vst [vmem:[%s228 + $0xc0] sm:$0xff] %v277
                %v279 = vld [vmem:[%s227 + $0xc8] sm:$0xff]
                %280 = vst [vmem:[%s228 + $0xc8] sm:$0xff] %v279
                %v281 = vld [vmem:[%s227 + $0xd0] sm:$0xff]
                %282 = vst [vmem:[%s228 + $0xd0] sm:$0xff] %v281
                %v283 = vld [vmem:[%s227 + $0xd8] sm:$0xff]
                %284 = vst [vmem:[%s228 + $0xd8] sm:$0xff] %v283
                %v285 = vld [vmem:[%s227 + $0xe0] sm:$0xff]
                %286 = vst [vmem:[%s228 + $0xe0] sm:$0xff] %v285
                %v287 = vld [vmem:[%s227 + $0xe8] sm:$0xff]
                %288 = vst [vmem:[%s228 + $0xe8] sm:$0xff] %v287
                %v289 = vld [vmem:[%s227 + $0xf0] sm:$0xff]
                %290 = vst [vmem:[%s228 + $0xf0] sm:$0xff] %v289
                %v291 = vld [vmem:[%s227 + $0xf8] sm:$0xff]
                %292 = vst [vmem:[%s228 + $0xf8] sm:$0xff] %v291
                %v293 = vld [vmem:[%s227 + $0x100] sm:$0xff]
                %294 = vst [vmem:[%s228 + $0x100] sm:$0xff] %v293
                %v295 = vld [vmem:[%s227 + $0x108] sm:$0xff]
                %296 = vst [vmem:[%s228 + $0x108] sm:$0xff] %v295
                %v297 = vld [vmem:[%s227 + $0x110] sm:$0xff]
                %298 = vst [vmem:[%s228 + $0x110] sm:$0xff] %v297
                %v299 = vld [vmem:[%s227 + $0x118] sm:$0xff]
                %300 = vst [vmem:[%s228 + $0x118] sm:$0xff] %v299
                %v301 = vld [vmem:[%s227 + $0x120] sm:$0xff]
                %302 = vst [vmem:[%s228 + $0x120] sm:$0xff] %v301
                %v303 = vld [vmem:[%s227 + $0x128] sm:$0xff]
                %304 = vst [vmem:[%s228 + $0x128] sm:$0xff] %v303
                %v305 = vld [vmem:[%s227 + $0x130] sm:$0xff]
                %306 = vst [vmem:[%s228 + $0x130] sm:$0xff] %v305
                %v307 = vld [vmem:[%s227 + $0x138] sm:$0xff]
                %308 = vst [vmem:[%s228 + $0x138] sm:$0xff] %v307
                %v309 = vld [vmem:[%s227 + $0x140] sm:$0xff]
                %310 = vst [vmem:[%s228 + $0x140] sm:$0xff] %v309
                %v311 = vld [vmem:[%s227 + $0x148] sm:$0xff]
                %312 = vst [vmem:[%s228 + $0x148] sm:$0xff] %v311
                %v313 = vld [vmem:[%s227 + $0x150] sm:$0xff]
                %314 = vst [vmem:[%s228 + $0x150] sm:$0xff] %v313
                %v315 = vld [vmem:[%s227 + $0x158] sm:$0xff]
                %316 = vst [vmem:[%s228 + $0x158] sm:$0xff] %v315
                %v317 = vld [vmem:[%s227 + $0x160] sm:$0xff]
                %318 = vst [vmem:[%s228 + $0x160] sm:$0xff] %v317
                %v319 = vld [vmem:[%s227 + $0x168] sm:$0xff]
                %320 = vst [vmem:[%s228 + $0x168] sm:$0xff] %v319
                %v321 = vld [vmem:[%s227 + $0x170] sm:$0xff]
                %322 = vst [vmem:[%s228 + $0x170] sm:$0xff] %v321
                %v323 = vld [vmem:[%s227 + $0x178] sm:$0xff]
                %324 = vst [vmem:[%s228 + $0x178] sm:$0xff] %v323
                %v325 = vld [vmem:[%s227 + $0x180] sm:$0xff]
                %326 = vst [vmem:[%s228 + $0x180] sm:$0xff] %v325
                %v327 = vld [vmem:[%s227 + $0x188] sm:$0xff]
                %328 = vst [vmem:[%s228 + $0x188] sm:$0xff] %v327
                %v329 = vld [vmem:[%s227 + $0x190] sm:$0xff]
                %330 = vst [vmem:[%s228 + $0x190] sm:$0xff] %v329
                %v331 = vld [vmem:[%s227 + $0x198] sm:$0xff]
                %332 = vst [vmem:[%s228 + $0x198] sm:$0xff] %v331
                %v333 = vld [vmem:[%s227 + $0x1a0] sm:$0xff]
                %334 = vst [vmem:[%s228 + $0x1a0] sm:$0xff] %v333
                %v335 = vld [vmem:[%s227 + $0x1a8] sm:$0xff]
                %336 = vst [vmem:[%s228 + $0x1a8] sm:$0xff] %v335
                %v337 = vld [vmem:[%s227 + $0x1b0] sm:$0xff]
                %338 = vst [vmem:[%s228 + $0x1b0] sm:$0xff] %v337
                %v339 = vld [vmem:[%s227 + $0x1b8] sm:$0xff]
                %340 = vst [vmem:[%s228 + $0x1b8] sm:$0xff] %v339
                %v341 = vld [vmem:[%s227 + $0x1c0] sm:$0xff]
                %342 = vst [vmem:[%s228 + $0x1c0] sm:$0xff] %v341
                %v343 = vld [vmem:[%s227 + $0x1c8] sm:$0xff]
                %344 = vst [vmem:[%s228 + $0x1c8] sm:$0xff] %v343
                %v345 = vld [vmem:[%s227 + $0x1d0] sm:$0xff]
                %346 = vst [vmem:[%s228 + $0x1d0] sm:$0xff] %v345
                %v347 = vld [vmem:[%s227 + $0x1d8] sm:$0xff]
                %348 = vst [vmem:[%s228 + $0x1d8] sm:$0xff] %v347
                %v349 = vld [vmem:[%s227 + $0x1e0] sm:$0xff]
                %350 = vst [vmem:[%s228 + $0x1e0] sm:$0xff] %v349
                %v351 = vld [vmem:[%s227 + $0x1e8] sm:$0xff]
                %352 = vst [vmem:[%s228 + $0x1e8] sm:$0xff] %v351
                %v353 = vld [vmem:[%s227 + $0x1f0] sm:$0xff]
                %354 = vst [vmem:[%s228 + $0x1f0] sm:$0xff] %v353
                %v355 = vld [vmem:[%s227 + $0x1f8] sm:$0xff]
                %356 = vst [vmem:[%s228 + $0x1f8] sm:$0xff] %v355
                %v357 = vld [vmem:[%s227 + $0x400] sm:$0xff]
                %358 = vst [vmem:[%s228 + $0x200] sm:$0xff] %v357
                %v359 = vld [vmem:[%s227 + $0x408] sm:$0xff]
                %360 = vst [vmem:[%s228 + $0x208] sm:$0xff] %v359
                %v361 = vld [vmem:[%s227 + $0x410] sm:$0xff]
                %362 = vst [vmem:[%s228 + $0x210] sm:$0xff] %v361
                %v363 = vld [vmem:[%s227 + $0x418] sm:$0xff]
                %364 = vst [vmem:[%s228 + $0x218] sm:$0xff] %v363
                %v365 = vld [vmem:[%s227 + $0x420] sm:$0xff]
                %366 = vst [vmem:[%s228 + $0x220] sm:$0xff] %v365
                %v367 = vld [vmem:[%s227 + $0x428] sm:$0xff]
                %368 = vst [vmem:[%s228 + $0x228] sm:$0xff] %v367
                %v369 = vld [vmem:[%s227 + $0x430] sm:$0xff]
                %370 = vst [vmem:[%s228 + $0x230] sm:$0xff] %v369
                %v371 = vld [vmem:[%s227 + $0x438] sm:$0xff]
                %372 = vst [vmem:[%s228 + $0x238] sm:$0xff] %v371
                %v373 = vld [vmem:[%s227 + $0x440] sm:$0xff]
                %374 = vst [vmem:[%s228 + $0x240] sm:$0xff] %v373
                %v375 = vld [vmem:[%s227 + $0x448] sm:$0xff]
                %376 = vst [vmem:[%s228 + $0x248] sm:$0xff] %v375
                %v377 = vld [vmem:[%s227 + $0x450] sm:$0xff]
                %378 = vst [vmem:[%s228 + $0x250] sm:$0xff] %v377
                %v379 = vld [vmem:[%s227 + $0x458] sm:$0xff]
                %380 = vst [vmem:[%s228 + $0x258] sm:$0xff] %v379
                %v381 = vld [vmem:[%s227 + $0x460] sm:$0xff]
                %382 = vst [vmem:[%s228 + $0x260] sm:$0xff] %v381
                %v383 = vld [vmem:[%s227 + $0x468] sm:$0xff]
                %384 = vst [vmem:[%s228 + $0x268] sm:$0xff] %v383
                %v385 = vld [vmem:[%s227 + $0x470] sm:$0xff]
                %386 = vst [vmem:[%s228 + $0x270] sm:$0xff] %v385
                %v387 = vld [vmem:[%s227 + $0x478] sm:$0xff]
                %388 = vst [vmem:[%s228 + $0x278] sm:$0xff] %v387
                %v389 = vld [vmem:[%s227 + $0x480] sm:$0xff]
                %390 = vst [vmem:[%s228 + $0x280] sm:$0xff] %v389
                %v391 = vld [vmem:[%s227 + $0x488] sm:$0xff]
                %392 = vst [vmem:[%s228 + $0x288] sm:$0xff] %v391
                %v393 = vld [vmem:[%s227 + $0x490] sm:$0xff]
                %394 = vst [vmem:[%s228 + $0x290] sm:$0xff] %v393
                %v395 = vld [vmem:[%s227 + $0x498] sm:$0xff]
                %396 = vst [vmem:[%s228 + $0x298] sm:$0xff] %v395
                %v397 = vld [vmem:[%s227 + $0x4a0] sm:$0xff]
                %398 = vst [vmem:[%s228 + $0x2a0] sm:$0xff] %v397
                %v399 = vld [vmem:[%s227 + $0x4a8] sm:$0xff]
                %400 = vst [vmem:[%s228 + $0x2a8] sm:$0xff] %v399
                %v401 = vld [vmem:[%s227 + $0x4b0] sm:$0xff]
                %402 = vst [vmem:[%s228 + $0x2b0] sm:$0xff] %v401
                %v403 = vld [vmem:[%s227 + $0x4b8] sm:$0xff]
                %404 = vst [vmem:[%s228 + $0x2b8] sm:$0xff] %v403
                %v405 = vld [vmem:[%s227 + $0x4c0] sm:$0xff]
                %406 = vst [vmem:[%s228 + $0x2c0] sm:$0xff] %v405
                %v407 = vld [vmem:[%s227 + $0x4c8] sm:$0xff]
                %408 = vst [vmem:[%s228 + $0x2c8] sm:$0xff] %v407
                %v409 = vld [vmem:[%s227 + $0x4d0] sm:$0xff]
                %410 = vst [vmem:[%s228 + $0x2d0] sm:$0xff] %v409
                %v411 = vld [vmem:[%s227 + $0x4d8] sm:$0xff]
                %412 = vst [vmem:[%s228 + $0x2d8] sm:$0xff] %v411
                %v413 = vld [vmem:[%s227 + $0x4e0] sm:$0xff]
                %414 = vst [vmem:[%s228 + $0x2e0] sm:$0xff] %v413
                %v415 = vld [vmem:[%s227 + $0x4e8] sm:$0xff]
                %416 = vst [vmem:[%s228 + $0x2e8] sm:$0xff] %v415
                %v417 = vld [vmem:[%s227 + $0x4f0] sm:$0xff]
                %418 = vst [vmem:[%s228 + $0x2f0] sm:$0xff] %v417
                %v419 = vld [vmem:[%s227 + $0x4f8] sm:$0xff]
                %420 = vst [vmem:[%s228 + $0x2f8] sm:$0xff] %v419
                %v421 = vld [vmem:[%s227 + $0x500] sm:$0xff]
                %422 = vst [vmem:[%s228 + $0x300] sm:$0xff] %v421
                %v423 = vld [vmem:[%s227 + $0x508] sm:$0xff]
                %424 = vst [vmem:[%s228 + $0x308] sm:$0xff] %v423
                %v425 = vld [vmem:[%s227 + $0x510] sm:$0xff]
                %426 = vst [vmem:[%s228 + $0x310] sm:$0xff] %v425
                %v427 = vld [vmem:[%s227 + $0x518] sm:$0xff]
                %428 = vst [vmem:[%s228 + $0x318] sm:$0xff] %v427
                %v429 = vld [vmem:[%s227 + $0x520] sm:$0xff]
                %430 = vst [vmem:[%s228 + $0x320] sm:$0xff] %v429
                %v431 = vld [vmem:[%s227 + $0x528] sm:$0xff]
                %432 = vst [vmem:[%s228 + $0x328] sm:$0xff] %v431
                %v433 = vld [vmem:[%s227 + $0x530] sm:$0xff]
                %434 = vst [vmem:[%s228 + $0x330] sm:$0xff] %v433
                %v435 = vld [vmem:[%s227 + $0x538] sm:$0xff]
                %436 = vst [vmem:[%s228 + $0x338] sm:$0xff] %v435
                %v437 = vld [vmem:[%s227 + $0x540] sm:$0xff]
                %438 = vst [vmem:[%s228 + $0x340] sm:$0xff] %v437
                %v439 = vld [vmem:[%s227 + $0x548] sm:$0xff]
                %440 = vst [vmem:[%s228 + $0x348] sm:$0xff] %v439
                %v441 = vld [vmem:[%s227 + $0x550] sm:$0xff]
                %442 = vst [vmem:[%s228 + $0x350] sm:$0xff] %v441
                %v443 = vld [vmem:[%s227 + $0x558] sm:$0xff]
                %444 = vst [vmem:[%s228 + $0x358] sm:$0xff] %v443
                %v445 = vld [vmem:[%s227 + $0x560] sm:$0xff]
                %446 = vst [vmem:[%s228 + $0x360] sm:$0xff] %v445
                %v447 = vld [vmem:[%s227 + $0x568] sm:$0xff]
                %448 = vst [vmem:[%s228 + $0x368] sm:$0xff] %v447
                %v449 = vld [vmem:[%s227 + $0x570] sm:$0xff]
                %450 = vst [vmem:[%s228 + $0x370] sm:$0xff] %v449
                %v451 = vld [vmem:[%s227 + $0x578] sm:$0xff]
                %452 = vst [vmem:[%s228 + $0x378] sm:$0xff] %v451
                %v453 = vld [vmem:[%s227 + $0x580] sm:$0xff]
                %454 = vst [vmem:[%s228 + $0x380] sm:$0xff] %v453
                %v455 = vld [vmem:[%s227 + $0x588] sm:$0xff]
                %456 = vst [vmem:[%s228 + $0x388] sm:$0xff] %v455
                %v457 = vld [vmem:[%s227 + $0x590] sm:$0xff]
                %458 = vst [vmem:[%s228 + $0x390] sm:$0xff] %v457
                %v459 = vld [vmem:[%s227 + $0x598] sm:$0xff]
                %460 = vst [vmem:[%s228 + $0x398] sm:$0xff] %v459
                %v461 = vld [vmem:[%s227 + $0x5a0] sm:$0xff]
                %462 = vst [vmem:[%s228 + $0x3a0] sm:$0xff] %v461
                %v463 = vld [vmem:[%s227 + $0x5a8] sm:$0xff]
                %464 = vst [vmem:[%s228 + $0x3a8] sm:$0xff] %v463
                %v465 = vld [vmem:[%s227 + $0x5b0] sm:$0xff]
                %466 = vst [vmem:[%s228 + $0x3b0] sm:$0xff] %v465
                %v467 = vld [vmem:[%s227 + $0x5b8] sm:$0xff]
                %468 = vst [vmem:[%s228 + $0x3b8] sm:$0xff] %v467
                %v469 = vld [vmem:[%s227 + $0x5c0] sm:$0xff]
                %470 = vst [vmem:[%s228 + $0x3c0] sm:$0xff] %v469
                %v471 = vld [vmem:[%s227 + $0x5c8] sm:$0xff]
                %472 = vst [vmem:[%s228 + $0x3c8] sm:$0xff] %v471
                %v473 = vld [vmem:[%s227 + $0x5d0] sm:$0xff]
                %474 = vst [vmem:[%s228 + $0x3d0] sm:$0xff] %v473
                %v475 = vld [vmem:[%s227 + $0x5d8] sm:$0xff]
                %476 = vst [vmem:[%s228 + $0x3d8] sm:$0xff] %v475
                %v477 = vld [vmem:[%s227 + $0x5e0] sm:$0xff]
                %478 = vst [vmem:[%s228 + $0x3e0] sm:$0xff] %v477
                %v479 = vld [vmem:[%s227 + $0x5e8] sm:$0xff]
                %480 = vst [vmem:[%s228 + $0x3e8] sm:$0xff] %v479
                %v481 = vld [vmem:[%s227 + $0x5f0] sm:$0xff]
                %482 = vst [vmem:[%s228 + $0x3f0] sm:$0xff] %v481
                %v483 = vld [vmem:[%s227 + $0x5f8] sm:$0xff]
                %484 = vst [vmem:[%s228 + $0x3f8] sm:$0xff] %v483
              $region53: #{tpu_custom_call.1} parent=47 // loop_footer
                %s226 = sadd.s32 1, %s222
              $region54: #{tpu_custom_call.1} parent=47 // loop_footer_branch
                %221 = sbr.rel target = $region50
              $region55: #{tpu_custom_call.1} parent=47 // loop_exit
                _
            $region48: #{tpu_custom_call.1} parent=43 // pred_fallthru
              _
            // Predicated region
            $region56: #{tpu_custom_call.1} parent=43 // pred_check
              _
            $region57: #{tpu_custom_call.1} parent=43 // pred_check_branch
              %486 = sbr.rel target = $region59
            $region58: #{tpu_custom_call.1} parent=43 // pred_region
              _
            $region59: #{tpu_custom_call.1} parent=43 // pred_fallthru
              _
          $region44: #{tpu_custom_call.1} parent=39 // pred_fallthru
            _
          %487 = vnop
        $region40: #{tpu_custom_call.1} parent=35 // pred_fallthru
          _
      $region36: #{tpu_custom_call.1} parent=5 // pred_fallthru
        _
      %p488 = scmp.le.s32.totalorder 1, %s15
      %p489 = scmp.lt.s32.totalorder %s15, 3
      %p490 = pnand %p488, %p489
      %p491 = pneg %p490
      // Predicated region
      $region60: #{tpu_custom_call.1} parent=5 // pred_check
        _
      $region61: #{tpu_custom_call.1} parent=5 // pred_check_branch
        %493 = sbr.rel (%p490) target = $region63
      $region62: #{tpu_custom_call.1} parent=5 // pred_region
        %s494 = ssub.s32 %s15, 1
        %s495 = sand.u32 %s28, 1
        %s496 = sand.u32 %s28, 1
        %s497 = smul.addr %s496, 1024
        %s498 = scalar_lea.vmem [#allocation2], %s497
        // Predicated region
        $region64: #{tpu_custom_call.1} parent=62 // pred_check
          %p499 = pneg %p41
        $region65: #{tpu_custom_call.1} parent=62 // pred_check_branch
          %501 = sbr.rel (%p499) target = $region67
        $region66: #{tpu_custom_call.1} parent=62 // pred_region
          _
        $region67: #{tpu_custom_call.1} parent=62 // pred_fallthru
          _
        %s502 = sand.u32 %s28, 1
        %s503 = sand.u32 %s28, 1
        %s504 = smul.addr %s503, 1024
        %s505 = scalar_lea.vmem [#allocation2], %s504
        %p506 = pneg %p41
        %p507 = pneg %p38
        %p508 = pneg %p62
        %p509 = pneg %p59
        %p510 = pneg %p83
        %p511 = pneg %p80
        %p512 = pneg %p104
        %p513 = pneg %p101
        %p514 = pneg %p125
        %p515 = pneg %p122
        %p516 = pneg %p146
        %p517 = pneg %p143
        %p518 = pneg %p172
        %p519 = pneg %p169
        %s520 = sand.u32 %s159, 1
        %s521 = scalar_lea.sflag [#allocation4], %s520
        %s522 = sand.u32 %s159, 1
        %s523 = smul.addr %s522, 256
        %s524 = scalar_lea.vmem [#allocation3], %s523
        %s525 = smul.u32 32, %s20
        %s526 = smul.u32 32, %s20
        %v527 = vld [vmem:[%s5] ss:$4 sm:$0x3]
        %v528 = vld [vmem:[%s5 + $0x1] sm:$0x1]
        %v529 = vld [vmem:[%s5 + $0x2] sm:$0x1]
        %v530 = vld [vmem:[%s5 + $0x3] sm:$0x1]
        %v531 = vld [vmem:[%s498] sm:$0xff]
        %v532 = vld [vmem:[%s498 + $0x8] sm:$0xff]
        %v533 = vld [vmem:[%s498 + $0x10] sm:$0xff]
        %v534 = vld [vmem:[%s498 + $0x18] sm:$0xff]
        %v535 = vld [vmem:[%s498 + $0x20] sm:$0xff]
        %v536 = vld [vmem:[%s498 + $0x28] sm:$0xff]
        %v537 = vld [vmem:[%s498 + $0x30] sm:$0xff]
        %v538 = vld [vmem:[%s498 + $0x38] sm:$0xff]
        %v539 = vld [vmem:[%s498 + $0x40] sm:$0xff]
        %v540 = vld [vmem:[%s498 + $0x48] sm:$0xff]
        %v541 = vld [vmem:[%s498 + $0x50] sm:$0xff]
        %v542 = vld [vmem:[%s498 + $0x58] sm:$0xff]
        %v543 = vld [vmem:[%s498 + $0x60] sm:$0xff]
        %v544 = vld [vmem:[%s498 + $0x68] sm:$0xff]
        %v545 = vld [vmem:[%s498 + $0x70] sm:$0xff]
        %v546 = vld [vmem:[%s498 + $0x78] sm:$0xff]
        %v547 = vld [vmem:[%s498 + $0x80] sm:$0xff]
        %v548 = vld [vmem:[%s498 + $0x88] sm:$0xff]
        %v549 = vld [vmem:[%s498 + $0x90] sm:$0xff]
        %v550 = vld [vmem:[%s498 + $0x98] sm:$0xff]
        %v551 = vld [vmem:[%s498 + $0xa0] sm:$0xff]
        %v552 = vld [vmem:[%s498 + $0xa8] sm:$0xff]
        %v553 = vld [vmem:[%s498 + $0xb0] sm:$0xff]
        %v554 = vld [vmem:[%s498 + $0xb8] sm:$0xff]
        %v555 = vld [vmem:[%s498 + $0xc0] sm:$0xff]
        %v556 = vld [vmem:[%s498 + $0xc8] sm:$0xff]
        %v557 = vld [vmem:[%s498 + $0xd0] sm:$0xff]
        %v558 = vld [vmem:[%s498 + $0xd8] sm:$0xff]
        %v559 = vld [vmem:[%s498 + $0xe0] sm:$0xff]
        %v560 = vld [vmem:[%s498 + $0xe8] sm:$0xff]
        %v561 = vld [vmem:[%s498 + $0xf0] sm:$0xff]
        %v562 = vld [vmem:[%s498 + $0xf8] sm:$0xff]
        %v563 = vld [vmem:[%s498 + $0x100] sm:$0xff]
        %v564 = vld [vmem:[%s498 + $0x108] sm:$0xff]
        %v565 = vld [vmem:[%s498 + $0x110] sm:$0xff]
        %v566 = vld [vmem:[%s498 + $0x118] sm:$0xff]
        %v567 = vld [vmem:[%s498 + $0x120] sm:$0xff]
        %v568 = vld [vmem:[%s498 + $0x128] sm:$0xff]
        %v569 = vld [vmem:[%s498 + $0x130] sm:$0xff]
        %v570 = vld [vmem:[%s498 + $0x138] sm:$0xff]
        %v571 = vld [vmem:[%s498 + $0x140] sm:$0xff]
        %v572 = vld [vmem:[%s498 + $0x148] sm:$0xff]
        %v573 = vld [vmem:[%s498 + $0x150] sm:$0xff]
        %v574 = vld [vmem:[%s498 + $0x158] sm:$0xff]
        %v575 = vld [vmem:[%s498 + $0x160] sm:$0xff]
        %v576 = vld [vmem:[%s498 + $0x168] sm:$0xff]
        %v577 = vld [vmem:[%s498 + $0x170] sm:$0xff]
        %v578 = vld [vmem:[%s498 + $0x178] sm:$0xff]
        %v579 = vld [vmem:[%s498 + $0x180] sm:$0xff]
        %v580 = vld [vmem:[%s498 + $0x188] sm:$0xff]
        %v581 = vld [vmem:[%s498 + $0x190] sm:$0xff]
        %v582 = vld [vmem:[%s498 + $0x198] sm:$0xff]
        %v583 = vld [vmem:[%s498 + $0x1a0] sm:$0xff]
        %v584 = vld [vmem:[%s498 + $0x1a8] sm:$0xff]
        %v585 = vld [vmem:[%s498 + $0x1b0] sm:$0xff]
        %v586 = vld [vmem:[%s498 + $0x1b8] sm:$0xff]
        %v587 = vld [vmem:[%s498 + $0x1c0] sm:$0xff]
        %v588 = vld [vmem:[%s498 + $0x1c8] sm:$0xff]
        %v589 = vld [vmem:[%s498 + $0x1d0] sm:$0xff]
        %v590 = vld [vmem:[%s498 + $0x1d8] sm:$0xff]
        %v591 = vld [vmem:[%s498 + $0x1e0] sm:$0xff]
        %v592 = vld [vmem:[%s498 + $0x1e8] sm:$0xff]
        %v593 = vld [vmem:[%s498 + $0x1f0] sm:$0xff]
        %v594 = vld [vmem:[%s498 + $0x1f8] sm:$0xff]
        %v595 = vld [vmem:[%s498 + $0x200] sm:$0xff]
        %v596 = vld [vmem:[%s498 + $0x208] sm:$0xff]
        %v597 = vld [vmem:[%s498 + $0x210] sm:$0xff]
        %v598 = vld [vmem:[%s498 + $0x218] sm:$0xff]
        %v599 = vld [vmem:[%s498 + $0x220] sm:$0xff]
        %v600 = vld [vmem:[%s498 + $0x228] sm:$0xff]
        %v601 = vld [vmem:[%s498 + $0x230] sm:$0xff]
        %v602 = vld [vmem:[%s498 + $0x238] sm:$0xff]
        %v603 = vld [vmem:[%s498 + $0x240] sm:$0xff]
        %v604 = vld [vmem:[%s498 + $0x248] sm:$0xff]
        %v605 = vld [vmem:[%s498 + $0x250] sm:$0xff]
        %v606 = vld [vmem:[%s498 + $0x258] sm:$0xff]
        %v607 = vld [vmem:[%s498 + $0x260] sm:$0xff]
        %v608 = vld [vmem:[%s498 + $0x268] sm:$0xff]
        %v609 = vld [vmem:[%s498 + $0x270] sm:$0xff]
        %v610 = vld [vmem:[%s498 + $0x278] sm:$0xff]
        %v611 = vld [vmem:[%s498 + $0x280] sm:$0xff]
        %v612 = vld [vmem:[%s498 + $0x288] sm:$0xff]
        %v613 = vld [vmem:[%s498 + $0x290] sm:$0xff]
        %v614 = vld [vmem:[%s498 + $0x298] sm:$0xff]
        %v615 = vld [vmem:[%s498 + $0x2a0] sm:$0xff]
        %v616 = vld [vmem:[%s498 + $0x2a8] sm:$0xff]
        %v617 = vld [vmem:[%s498 + $0x2b0] sm:$0xff]
        %v618 = vld [vmem:[%s498 + $0x2b8] sm:$0xff]
        %v619 = vld [vmem:[%s498 + $0x2c0] sm:$0xff]
        %v620 = vld [vmem:[%s498 + $0x2c8] sm:$0xff]
        %v621 = vld [vmem:[%s498 + $0x2d0] sm:$0xff]
        %v622 = vld [vmem:[%s498 + $0x2d8] sm:$0xff]
        %v623 = vld [vmem:[%s498 + $0x2e0] sm:$0xff]
        %v624 = vld [vmem:[%s498 + $0x2e8] sm:$0xff]
        %v625 = vld [vmem:[%s498 + $0x2f0] sm:$0xff]
        %v626 = vld [vmem:[%s498 + $0x2f8] sm:$0xff]
        %v627 = vld [vmem:[%s498 + $0x300] sm:$0xff]
        %v628 = vld [vmem:[%s498 + $0x308] sm:$0xff]
        %v629 = vld [vmem:[%s498 + $0x310] sm:$0xff]
        %v630 = vld [vmem:[%s498 + $0x318] sm:$0xff]
        %v631 = vld [vmem:[%s498 + $0x320] sm:$0xff]
        %v632 = vld [vmem:[%s498 + $0x328] sm:$0xff]
        %v633 = vld [vmem:[%s498 + $0x330] sm:$0xff]
        %v634 = vld [vmem:[%s498 + $0x338] sm:$0xff]
        %v635 = vld [vmem:[%s498 + $0x340] sm:$0xff]
        %v636 = vld [vmem:[%s498 + $0x348] sm:$0xff]
        %v637 = vld [vmem:[%s498 + $0x350] sm:$0xff]
        %v638 = vld [vmem:[%s498 + $0x358] sm:$0xff]
        %v639 = vld [vmem:[%s498 + $0x360] sm:$0xff]
        %v640 = vld [vmem:[%s498 + $0x368] sm:$0xff]
        %v641 = vld [vmem:[%s498 + $0x370] sm:$0xff]
        %v642 = vld [vmem:[%s498 + $0x378] sm:$0xff]
        %v643 = vld [vmem:[%s498 + $0x380] sm:$0xff]
        %v644 = vld [vmem:[%s498 + $0x388] sm:$0xff]
        %v645 = vld [vmem:[%s498 + $0x390] sm:$0xff]
        %v646 = vld [vmem:[%s498 + $0x398] sm:$0xff]
        %v647 = vld [vmem:[%s498 + $0x3a0] sm:$0xff]
        %v648 = vld [vmem:[%s498 + $0x3a8] sm:$0xff]
        %v649 = vld [vmem:[%s498 + $0x3b0] sm:$0xff]
        %v650 = vld [vmem:[%s498 + $0x3b8] sm:$0xff]
        %v651 = vld [vmem:[%s498 + $0x3c0] sm:$0xff]
        %v652 = vld [vmem:[%s498 + $0x3c8] sm:$0xff]
        %v653 = vld [vmem:[%s498 + $0x3d0] sm:$0xff]
        %v654 = vld [vmem:[%s498 + $0x3d8] sm:$0xff]
        %v655 = vld [vmem:[%s498 + $0x3e0] sm:$0xff]
        %v656 = vld [vmem:[%s498 + $0x3e8] sm:$0xff]
        %v657 = vld [vmem:[%s498 + $0x3f0] sm:$0xff]
        %v658 = vld [vmem:[%s498 + $0x3f8] sm:$0xff]
        %v659 = vld [vmem:[%s1] sm:$0xff]
        %v660 = vld [vmem:[%s1 + $0x8] sm:$0xff]
        %v661 = vld [vmem:[%s1 + $0x10] sm:$0xff]
        %v662 = vld [vmem:[%s1 + $0x18] sm:$0xff]
        %v663 = vld [vmem:[%s1 + $0x20] sm:$0xff]
        %v664 = vld [vmem:[%s1 + $0x28] sm:$0xff]
        %v665 = vld [vmem:[%s1 + $0x30] sm:$0xff]
        %v666 = vld [vmem:[%s1 + $0x38] sm:$0xff]
        %v667 = vld [vmem:[%s1 + $0x40] sm:$0xff]
        %v668 = vld [vmem:[%s1 + $0x48] sm:$0xff]
        %v669 = vld [vmem:[%s1 + $0x50] sm:$0xff]
        %v670 = vld [vmem:[%s1 + $0x58] sm:$0xff]
        %v671 = vld [vmem:[%s1 + $0x60] sm:$0xff]
        %v672 = vld [vmem:[%s1 + $0x68] sm:$0xff]
        %v673 = vld [vmem:[%s1 + $0x70] sm:$0xff]
        %v674 = vld [vmem:[%s1 + $0x78] sm:$0xff]
        %v675 = vld [vmem:[%s1 + $0x80] sm:$0xff]
        %v676 = vld [vmem:[%s1 + $0x88] sm:$0xff]
        %v677 = vld [vmem:[%s1 + $0x90] sm:$0xff]
        %v678 = vld [vmem:[%s1 + $0x98] sm:$0xff]
        %v679 = vld [vmem:[%s1 + $0xa0] sm:$0xff]
        %v680 = vld [vmem:[%s1 + $0xa8] sm:$0xff]
        %v681 = vld [vmem:[%s1 + $0xb0] sm:$0xff]
        %v682 = vld [vmem:[%s1 + $0xb8] sm:$0xff]
        %v683 = vld [vmem:[%s1 + $0xc0] sm:$0xff]
        %v684 = vld [vmem:[%s1 + $0xc8] sm:$0xff]
        %v685 = vld [vmem:[%s1 + $0xd0] sm:$0xff]
        %v686 = vld [vmem:[%s1 + $0xd8] sm:$0xff]
        %v687 = vld [vmem:[%s1 + $0xe0] sm:$0xff]
        %v688 = vld [vmem:[%s1 + $0xe8] sm:$0xff]
        %v689 = vld [vmem:[%s1 + $0xf0] sm:$0xff]
        %v690 = vld [vmem:[%s1 + $0xf8] sm:$0xff]
        %v691 = vld [vmem:[%s1 + $0x100] sm:$0xff]
        %v692 = vld [vmem:[%s1 + $0x108] sm:$0xff]
        %v693 = vld [vmem:[%s1 + $0x110] sm:$0xff]
        %v694 = vld [vmem:[%s1 + $0x118] sm:$0xff]
        %v695 = vld [vmem:[%s1 + $0x120] sm:$0xff]
        %v696 = vld [vmem:[%s1 + $0x128] sm:$0xff]
        %v697 = vld [vmem:[%s1 + $0x130] sm:$0xff]
        %v698 = vld [vmem:[%s1 + $0x138] sm:$0xff]
        %v699 = vld [vmem:[%s1 + $0x140] sm:$0xff]
        %v700 = vld [vmem:[%s1 + $0x148] sm:$0xff]
        %v701 = vld [vmem:[%s1 + $0x150] sm:$0xff]
        %v702 = vld [vmem:[%s1 + $0x158] sm:$0xff]
        %v703 = vld [vmem:[%s1 + $0x160] sm:$0xff]
        %v704 = vld [vmem:[%s1 + $0x168] sm:$0xff]
        %v705 = vld [vmem:[%s1 + $0x170] sm:$0xff]
        %v706 = vld [vmem:[%s1 + $0x178] sm:$0xff]
        %v707 = vld [vmem:[%s1 + $0x180] sm:$0xff]
        %v708 = vld [vmem:[%s1 + $0x188] sm:$0xff]
        %v710 = vperm.slane %v527, 0
        %v711 = vperm.slane %v527, 1
        %vm714 = vcmask 588800
        %v716 = vsel %vm714, %v532, 0
        %v719 = vsel %vm714, %v534, 0
        %v722 = vsel %vm714, %v536, 0
        %v725 = vsel %vm714, %v538, 0
        %v728 = vsel %vm714, %v540, 0
        %v731 = vsel %vm714, %v542, 0
        %v734 = vsel %vm714, %v544, 0
        %v737 = vsel %vm714, %v546, 0
        %v740 = vsel %vm714, %v548, 0
        %v743 = vsel %vm714, %v550, 0
        %v746 = vsel %vm714, %v552, 0
        %v749 = vsel %vm714, %v554, 0
        %v752 = vsel %vm714, %v556, 0
        %v755 = vsel %vm714, %v558, 0
        %v758 = vsel %vm714, %v560, 0
        %v761 = vsel %vm714, %v562, 0
        %v764 = vsel %vm714, %v564, 0
        %v767 = vsel %vm714, %v566, 0
        %v770 = vsel %vm714, %v568, 0
        %v773 = vsel %vm714, %v570, 0
        %v776 = vsel %vm714, %v572, 0
        %v779 = vsel %vm714, %v574, 0
        %v782 = vsel %vm714, %v576, 0
        %v785 = vsel %vm714, %v578, 0
        %v788 = vsel %vm714, %v580, 0
        %v791 = vsel %vm714, %v582, 0
        %v794 = vsel %vm714, %v584, 0
        %v797 = vsel %vm714, %v586, 0
        %v800 = vsel %vm714, %v588, 0
        %v803 = vsel %vm714, %v590, 0
        %v806 = vsel %vm714, %v592, 0
        %v809 = vsel %vm714, %v594, 0
        %v812 = vsel %vm714, %v596, 0
        %v815 = vsel %vm714, %v598, 0
        %v818 = vsel %vm714, %v600, 0
        %v821 = vsel %vm714, %v602, 0
        %v824 = vsel %vm714, %v604, 0
        %v827 = vsel %vm714, %v606, 0
        %v830 = vsel %vm714, %v608, 0
        %v833 = vsel %vm714, %v610, 0
        %v836 = vsel %vm714, %v612, 0
        %v839 = vsel %vm714, %v614, 0
        %v842 = vsel %vm714, %v616, 0
        %v845 = vsel %vm714, %v618, 0
        %v848 = vsel %vm714, %v620, 0
        %v851 = vsel %vm714, %v622, 0
        %v854 = vsel %vm714, %v624, 0
        %v857 = vsel %vm714, %v626, 0
        %v860 = vsel %vm714, %v628, 0
        %v863 = vsel %vm714, %v630, 0
        %v866 = vsel %vm714, %v632, 0
        %v869 = vsel %vm714, %v634, 0
        %v872 = vsel %vm714, %v636, 0
        %v875 = vsel %vm714, %v638, 0
        %v878 = vsel %vm714, %v640, 0
        %v881 = vsel %vm714, %v642, 0
        %v884 = vsel %vm714, %v644, 0
        %v887 = vsel %vm714, %v646, 0
        %v890 = vsel %vm714, %v648, 0
        %v893 = vsel %vm714, %v650, 0
        %v896 = vsel %vm714, %v652, 0
        %v899 = vsel %vm714, %v654, 0
        %v902 = vsel %vm714, %v656, 0
        %v905 = vsel %vm714, %v658, 0
        %907 = vmatpush.msra.mxu0 %v689
        %908 = vmatpush.msra.mxu0 %v687
        %909 = vmatpush.msra.mxu0 %v685
        %910 = vmatpush.msra.mxu0 %v683
        %911 = vmatpush.msra.mxu0 %v681
        %912 = vmatpush.msra.mxu0 %v679
        %913 = vmatpush.msra.mxu0 %v677
        %914 = vmatpush.msra.mxu0 %v675
        %915 = vmatpush.msra.mxu0 %v673
        %916 = vmatpush.msra.mxu0 %v671
        %917 = vmatpush.msra.mxu0 %v669
        %918 = vmatpush.msra.mxu0 %v667
        %919 = vmatpush.msra.mxu0 %v665
        %920 = vmatpush.msra.mxu0 %v663
        %921 = vmatpush.msra.mxu0 %v661
        %922 = vmatpush.msra.mxu0 %v659
        %923 = vmatmul.f32.gmra.mxu0 %v531
        %v924 = vpop.f32.mrf.mxu0
        %v925 = vadd.f32 %v710, %v924
        %926 = vmatmul.f32.gmra.mxu0 %v533
        %v927 = vpop.f32.mrf.mxu0
        %v928 = vadd.f32 %v710, %v927
        %929 = vmatmul.f32.gmra.mxu0 %v535
        %v930 = vpop.f32.mrf.mxu0
        %v931 = vadd.f32 %v710, %v930
        %932 = vmatmul.f32.gmra.mxu0 %v537
        %v933 = vpop.f32.mrf.mxu0
        %v934 = vadd.f32 %v710, %v933
        %935 = vmatmul.f32.gmra.mxu0 %v539
        %v936 = vpop.f32.mrf.mxu0
        %v937 = vadd.f32 %v710, %v936
        %938 = vmatmul.f32.gmra.mxu0 %v541
        %v939 = vpop.f32.mrf.mxu0
        %v940 = vadd.f32 %v710, %v939
        %941 = vmatmul.f32.gmra.mxu0 %v543
        %v942 = vpop.f32.mrf.mxu0
        %v943 = vadd.f32 %v710, %v942
        %944 = vmatmul.f32.gmra.mxu0 %v545
        %v945 = vpop.f32.mrf.mxu0
        %v946 = vadd.f32 %v710, %v945
        %947 = vmatmul.f32.gmra.mxu0 %v547
        %v948 = vpop.f32.mrf.mxu0
        %v949 = vadd.f32 %v710, %v948
        %950 = vmatmul.f32.gmra.mxu0 %v549
        %v951 = vpop.f32.mrf.mxu0
        %v952 = vadd.f32 %v710, %v951
        %953 = vmatmul.f32.gmra.mxu0 %v551
        %v954 = vpop.f32.mrf.mxu0
        %v955 = vadd.f32 %v710, %v954
        %956 = vmatmul.f32.gmra.mxu0 %v553
        %v957 = vpop.f32.mrf.mxu0
        %v958 = vadd.f32 %v710, %v957
        %959 = vmatmul.f32.gmra.mxu0 %v555
        %v960 = vpop.f32.mrf.mxu0
        %v961 = vadd.f32 %v710, %v960
        %962 = vmatmul.f32.gmra.mxu0 %v557
        %v963 = vpop.f32.mrf.mxu0
        %v964 = vadd.f32 %v710, %v963
        %965 = vmatmul.f32.gmra.mxu0 %v559
        %v966 = vpop.f32.mrf.mxu0
        %v967 = vadd.f32 %v710, %v966
        %968 = vmatmul.f32.gmra.mxu0 %v561
        %v969 = vpop.f32.mrf.mxu0
        %v970 = vadd.f32 %v710, %v969
        %971 = vmatmul.f32.gmra.mxu0 %v563
        %v972 = vpop.f32.mrf.mxu0
        %v973 = vadd.f32 %v710, %v972
        %974 = vmatmul.f32.gmra.mxu0 %v565
        %v975 = vpop.f32.mrf.mxu0
        %v976 = vadd.f32 %v710, %v975
        %977 = vmatmul.f32.gmra.mxu0 %v567
        %v978 = vpop.f32.mrf.mxu0
        %v979 = vadd.f32 %v710, %v978
        %980 = vmatmul.f32.gmra.mxu0 %v569
        %v981 = vpop.f32.mrf.mxu0
        %v982 = vadd.f32 %v710, %v981
        %983 = vmatmul.f32.gmra.mxu0 %v571
        %v984 = vpop.f32.mrf.mxu0
        %v985 = vadd.f32 %v710, %v984
        %986 = vmatmul.f32.gmra.mxu0 %v573
        %v987 = vpop.f32.mrf.mxu0
        %v988 = vadd.f32 %v710, %v987
        %989 = vmatmul.f32.gmra.mxu0 %v575
        %v990 = vpop.f32.mrf.mxu0
        %v991 = vadd.f32 %v710, %v990
        %992 = vmatmul.f32.gmra.mxu0 %v577
        %v993 = vpop.f32.mrf.mxu0
        %v994 = vadd.f32 %v710, %v993
        %995 = vmatmul.f32.gmra.mxu0 %v579
        %v996 = vpop.f32.mrf.mxu0
        %v997 = vadd.f32 %v710, %v996
        %998 = vmatmul.f32.gmra.mxu0 %v581
        %v999 = vpop.f32.mrf.mxu0
        %v1000 = vadd.f32 %v710, %v999
        %1001 = vmatmul.f32.gmra.mxu0 %v583
        %v1002 = vpop.f32.mrf.mxu0
        %v1003 = vadd.f32 %v710, %v1002
        %1004 = vmatmul.f32.gmra.mxu0 %v585
        %v1005 = vpop.f32.mrf.mxu0
        %v1006 = vadd.f32 %v710, %v1005
        %1007 = vmatmul.f32.gmra.mxu0 %v587
        %v1008 = vpop.f32.mrf.mxu0
        %v1009 = vadd.f32 %v710, %v1008
        %1010 = vmatmul.f32.gmra.mxu0 %v589
        %v1011 = vpop.f32.mrf.mxu0
        %v1012 = vadd.f32 %v710, %v1011
        %1013 = vmatmul.f32.gmra.mxu0 %v591
        %v1014 = vpop.f32.mrf.mxu0
        %v1015 = vadd.f32 %v710, %v1014
        %1016 = vmatmul.f32.gmra.mxu0 %v593
        %v1017 = vpop.f32.mrf.mxu0
        %v1018 = vadd.f32 %v710, %v1017
        %1019 = vmatmul.f32.gmra.mxu0 %v595
        %v1020 = vpop.f32.mrf.mxu0
        %v1021 = vadd.f32 %v710, %v1020
        %1022 = vmatmul.f32.gmra.mxu0 %v597
        %v1023 = vpop.f32.mrf.mxu0
        %v1024 = vadd.f32 %v710, %v1023
        %1025 = vmatmul.f32.gmra.mxu0 %v599
        %v1026 = vpop.f32.mrf.mxu0
        %v1027 = vadd.f32 %v710, %v1026
        %1028 = vmatmul.f32.gmra.mxu0 %v601
        %v1029 = vpop.f32.mrf.mxu0
        %v1030 = vadd.f32 %v710, %v1029
        %1031 = vmatmul.f32.gmra.mxu0 %v603
        %v1032 = vpop.f32.mrf.mxu0
        %v1033 = vadd.f32 %v710, %v1032
        %1034 = vmatmul.f32.gmra.mxu0 %v605
        %v1035 = vpop.f32.mrf.mxu0
        %v1036 = vadd.f32 %v710, %v1035
        %1037 = vmatmul.f32.gmra.mxu0 %v607
        %v1038 = vpop.f32.mrf.mxu0
        %v1039 = vadd.f32 %v710, %v1038
        %1040 = vmatmul.f32.gmra.mxu0 %v609
        %v1041 = vpop.f32.mrf.mxu0
        %v1042 = vadd.f32 %v710, %v1041
        %1043 = vmatmul.f32.gmra.mxu0 %v611
        %v1044 = vpop.f32.mrf.mxu0
        %v1045 = vadd.f32 %v710, %v1044
        %1046 = vmatmul.f32.gmra.mxu0 %v613
        %v1047 = vpop.f32.mrf.mxu0
        %v1048 = vadd.f32 %v710, %v1047
        %1049 = vmatmul.f32.gmra.mxu0 %v615
        %v1050 = vpop.f32.mrf.mxu0
        %v1051 = vadd.f32 %v710, %v1050
        %1052 = vmatmul.f32.gmra.mxu0 %v617
        %v1053 = vpop.f32.mrf.mxu0
        %v1054 = vadd.f32 %v710, %v1053
        %1055 = vmatmul.f32.gmra.mxu0 %v619
        %v1056 = vpop.f32.mrf.mxu0
        %v1057 = vadd.f32 %v710, %v1056
        %1058 = vmatmul.f32.gmra.mxu0 %v621
        %v1059 = vpop.f32.mrf.mxu0
        %v1060 = vadd.f32 %v710, %v1059
        %1061 = vmatmul.f32.gmra.mxu0 %v623
        %v1062 = vpop.f32.mrf.mxu0
        %v1063 = vadd.f32 %v710, %v1062
        %1064 = vmatmul.f32.gmra.mxu0 %v625
        %v1065 = vpop.f32.mrf.mxu0
        %v1066 = vadd.f32 %v710, %v1065
        %1067 = vmatmul.f32.gmra.mxu0 %v627
        %v1068 = vpop.f32.mrf.mxu0
        %v1069 = vadd.f32 %v710, %v1068
        %1070 = vmatmul.f32.gmra.mxu0 %v629
        %v1071 = vpop.f32.mrf.mxu0
        %v1072 = vadd.f32 %v710, %v1071
        %1073 = vmatmul.f32.gmra.mxu0 %v631
        %v1074 = vpop.f32.mrf.mxu0
        %v1075 = vadd.f32 %v710, %v1074
        %1076 = vmatmul.f32.gmra.mxu0 %v633
        %v1077 = vpop.f32.mrf.mxu0
        %v1078 = vadd.f32 %v710, %v1077
        %1079 = vmatmul.f32.gmra.mxu0 %v635
        %v1080 = vpop.f32.mrf.mxu0
        %v1081 = vadd.f32 %v710, %v1080
        %1082 = vmatmul.f32.gmra.mxu0 %v637
        %v1083 = vpop.f32.mrf.mxu0
        %v1084 = vadd.f32 %v710, %v1083
        %1085 = vmatmul.f32.gmra.mxu0 %v639
        %v1086 = vpop.f32.mrf.mxu0
        %v1087 = vadd.f32 %v710, %v1086
        %1088 = vmatmul.f32.gmra.mxu0 %v641
        %v1089 = vpop.f32.mrf.mxu0
        %v1090 = vadd.f32 %v710, %v1089
        %1091 = vmatmul.f32.gmra.mxu0 %v643
        %v1092 = vpop.f32.mrf.mxu0
        %v1093 = vadd.f32 %v710, %v1092
        %1094 = vmatmul.f32.gmra.mxu0 %v645
        %v1095 = vpop.f32.mrf.mxu0
        %v1096 = vadd.f32 %v710, %v1095
        %1097 = vmatmul.f32.gmra.mxu0 %v647
        %v1098 = vpop.f32.mrf.mxu0
        %v1099 = vadd.f32 %v710, %v1098
        %1100 = vmatmul.f32.gmra.mxu0 %v649
        %v1101 = vpop.f32.mrf.mxu0
        %v1102 = vadd.f32 %v710, %v1101
        %1103 = vmatmul.f32.gmra.mxu0 %v651
        %v1104 = vpop.f32.mrf.mxu0
        %v1105 = vadd.f32 %v710, %v1104
        %1106 = vmatmul.f32.gmra.mxu0 %v653
        %v1107 = vpop.f32.mrf.mxu0
        %v1108 = vadd.f32 %v710, %v1107
        %1109 = vmatmul.f32.gmra.mxu0 %v655
        %v1110 = vpop.f32.mrf.mxu0
        %v1111 = vadd.f32 %v710, %v1110
        %1112 = vmatmul.f32.gmra.mxu0 %v657
        %v1113 = vpop.f32.mrf.mxu0
        %v1114 = vadd.f32 %v710, %v1113
        %1115 = vdwg.mxu0
        %1116 = vmatpush.msra.mxu0 0.0
        %1117 = vmatpush.msra.mxu0 0.0
        %1118 = vmatpush.msra.mxu0 0.0
        %1119 = vmatpush.msra.mxu0 0.0
        %1120 = vmatpush.msra.mxu0 0.0
        %1121 = vmatpush.msra.mxu0 0.0
        %1122 = vmatpush.msra.mxu0 0.0
        %1123 = vmatpush.msra.mxu0 %v707
        %1124 = vmatpush.msra.mxu0 %v705
        %1125 = vmatpush.msra.mxu0 %v703
        %1126 = vmatpush.msra.mxu0 %v701
        %1127 = vmatpush.msra.mxu0 %v699
        %1128 = vmatpush.msra.mxu0 %v697
        %1129 = vmatpush.msra.mxu0 %v695
        %1130 = vmatpush.msra.mxu0 %v693
        %1131 = vmatpush.msra.mxu0 %v691
        %1132 = vmatmul.f32.gmra.mxu0 %v716
        %v1133 = vpop.f32.mrf.mxu0
        %v1134 = vadd.f32 %v925, %v1133
        %1135 = vmatmul.f32.gmra.mxu0 %v719
        %v1136 = vpop.f32.mrf.mxu0
        %v1137 = vadd.f32 %v928, %v1136
        %1138 = vmatmul.f32.gmra.mxu0 %v722
        %v1139 = vpop.f32.mrf.mxu0
        %v1140 = vadd.f32 %v931, %v1139
        %1141 = vmatmul.f32.gmra.mxu0 %v725
        %v1142 = vpop.f32.mrf.mxu0
        %v1143 = vadd.f32 %v934, %v1142
        %1144 = vmatmul.f32.gmra.mxu0 %v728
        %v1145 = vpop.f32.mrf.mxu0
        %v1146 = vadd.f32 %v937, %v1145
        %1147 = vmatmul.f32.gmra.mxu0 %v731
        %v1148 = vpop.f32.mrf.mxu0
        %v1149 = vadd.f32 %v940, %v1148
        %1150 = vmatmul.f32.gmra.mxu0 %v734
        %v1151 = vpop.f32.mrf.mxu0
        %v1152 = vadd.f32 %v943, %v1151
        %1153 = vmatmul.f32.gmra.mxu0 %v737
        %v1154 = vpop.f32.mrf.mxu0
        %v1155 = vadd.f32 %v946, %v1154
        %1156 = vmatmul.f32.gmra.mxu0 %v740
        %v1157 = vpop.f32.mrf.mxu0
        %v1158 = vadd.f32 %v949, %v1157
        %1159 = vmatmul.f32.gmra.mxu0 %v743
        %v1160 = vpop.f32.mrf.mxu0
        %v1161 = vadd.f32 %v952, %v1160
        %1162 = vmatmul.f32.gmra.mxu0 %v746
        %v1163 = vpop.f32.mrf.mxu0
        %v1164 = vadd.f32 %v955, %v1163
        %1165 = vmatmul.f32.gmra.mxu0 %v749
        %v1166 = vpop.f32.mrf.mxu0
        %v1167 = vadd.f32 %v958, %v1166
        %1168 = vmatmul.f32.gmra.mxu0 %v752
        %v1169 = vpop.f32.mrf.mxu0
        %v1170 = vadd.f32 %v961, %v1169
        %1171 = vmatmul.f32.gmra.mxu0 %v755
        %v1172 = vpop.f32.mrf.mxu0
        %v1173 = vadd.f32 %v964, %v1172
        %1174 = vmatmul.f32.gmra.mxu0 %v758
        %v1175 = vpop.f32.mrf.mxu0
        %v1176 = vadd.f32 %v967, %v1175
        %1177 = vmatmul.f32.gmra.mxu0 %v761
        %v1178 = vpop.f32.mrf.mxu0
        %v1179 = vadd.f32 %v970, %v1178
        %1180 = vmatmul.f32.gmra.mxu0 %v764
        %v1181 = vpop.f32.mrf.mxu0
        %v1182 = vadd.f32 %v973, %v1181
        %1183 = vmatmul.f32.gmra.mxu0 %v767
        %v1184 = vpop.f32.mrf.mxu0
        %v1185 = vadd.f32 %v976, %v1184
        %1186 = vmatmul.f32.gmra.mxu0 %v770
        %v1187 = vpop.f32.mrf.mxu0
        %v1188 = vadd.f32 %v979, %v1187
        %1189 = vmatmul.f32.gmra.mxu0 %v773
        %v1190 = vpop.f32.mrf.mxu0
        %v1191 = vadd.f32 %v982, %v1190
        %1192 = vmatmul.f32.gmra.mxu0 %v776
        %v1193 = vpop.f32.mrf.mxu0
        %v1194 = vadd.f32 %v985, %v1193
        %1195 = vmatmul.f32.gmra.mxu0 %v779
        %v1196 = vpop.f32.mrf.mxu0
        %v1197 = vadd.f32 %v988, %v1196
        %1198 = vmatmul.f32.gmra.mxu0 %v782
        %v1199 = vpop.f32.mrf.mxu0
        %v1200 = vadd.f32 %v991, %v1199
        %1201 = vmatmul.f32.gmra.mxu0 %v785
        %v1202 = vpop.f32.mrf.mxu0
        %v1203 = vadd.f32 %v994, %v1202
        %1204 = vmatmul.f32.gmra.mxu0 %v788
        %v1205 = vpop.f32.mrf.mxu0
        %v1206 = vadd.f32 %v997, %v1205
        %1207 = vmatmul.f32.gmra.mxu0 %v791
        %v1208 = vpop.f32.mrf.mxu0
        %v1209 = vadd.f32 %v1000, %v1208
        %1210 = vmatmul.f32.gmra.mxu0 %v794
        %v1211 = vpop.f32.mrf.mxu0
        %v1212 = vadd.f32 %v1003, %v1211
        %1213 = vmatmul.f32.gmra.mxu0 %v797
        %v1214 = vpop.f32.mrf.mxu0
        %v1215 = vadd.f32 %v1006, %v1214
        %1216 = vmatmul.f32.gmra.mxu0 %v800
        %v1217 = vpop.f32.mrf.mxu0
        %v1218 = vadd.f32 %v1009, %v1217
        %1219 = vmatmul.f32.gmra.mxu0 %v803
        %v1220 = vpop.f32.mrf.mxu0
        %v1221 = vadd.f32 %v1012, %v1220
        %1222 = vmatmul.f32.gmra.mxu0 %v806
        %v1223 = vpop.f32.mrf.mxu0
        %v1224 = vadd.f32 %v1015, %v1223
        %1225 = vmatmul.f32.gmra.mxu0 %v809
        %v1226 = vpop.f32.mrf.mxu0
        %v1227 = vadd.f32 %v1018, %v1226
        %1228 = vmatmul.f32.gmra.mxu0 %v812
        %v1229 = vpop.f32.mrf.mxu0
        %v1230 = vadd.f32 %v1021, %v1229
        %1231 = vmatmul.f32.gmra.mxu0 %v815
        %v1232 = vpop.f32.mrf.mxu0
        %v1233 = vadd.f32 %v1024, %v1232
        %1234 = vmatmul.f32.gmra.mxu0 %v818
        %v1235 = vpop.f32.mrf.mxu0
        %v1236 = vadd.f32 %v1027, %v1235
        %1237 = vmatmul.f32.gmra.mxu0 %v821
        %v1238 = vpop.f32.mrf.mxu0
        %v1239 = vadd.f32 %v1030, %v1238
        %1240 = vmatmul.f32.gmra.mxu0 %v824
        %v1241 = vpop.f32.mrf.mxu0
        %v1242 = vadd.f32 %v1033, %v1241
        %1243 = vmatmul.f32.gmra.mxu0 %v827
        %v1244 = vpop.f32.mrf.mxu0
        %v1245 = vadd.f32 %v1036, %v1244
        %1246 = vmatmul.f32.gmra.mxu0 %v830
        %v1247 = vpop.f32.mrf.mxu0
        %v1248 = vadd.f32 %v1039, %v1247
        %1249 = vmatmul.f32.gmra.mxu0 %v833
        %v1250 = vpop.f32.mrf.mxu0
        %v1251 = vadd.f32 %v1042, %v1250
        %1252 = vmatmul.f32.gmra.mxu0 %v836
        %v1253 = vpop.f32.mrf.mxu0
        %v1254 = vadd.f32 %v1045, %v1253
        %1255 = vmatmul.f32.gmra.mxu0 %v839
        %v1256 = vpop.f32.mrf.mxu0
        %v1257 = vadd.f32 %v1048, %v1256
        %1258 = vmatmul.f32.gmra.mxu0 %v842
        %v1259 = vpop.f32.mrf.mxu0
        %v1260 = vadd.f32 %v1051, %v1259
        %1261 = vmatmul.f32.gmra.mxu0 %v845
        %v1262 = vpop.f32.mrf.mxu0
        %v1263 = vadd.f32 %v1054, %v1262
        %1264 = vmatmul.f32.gmra.mxu0 %v848
        %v1265 = vpop.f32.mrf.mxu0
        %v1266 = vadd.f32 %v1057, %v1265
        %1267 = vmatmul.f32.gmra.mxu0 %v851
        %v1268 = vpop.f32.mrf.mxu0
        %v1269 = vadd.f32 %v1060, %v1268
        %1270 = vmatmul.f32.gmra.mxu0 %v854
        %v1271 = vpop.f32.mrf.mxu0
        %v1272 = vadd.f32 %v1063, %v1271
        %1273 = vmatmul.f32.gmra.mxu0 %v857
        %v1274 = vpop.f32.mrf.mxu0
        %v1275 = vadd.f32 %v1066, %v1274
        %1276 = vmatmul.f32.gmra.mxu0 %v860
        %v1277 = vpop.f32.mrf.mxu0
        %v1278 = vadd.f32 %v1069, %v1277
        %1279 = vmatmul.f32.gmra.mxu0 %v863
        %v1280 = vpop.f32.mrf.mxu0
        %v1281 = vadd.f32 %v1072, %v1280
        %1282 = vmatmul.f32.gmra.mxu0 %v866
        %v1283 = vpop.f32.mrf.mxu0
        %v1284 = vadd.f32 %v1075, %v1283
        %1285 = vmatmul.f32.gmra.mxu0 %v869
        %v1286 = vpop.f32.mrf.mxu0
        %v1287 = vadd.f32 %v1078, %v1286
        %1288 = vmatmul.f32.gmra.mxu0 %v872
        %v1289 = vpop.f32.mrf.mxu0
        %v1290 = vadd.f32 %v1081, %v1289
        %1291 = vmatmul.f32.gmra.mxu0 %v875
        %v1292 = vpop.f32.mrf.mxu0
        %v1293 = vadd.f32 %v1084, %v1292
        %1294 = vmatmul.f32.gmra.mxu0 %v878
        %v1295 = vpop.f32.mrf.mxu0
        %v1296 = vadd.f32 %v1087, %v1295
        %1297 = vmatmul.f32.gmra.mxu0 %v881
        %v1298 = vpop.f32.mrf.mxu0
        %v1299 = vadd.f32 %v1090, %v1298
        %1300 = vmatmul.f32.gmra.mxu0 %v884
        %v1301 = vpop.f32.mrf.mxu0
        %v1302 = vadd.f32 %v1093, %v1301
        %1303 = vmatmul.f32.gmra.mxu0 %v887
        %v1304 = vpop.f32.mrf.mxu0
        %v1305 = vadd.f32 %v1096, %v1304
        %1306 = vmatmul.f32.gmra.mxu0 %v890
        %v1307 = vpop.f32.mrf.mxu0
        %v1308 = vadd.f32 %v1099, %v1307
        %1309 = vmatmul.f32.gmra.mxu0 %v893
        %v1310 = vpop.f32.mrf.mxu0
        %v1311 = vadd.f32 %v1102, %v1310
        %1312 = vmatmul.f32.gmra.mxu0 %v896
        %v1313 = vpop.f32.mrf.mxu0
        %v1314 = vadd.f32 %v1105, %v1313
        %1315 = vmatmul.f32.gmra.mxu0 %v899
        %v1316 = vpop.f32.mrf.mxu0
        %v1317 = vadd.f32 %v1108, %v1316
        %1318 = vmatmul.f32.gmra.mxu0 %v902
        %v1319 = vpop.f32.mrf.mxu0
        %v1320 = vadd.f32 %v1111, %v1319
        %1321 = vmatmul.f32.gmra.mxu0 %v905
        %v1322 = vpop.f32.mrf.mxu0
        %v1323 = vadd.f32 %v1114, %v1322
        %1324 = vdwg.mxu0
        %1325 = vmatpush.msra.mxu0 %v690
        %1326 = vmatpush.msra.mxu0 %v688
        %1327 = vmatpush.msra.mxu0 %v686
        %1328 = vmatpush.msra.mxu0 %v684
        %1329 = vmatpush.msra.mxu0 %v682
        %1330 = vmatpush.msra.mxu0 %v680
        %1331 = vmatpush.msra.mxu0 %v678
        %1332 = vmatpush.msra.mxu0 %v676
        %1333 = vmatpush.msra.mxu0 %v674
        %1334 = vmatpush.msra.mxu0 %v672
        %1335 = vmatpush.msra.mxu0 %v670
        %1336 = vmatpush.msra.mxu0 %v668
        %1337 = vmatpush.msra.mxu0 %v666
        %1338 = vmatpush.msra.mxu0 %v664
        %1339 = vmatpush.msra.mxu0 %v662
        %1340 = vmatpush.msra.mxu0 %v660
        %1341 = vmatmul.f32.gmra.mxu0 %v531
        %v1342 = vpop.f32.mrf.mxu0
        %v1343 = vadd.f32 %v711, %v1342
        %1344 = vmatmul.f32.gmra.mxu0 %v533
        %v1345 = vpop.f32.mrf.mxu0
        %v1346 = vadd.f32 %v711, %v1345
        %1347 = vmatmul.f32.gmra.mxu0 %v535
        %v1348 = vpop.f32.mrf.mxu0
        %v1349 = vadd.f32 %v711, %v1348
        %1350 = vmatmul.f32.gmra.mxu0 %v537
        %v1351 = vpop.f32.mrf.mxu0
        %v1352 = vadd.f32 %v711, %v1351
        %1353 = vmatmul.f32.gmra.mxu0 %v539
        %v1354 = vpop.f32.mrf.mxu0
        %v1355 = vadd.f32 %v711, %v1354
        %1356 = vmatmul.f32.gmra.mxu0 %v541
        %v1357 = vpop.f32.mrf.mxu0
        %v1358 = vadd.f32 %v711, %v1357
        %1359 = vmatmul.f32.gmra.mxu0 %v543
        %v1360 = vpop.f32.mrf.mxu0
        %v1361 = vadd.f32 %v711, %v1360
        %1362 = vmatmul.f32.gmra.mxu0 %v545
        %v1363 = vpop.f32.mrf.mxu0
        %v1364 = vadd.f32 %v711, %v1363
        %1365 = vmatmul.f32.gmra.mxu0 %v547
        %v1366 = vpop.f32.mrf.mxu0
        %v1367 = vadd.f32 %v711, %v1366
        %1368 = vmatmul.f32.gmra.mxu0 %v549
        %v1369 = vpop.f32.mrf.mxu0
        %v1370 = vadd.f32 %v711, %v1369
        %1371 = vmatmul.f32.gmra.mxu0 %v551
        %v1372 = vpop.f32.mrf.mxu0
        %v1373 = vadd.f32 %v711, %v1372
        %1374 = vmatmul.f32.gmra.mxu0 %v553
        %v1375 = vpop.f32.mrf.mxu0
        %v1376 = vadd.f32 %v711, %v1375
        %1377 = vmatmul.f32.gmra.mxu0 %v555
        %v1378 = vpop.f32.mrf.mxu0
        %v1379 = vadd.f32 %v711, %v1378
        %1380 = vmatmul.f32.gmra.mxu0 %v557
        %v1381 = vpop.f32.mrf.mxu0
        %v1382 = vadd.f32 %v711, %v1381
        %1383 = vmatmul.f32.gmra.mxu0 %v559
        %v1384 = vpop.f32.mrf.mxu0
        %v1385 = vadd.f32 %v711, %v1384
        %1386 = vmatmul.f32.gmra.mxu0 %v561
        %v1387 = vpop.f32.mrf.mxu0
        %v1388 = vadd.f32 %v711, %v1387
        %1389 = vmatmul.f32.gmra.mxu0 %v563
        %v1390 = vpop.f32.mrf.mxu0
        %v1391 = vadd.f32 %v711, %v1390
        %1392 = vmatmul.f32.gmra.mxu0 %v565
        %v1393 = vpop.f32.mrf.mxu0
        %v1394 = vadd.f32 %v711, %v1393
        %1395 = vmatmul.f32.gmra.mxu0 %v567
        %v1396 = vpop.f32.mrf.mxu0
        %v1397 = vadd.f32 %v711, %v1396
        %1398 = vmatmul.f32.gmra.mxu0 %v569
        %v1399 = vpop.f32.mrf.mxu0
        %v1400 = vadd.f32 %v711, %v1399
        %1401 = vmatmul.f32.gmra.mxu0 %v571
        %v1402 = vpop.f32.mrf.mxu0
        %v1403 = vadd.f32 %v711, %v1402
        %1404 = vmatmul.f32.gmra.mxu0 %v573
        %v1405 = vpop.f32.mrf.mxu0
        %v1406 = vadd.f32 %v711, %v1405
        %1407 = vmatmul.f32.gmra.mxu0 %v575
        %v1408 = vpop.f32.mrf.mxu0
        %v1409 = vadd.f32 %v711, %v1408
        %1410 = vmatmul.f32.gmra.mxu0 %v577
        %v1411 = vpop.f32.mrf.mxu0
        %v1412 = vadd.f32 %v711, %v1411
        %1413 = vmatmul.f32.gmra.mxu0 %v579
        %v1414 = vpop.f32.mrf.mxu0
        %v1415 = vadd.f32 %v711, %v1414
        %1416 = vmatmul.f32.gmra.mxu0 %v581
        %v1417 = vpop.f32.mrf.mxu0
        %v1418 = vadd.f32 %v711, %v1417
        %1419 = vmatmul.f32.gmra.mxu0 %v583
        %v1420 = vpop.f32.mrf.mxu0
        %v1421 = vadd.f32 %v711, %v1420
        %1422 = vmatmul.f32.gmra.mxu0 %v585
        %v1423 = vpop.f32.mrf.mxu0
        %v1424 = vadd.f32 %v711, %v1423
        %1425 = vmatmul.f32.gmra.mxu0 %v587
        %v1426 = vpop.f32.mrf.mxu0
        %v1427 = vadd.f32 %v711, %v1426
        %1428 = vmatmul.f32.gmra.mxu0 %v589
        %v1429 = vpop.f32.mrf.mxu0
        %v1430 = vadd.f32 %v711, %v1429
        %1431 = vmatmul.f32.gmra.mxu0 %v591
        %v1432 = vpop.f32.mrf.mxu0
        %v1433 = vadd.f32 %v711, %v1432
        %1434 = vmatmul.f32.gmra.mxu0 %v593
        %v1435 = vpop.f32.mrf.mxu0
        %v1436 = vadd.f32 %v711, %v1435
        %1437 = vmatmul.f32.gmra.mxu0 %v595
        %v1438 = vpop.f32.mrf.mxu0
        %v1439 = vadd.f32 %v711, %v1438
        %1440 = vmatmul.f32.gmra.mxu0 %v597
        %v1441 = vpop.f32.mrf.mxu0
        %v1442 = vadd.f32 %v711, %v1441
        %1443 = vmatmul.f32.gmra.mxu0 %v599
        %v1444 = vpop.f32.mrf.mxu0
        %v1445 = vadd.f32 %v711, %v1444
        %1446 = vmatmul.f32.gmra.mxu0 %v601
        %v1447 = vpop.f32.mrf.mxu0
        %v1448 = vadd.f32 %v711, %v1447
        %1449 = vmatmul.f32.gmra.mxu0 %v603
        %v1450 = vpop.f32.mrf.mxu0
        %v1451 = vadd.f32 %v711, %v1450
        %1452 = vmatmul.f32.gmra.mxu0 %v605
        %v1453 = vpop.f32.mrf.mxu0
        %v1454 = vadd.f32 %v711, %v1453
        %1455 = vmatmul.f32.gmra.mxu0 %v607
        %v1456 = vpop.f32.mrf.mxu0
        %v1457 = vadd.f32 %v711, %v1456
        %1458 = vmatmul.f32.gmra.mxu0 %v609
        %v1459 = vpop.f32.mrf.mxu0
        %v1460 = vadd.f32 %v711, %v1459
        %1461 = vmatmul.f32.gmra.mxu0 %v611
        %v1462 = vpop.f32.mrf.mxu0
        %v1463 = vadd.f32 %v711, %v1462
        %1464 = vmatmul.f32.gmra.mxu0 %v613
        %v1465 = vpop.f32.mrf.mxu0
        %v1466 = vadd.f32 %v711, %v1465
        %1467 = vmatmul.f32.gmra.mxu0 %v615
        %v1468 = vpop.f32.mrf.mxu0
        %v1469 = vadd.f32 %v711, %v1468
        %1470 = vmatmul.f32.gmra.mxu0 %v617
        %v1471 = vpop.f32.mrf.mxu0
        %v1472 = vadd.f32 %v711, %v1471
        %1473 = vmatmul.f32.gmra.mxu0 %v619
        %v1474 = vpop.f32.mrf.mxu0
        %v1475 = vadd.f32 %v711, %v1474
        %1476 = vmatmul.f32.gmra.mxu0 %v621
        %v1477 = vpop.f32.mrf.mxu0
        %v1478 = vadd.f32 %v711, %v1477
        %1479 = vmatmul.f32.gmra.mxu0 %v623
        %v1480 = vpop.f32.mrf.mxu0
        %v1481 = vadd.f32 %v711, %v1480
        %1482 = vmatmul.f32.gmra.mxu0 %v625
        %v1483 = vpop.f32.mrf.mxu0
        %v1484 = vadd.f32 %v711, %v1483
        %1485 = vmatmul.f32.gmra.mxu0 %v627
        %v1486 = vpop.f32.mrf.mxu0
        %v1487 = vadd.f32 %v711, %v1486
        %1488 = vmatmul.f32.gmra.mxu0 %v629
        %v1489 = vpop.f32.mrf.mxu0
        %v1490 = vadd.f32 %v711, %v1489
        %1491 = vmatmul.f32.gmra.mxu0 %v631
        %v1492 = vpop.f32.mrf.mxu0
        %v1493 = vadd.f32 %v711, %v1492
        %1494 = vmatmul.f32.gmra.mxu0 %v633
        %v1495 = vpop.f32.mrf.mxu0
        %v1496 = vadd.f32 %v711, %v1495
        %1497 = vmatmul.f32.gmra.mxu0 %v635
        %v1498 = vpop.f32.mrf.mxu0
        %v1499 = vadd.f32 %v711, %v1498
        %1500 = vmatmul.f32.gmra.mxu0 %v637
        %v1501 = vpop.f32.mrf.mxu0
        %v1502 = vadd.f32 %v711, %v1501
        %1503 = vmatmul.f32.gmra.mxu0 %v639
        %v1504 = vpop.f32.mrf.mxu0
        %v1505 = vadd.f32 %v711, %v1504
        %1506 = vmatmul.f32.gmra.mxu0 %v641
        %v1507 = vpop.f32.mrf.mxu0
        %v1508 = vadd.f32 %v711, %v1507
        %1509 = vmatmul.f32.gmra.mxu0 %v643
        %v1510 = vpop.f32.mrf.mxu0
        %v1511 = vadd.f32 %v711, %v1510
        %1512 = vmatmul.f32.gmra.mxu0 %v645
        %v1513 = vpop.f32.mrf.mxu0
        %v1514 = vadd.f32 %v711, %v1513
        %1515 = vmatmul.f32.gmra.mxu0 %v647
        %v1516 = vpop.f32.mrf.mxu0
        %v1517 = vadd.f32 %v711, %v1516
        %1518 = vmatmul.f32.gmra.mxu0 %v649
        %v1519 = vpop.f32.mrf.mxu0
        %v1520 = vadd.f32 %v711, %v1519
        %1521 = vmatmul.f32.gmra.mxu0 %v651
        %v1522 = vpop.f32.mrf.mxu0
        %v1523 = vadd.f32 %v711, %v1522
        %1524 = vmatmul.f32.gmra.mxu0 %v653
        %v1525 = vpop.f32.mrf.mxu0
        %v1526 = vadd.f32 %v711, %v1525
        %1527 = vmatmul.f32.gmra.mxu0 %v655
        %v1528 = vpop.f32.mrf.mxu0
        %v1529 = vadd.f32 %v711, %v1528
        %1530 = vmatmul.f32.gmra.mxu0 %v657
        %v1531 = vpop.f32.mrf.mxu0
        %v1532 = vadd.f32 %v711, %v1531
        %1533 = vdwg.mxu0
        %1534 = vmatpush.msra.mxu0 0.0
        %1535 = vmatpush.msra.mxu0 0.0
        %1536 = vmatpush.msra.mxu0 0.0
        %1537 = vmatpush.msra.mxu0 0.0
        %1538 = vmatpush.msra.mxu0 0.0
        %1539 = vmatpush.msra.mxu0 0.0
        %1540 = vmatpush.msra.mxu0 0.0
        %1541 = vmatpush.msra.mxu0 %v708
        %1542 = vmatpush.msra.mxu0 %v706
        %1543 = vmatpush.msra.mxu0 %v704
        %1544 = vmatpush.msra.mxu0 %v702
        %1545 = vmatpush.msra.mxu0 %v700
        %1546 = vmatpush.msra.mxu0 %v698
        %1547 = vmatpush.msra.mxu0 %v696
        %1548 = vmatpush.msra.mxu0 %v694
        %1549 = vmatpush.msra.mxu0 %v692
        %1550 = vmatmul.f32.gmra.mxu0 %v716
        %v1551 = vpop.f32.mrf.mxu0
        %v1552 = vadd.f32 %v1343, %v1551
        %1553 = vmatmul.f32.gmra.mxu0 %v719
        %v1554 = vpop.f32.mrf.mxu0
        %v1555 = vadd.f32 %v1346, %v1554
        %1556 = vmatmul.f32.gmra.mxu0 %v722
        %v1557 = vpop.f32.mrf.mxu0
        %v1558 = vadd.f32 %v1349, %v1557
        %1559 = vmatmul.f32.gmra.mxu0 %v725
        %v1560 = vpop.f32.mrf.mxu0
        %v1561 = vadd.f32 %v1352, %v1560
        %1562 = vmatmul.f32.gmra.mxu0 %v728
        %v1563 = vpop.f32.mrf.mxu0
        %v1564 = vadd.f32 %v1355, %v1563
        %1565 = vmatmul.f32.gmra.mxu0 %v731
        %v1566 = vpop.f32.mrf.mxu0
        %v1567 = vadd.f32 %v1358, %v1566
        %1568 = vmatmul.f32.gmra.mxu0 %v734
        %v1569 = vpop.f32.mrf.mxu0
        %v1570 = vadd.f32 %v1361, %v1569
        %1571 = vmatmul.f32.gmra.mxu0 %v737
        %v1572 = vpop.f32.mrf.mxu0
        %v1573 = vadd.f32 %v1364, %v1572
        %1574 = vmatmul.f32.gmra.mxu0 %v740
        %v1575 = vpop.f32.mrf.mxu0
        %v1576 = vadd.f32 %v1367, %v1575
        %1577 = vmatmul.f32.gmra.mxu0 %v743
        %v1578 = vpop.f32.mrf.mxu0
        %v1579 = vadd.f32 %v1370, %v1578
        %1580 = vmatmul.f32.gmra.mxu0 %v746
        %v1581 = vpop.f32.mrf.mxu0
        %v1582 = vadd.f32 %v1373, %v1581
        %1583 = vmatmul.f32.gmra.mxu0 %v749
        %v1584 = vpop.f32.mrf.mxu0
        %v1585 = vadd.f32 %v1376, %v1584
        %1586 = vmatmul.f32.gmra.mxu0 %v752
        %v1587 = vpop.f32.mrf.mxu0
        %v1588 = vadd.f32 %v1379, %v1587
        %1589 = vmatmul.f32.gmra.mxu0 %v755
        %v1590 = vpop.f32.mrf.mxu0
        %v1591 = vadd.f32 %v1382, %v1590
        %1592 = vmatmul.f32.gmra.mxu0 %v758
        %v1593 = vpop.f32.mrf.mxu0
        %v1594 = vadd.f32 %v1385, %v1593
        %1595 = vmatmul.f32.gmra.mxu0 %v761
        %v1596 = vpop.f32.mrf.mxu0
        %v1597 = vadd.f32 %v1388, %v1596
        %1598 = vmatmul.f32.gmra.mxu0 %v764
        %v1599 = vpop.f32.mrf.mxu0
        %v1600 = vadd.f32 %v1391, %v1599
        %1601 = vmatmul.f32.gmra.mxu0 %v767
        %v1602 = vpop.f32.mrf.mxu0
        %v1603 = vadd.f32 %v1394, %v1602
        %1604 = vmatmul.f32.gmra.mxu0 %v770
        %v1605 = vpop.f32.mrf.mxu0
        %v1606 = vadd.f32 %v1397, %v1605
        %1607 = vmatmul.f32.gmra.mxu0 %v773
        %v1608 = vpop.f32.mrf.mxu0
        %v1609 = vadd.f32 %v1400, %v1608
        %1610 = vmatmul.f32.gmra.mxu0 %v776
        %v1611 = vpop.f32.mrf.mxu0
        %v1612 = vadd.f32 %v1403, %v1611
        %1613 = vmatmul.f32.gmra.mxu0 %v779
        %v1614 = vpop.f32.mrf.mxu0
        %v1615 = vadd.f32 %v1406, %v1614
        %1616 = vmatmul.f32.gmra.mxu0 %v782
        %v1617 = vpop.f32.mrf.mxu0
        %v1618 = vadd.f32 %v1409, %v1617
        %1619 = vmatmul.f32.gmra.mxu0 %v785
        %v1620 = vpop.f32.mrf.mxu0
        %v1621 = vadd.f32 %v1412, %v1620
        %1622 = vmatmul.f32.gmra.mxu0 %v788
        %v1623 = vpop.f32.mrf.mxu0
        %v1624 = vadd.f32 %v1415, %v1623
        %1625 = vmatmul.f32.gmra.mxu0 %v791
        %v1626 = vpop.f32.mrf.mxu0
        %v1627 = vadd.f32 %v1418, %v1626
        %1628 = vmatmul.f32.gmra.mxu0 %v794
        %v1629 = vpop.f32.mrf.mxu0
        %v1630 = vadd.f32 %v1421, %v1629
        %1631 = vmatmul.f32.gmra.mxu0 %v797
        %v1632 = vpop.f32.mrf.mxu0
        %v1633 = vadd.f32 %v1424, %v1632
        %1634 = vmatmul.f32.gmra.mxu0 %v800
        %v1635 = vpop.f32.mrf.mxu0
        %v1636 = vadd.f32 %v1427, %v1635
        %1637 = vmatmul.f32.gmra.mxu0 %v803
        %v1638 = vpop.f32.mrf.mxu0
        %v1639 = vadd.f32 %v1430, %v1638
        %1640 = vmatmul.f32.gmra.mxu0 %v806
        %v1641 = vpop.f32.mrf.mxu0
        %v1642 = vadd.f32 %v1433, %v1641
        %1643 = vmatmul.f32.gmra.mxu0 %v809
        %v1644 = vpop.f32.mrf.mxu0
        %v1645 = vadd.f32 %v1436, %v1644
        %1646 = vmatmul.f32.gmra.mxu0 %v812
        %v1647 = vpop.f32.mrf.mxu0
        %v1648 = vadd.f32 %v1439, %v1647
        %1649 = vmatmul.f32.gmra.mxu0 %v815
        %v1650 = vpop.f32.mrf.mxu0
        %v1651 = vadd.f32 %v1442, %v1650
        %1652 = vmatmul.f32.gmra.mxu0 %v818
        %v1653 = vpop.f32.mrf.mxu0
        %v1654 = vadd.f32 %v1445, %v1653
        %1655 = vmatmul.f32.gmra.mxu0 %v821
        %v1656 = vpop.f32.mrf.mxu0
        %v1657 = vadd.f32 %v1448, %v1656
        %1658 = vmatmul.f32.gmra.mxu0 %v824
        %v1659 = vpop.f32.mrf.mxu0
        %v1660 = vadd.f32 %v1451, %v1659
        %1661 = vmatmul.f32.gmra.mxu0 %v827
        %v1662 = vpop.f32.mrf.mxu0
        %v1663 = vadd.f32 %v1454, %v1662
        %1664 = vmatmul.f32.gmra.mxu0 %v830
        %v1665 = vpop.f32.mrf.mxu0
        %v1666 = vadd.f32 %v1457, %v1665
        %1667 = vmatmul.f32.gmra.mxu0 %v833
        %v1668 = vpop.f32.mrf.mxu0
        %v1669 = vadd.f32 %v1460, %v1668
        %1670 = vmatmul.f32.gmra.mxu0 %v836
        %v1671 = vpop.f32.mrf.mxu0
        %v1672 = vadd.f32 %v1463, %v1671
        %1673 = vmatmul.f32.gmra.mxu0 %v839
        %v1674 = vpop.f32.mrf.mxu0
        %v1675 = vadd.f32 %v1466, %v1674
        %1676 = vmatmul.f32.gmra.mxu0 %v842
        %v1677 = vpop.f32.mrf.mxu0
        %v1678 = vadd.f32 %v1469, %v1677
        %1679 = vmatmul.f32.gmra.mxu0 %v845
        %v1680 = vpop.f32.mrf.mxu0
        %v1681 = vadd.f32 %v1472, %v1680
        %1682 = vmatmul.f32.gmra.mxu0 %v848
        %v1683 = vpop.f32.mrf.mxu0
        %v1684 = vadd.f32 %v1475, %v1683
        %1685 = vmatmul.f32.gmra.mxu0 %v851
        %v1686 = vpop.f32.mrf.mxu0
        %v1687 = vadd.f32 %v1478, %v1686
        %1688 = vmatmul.f32.gmra.mxu0 %v854
        %v1689 = vpop.f32.mrf.mxu0
        %v1690 = vadd.f32 %v1481, %v1689
        %1691 = vmatmul.f32.gmra.mxu0 %v857
        %v1692 = vpop.f32.mrf.mxu0
        %v1693 = vadd.f32 %v1484, %v1692
        %1694 = vmatmul.f32.gmra.mxu0 %v860
        %v1695 = vpop.f32.mrf.mxu0
        %v1696 = vadd.f32 %v1487, %v1695
        %1697 = vmatmul.f32.gmra.mxu0 %v863
        %v1698 = vpop.f32.mrf.mxu0
        %v1699 = vadd.f32 %v1490, %v1698
        %1700 = vmatmul.f32.gmra.mxu0 %v866
        %v1701 = vpop.f32.mrf.mxu0
        %v1702 = vadd.f32 %v1493, %v1701
        %1703 = vmatmul.f32.gmra.mxu0 %v869
        %v1704 = vpop.f32.mrf.mxu0
        %v1705 = vadd.f32 %v1496, %v1704
        %1706 = vmatmul.f32.gmra.mxu0 %v872
        %v1707 = vpop.f32.mrf.mxu0
        %v1708 = vadd.f32 %v1499, %v1707
        %1709 = vmatmul.f32.gmra.mxu0 %v875
        %v1710 = vpop.f32.mrf.mxu0
        %v1711 = vadd.f32 %v1502, %v1710
        %1712 = vmatmul.f32.gmra.mxu0 %v878
        %v1713 = vpop.f32.mrf.mxu0
        %v1714 = vadd.f32 %v1505, %v1713
        %1715 = vmatmul.f32.gmra.mxu0 %v881
        %v1716 = vpop.f32.mrf.mxu0
        %v1717 = vadd.f32 %v1508, %v1716
        %1718 = vmatmul.f32.gmra.mxu0 %v884
        %v1719 = vpop.f32.mrf.mxu0
        %v1720 = vadd.f32 %v1511, %v1719
        %1721 = vmatmul.f32.gmra.mxu0 %v887
        %v1722 = vpop.f32.mrf.mxu0
        %v1723 = vadd.f32 %v1514, %v1722
        %1724 = vmatmul.f32.gmra.mxu0 %v890
        %v1725 = vpop.f32.mrf.mxu0
        %v1726 = vadd.f32 %v1517, %v1725
        %1727 = vmatmul.f32.gmra.mxu0 %v893
        %v1728 = vpop.f32.mrf.mxu0
        %v1729 = vadd.f32 %v1520, %v1728
        %1730 = vmatmul.f32.gmra.mxu0 %v896
        %v1731 = vpop.f32.mrf.mxu0
        %v1732 = vadd.f32 %v1523, %v1731
        %1733 = vmatmul.f32.gmra.mxu0 %v899
        %v1734 = vpop.f32.mrf.mxu0
        %v1735 = vadd.f32 %v1526, %v1734
        %1736 = vmatmul.f32.gmra.mxu0 %v902
        %v1737 = vpop.f32.mrf.mxu0
        %v1738 = vadd.f32 %v1529, %v1737
        %1739 = vmatmul.f32.gmra.mxu0 %v905
        %v1740 = vpop.f32.mrf.mxu0
        %v1741 = vadd.f32 %v1532, %v1740
        %1742 = vdwg.mxu0
        %v1743 = vmax.f32 %v1134, 0.0
        %v1744 = vmax.f32 %v1552, 0.0
        %v1745 = vmax.f32 %v1137, 0.0
        %v1746 = vmax.f32 %v1555, 0.0
        %v1747 = vmax.f32 %v1140, 0.0
        %v1748 = vmax.f32 %v1558, 0.0
        %v1749 = vmax.f32 %v1143, 0.0
        %v1750 = vmax.f32 %v1561, 0.0
        %v1751 = vmax.f32 %v1146, 0.0
        %v1752 = vmax.f32 %v1564, 0.0
        %v1753 = vmax.f32 %v1149, 0.0
        %v1754 = vmax.f32 %v1567, 0.0
        %v1755 = vmax.f32 %v1152, 0.0
        %v1756 = vmax.f32 %v1570, 0.0
        %v1757 = vmax.f32 %v1155, 0.0
        %v1758 = vmax.f32 %v1573, 0.0
        %v1759 = vmax.f32 %v1158, 0.0
        %v1760 = vmax.f32 %v1576, 0.0
        %v1761 = vmax.f32 %v1161, 0.0
        %v1762 = vmax.f32 %v1579, 0.0
        %v1763 = vmax.f32 %v1164, 0.0
        %v1764 = vmax.f32 %v1582, 0.0
        %v1765 = vmax.f32 %v1167, 0.0
        %v1766 = vmax.f32 %v1585, 0.0
        %v1767 = vmax.f32 %v1170, 0.0
        %v1768 = vmax.f32 %v1588, 0.0
        %v1769 = vmax.f32 %v1173, 0.0
        %v1770 = vmax.f32 %v1591, 0.0
        %v1771 = vmax.f32 %v1176, 0.0
        %v1772 = vmax.f32 %v1594, 0.0
        %v1773 = vmax.f32 %v1179, 0.0
        %v1774 = vmax.f32 %v1597, 0.0
        %v1775 = vmax.f32 %v1182, 0.0
        %v1776 = vmax.f32 %v1600, 0.0
        %v1777 = vmax.f32 %v1185, 0.0
        %v1778 = vmax.f32 %v1603, 0.0
        %v1779 = vmax.f32 %v1188, 0.0
        %v1780 = vmax.f32 %v1606, 0.0
        %v1781 = vmax.f32 %v1191, 0.0
        %v1782 = vmax.f32 %v1609, 0.0
        %v1783 = vmax.f32 %v1194, 0.0
        %v1784 = vmax.f32 %v1612, 0.0
        %v1785 = vmax.f32 %v1197, 0.0
        %v1786 = vmax.f32 %v1615, 0.0
        %v1787 = vmax.f32 %v1200, 0.0
        %v1788 = vmax.f32 %v1618, 0.0
        %v1789 = vmax.f32 %v1203, 0.0
        %v1790 = vmax.f32 %v1621, 0.0
        %v1791 = vmax.f32 %v1206, 0.0
        %v1792 = vmax.f32 %v1624, 0.0
        %v1793 = vmax.f32 %v1209, 0.0
        %v1794 = vmax.f32 %v1627, 0.0
        %v1795 = vmax.f32 %v1212, 0.0
        %v1796 = vmax.f32 %v1630, 0.0
        %v1797 = vmax.f32 %v1215, 0.0
        %v1798 = vmax.f32 %v1633, 0.0
        %v1799 = vmax.f32 %v1218, 0.0
        %v1800 = vmax.f32 %v1636, 0.0
        %v1801 = vmax.f32 %v1221, 0.0
        %v1802 = vmax.f32 %v1639, 0.0
        %v1803 = vmax.f32 %v1224, 0.0
        %v1804 = vmax.f32 %v1642, 0.0
        %v1805 = vmax.f32 %v1227, 0.0
        %v1806 = vmax.f32 %v1645, 0.0
        %v1807 = vmax.f32 %v1230, 0.0
        %v1808 = vmax.f32 %v1648, 0.0
        %v1809 = vmax.f32 %v1233, 0.0
        %v1810 = vmax.f32 %v1651, 0.0
        %v1811 = vmax.f32 %v1236, 0.0
        %v1812 = vmax.f32 %v1654, 0.0
        %v1813 = vmax.f32 %v1239, 0.0
        %v1814 = vmax.f32 %v1657, 0.0
        %v1815 = vmax.f32 %v1242, 0.0
        %v1816 = vmax.f32 %v1660, 0.0
        %v1817 = vmax.f32 %v1245, 0.0
        %v1818 = vmax.f32 %v1663, 0.0
        %v1819 = vmax.f32 %v1248, 0.0
        %v1820 = vmax.f32 %v1666, 0.0
        %v1821 = vmax.f32 %v1251, 0.0
        %v1822 = vmax.f32 %v1669, 0.0
        %v1823 = vmax.f32 %v1254, 0.0
        %v1824 = vmax.f32 %v1672, 0.0
        %v1825 = vmax.f32 %v1257, 0.0
        %v1826 = vmax.f32 %v1675, 0.0
        %v1827 = vmax.f32 %v1260, 0.0
        %v1828 = vmax.f32 %v1678, 0.0
        %v1829 = vmax.f32 %v1263, 0.0
        %v1830 = vmax.f32 %v1681, 0.0
        %v1831 = vmax.f32 %v1266, 0.0
        %v1832 = vmax.f32 %v1684, 0.0
        %v1833 = vmax.f32 %v1269, 0.0
        %v1834 = vmax.f32 %v1687, 0.0
        %v1835 = vmax.f32 %v1272, 0.0
        %v1836 = vmax.f32 %v1690, 0.0
        %v1837 = vmax.f32 %v1275, 0.0
        %v1838 = vmax.f32 %v1693, 0.0
        %v1839 = vmax.f32 %v1278, 0.0
        %v1840 = vmax.f32 %v1696, 0.0
        %v1841 = vmax.f32 %v1281, 0.0
        %v1842 = vmax.f32 %v1699, 0.0
        %v1843 = vmax.f32 %v1284, 0.0
        %v1844 = vmax.f32 %v1702, 0.0
        %v1845 = vmax.f32 %v1287, 0.0
        %v1846 = vmax.f32 %v1705, 0.0
        %v1847 = vmax.f32 %v1290, 0.0
        %v1848 = vmax.f32 %v1708, 0.0
        %v1849 = vmax.f32 %v1293, 0.0
        %v1850 = vmax.f32 %v1711, 0.0
        %v1851 = vmax.f32 %v1296, 0.0
        %v1852 = vmax.f32 %v1714, 0.0
        %v1853 = vmax.f32 %v1299, 0.0
        %v1854 = vmax.f32 %v1717, 0.0
        %v1855 = vmax.f32 %v1302, 0.0
        %v1856 = vmax.f32 %v1720, 0.0
        %v1857 = vmax.f32 %v1305, 0.0
        %v1858 = vmax.f32 %v1723, 0.0
        %v1859 = vmax.f32 %v1308, 0.0
        %v1860 = vmax.f32 %v1726, 0.0
        %v1861 = vmax.f32 %v1311, 0.0
        %v1862 = vmax.f32 %v1729, 0.0
        %v1863 = vmax.f32 %v1314, 0.0
        %v1864 = vmax.f32 %v1732, 0.0
        %v1865 = vmax.f32 %v1317, 0.0
        %v1866 = vmax.f32 %v1735, 0.0
        %v1867 = vmax.f32 %v1320, 0.0
        %v1868 = vmax.f32 %v1738, 0.0
        %v1869 = vmax.f32 %v1323, 0.0
        %v1870 = vmax.f32 %v1741, 0.0
        %v1871 = vmax.f32 %v527, 0.0
        %v1873 = vperm.slane %v1871, 0
        %v1874 = vperm.slane %v1871, 1
        %v1877 = vmax.f32 %v1873, %v1743
        %v1878 = vmax.f32 %v1874, %v1744
        %v1879 = vmax.f32 %v1873, %v1745
        %v1880 = vmax.f32 %v1874, %v1746
        %v1881 = vmax.f32 %v1873, %v1747
        %v1882 = vmax.f32 %v1874, %v1748
        %v1883 = vmax.f32 %v1873, %v1749
        %v1884 = vmax.f32 %v1874, %v1750
        %v1885 = vmax.f32 %v1873, %v1751
        %v1886 = vmax.f32 %v1874, %v1752
        %v1887 = vmax.f32 %v1873, %v1753
        %v1888 = vmax.f32 %v1874, %v1754
        %v1889 = vmax.f32 %v1873, %v1755
        %v1890 = vmax.f32 %v1874, %v1756
        %v1891 = vmax.f32 %v1873, %v1757
        %v1892 = vmax.f32 %v1874, %v1758
        %v1893 = vmax.f32 %v1873, %v1759
        %v1894 = vmax.f32 %v1874, %v1760
        %v1895 = vmax.f32 %v1873, %v1761
        %v1896 = vmax.f32 %v1874, %v1762
        %v1897 = vmax.f32 %v1873, %v1763
        %v1898 = vmax.f32 %v1874, %v1764
        %v1899 = vmax.f32 %v1873, %v1765
        %v1900 = vmax.f32 %v1874, %v1766
        %v1901 = vmax.f32 %v1873, %v1767
        %v1902 = vmax.f32 %v1874, %v1768
        %v1903 = vmax.f32 %v1873, %v1769
        %v1904 = vmax.f32 %v1874, %v1770
        %v1905 = vmax.f32 %v1873, %v1771
        %v1906 = vmax.f32 %v1874, %v1772
        %v1907 = vmax.f32 %v1873, %v1773
        %v1908 = vmax.f32 %v1874, %v1774
        %v1909 = vmax.f32 %v1873, %v1775
        %v1910 = vmax.f32 %v1874, %v1776
        %v1911 = vmax.f32 %v1873, %v1777
        %v1912 = vmax.f32 %v1874, %v1778
        %v1913 = vmax.f32 %v1873, %v1779
        %v1914 = vmax.f32 %v1874, %v1780
        %v1915 = vmax.f32 %v1873, %v1781
        %v1916 = vmax.f32 %v1874, %v1782
        %v1917 = vmax.f32 %v1873, %v1783
        %v1918 = vmax.f32 %v1874, %v1784
        %v1919 = vmax.f32 %v1873, %v1785
        %v1920 = vmax.f32 %v1874, %v1786
        %v1921 = vmax.f32 %v1873, %v1787
        %v1922 = vmax.f32 %v1874, %v1788
        %v1923 = vmax.f32 %v1873, %v1789
        %v1924 = vmax.f32 %v1874, %v1790
        %v1925 = vmax.f32 %v1873, %v1791
        %v1926 = vmax.f32 %v1874, %v1792
        %v1927 = vmax.f32 %v1873, %v1793
        %v1928 = vmax.f32 %v1874, %v1794
        %v1929 = vmax.f32 %v1873, %v1795
        %v1930 = vmax.f32 %v1874, %v1796
        %v1931 = vmax.f32 %v1873, %v1797
        %v1932 = vmax.f32 %v1874, %v1798
        %v1933 = vmax.f32 %v1873, %v1799
        %v1934 = vmax.f32 %v1874, %v1800
        %v1935 = vmax.f32 %v1873, %v1801
        %v1936 = vmax.f32 %v1874, %v1802
        %v1937 = vmax.f32 %v1873, %v1803
        %v1938 = vmax.f32 %v1874, %v1804
        %v1939 = vmax.f32 %v1873, %v1805
        %v1940 = vmax.f32 %v1874, %v1806
        %v1941 = vmax.f32 %v1807, %v1873
        %v1942 = vmax.f32 %v1808, %v1874
        %v1943 = vmax.f32 %v1809, %v1873
        %v1944 = vmax.f32 %v1810, %v1874
        %v1945 = vmax.f32 %v1811, %v1873
        %v1946 = vmax.f32 %v1812, %v1874
        %v1947 = vmax.f32 %v1813, %v1873
        %v1948 = vmax.f32 %v1814, %v1874
        %v1949 = vmax.f32 %v1815, %v1873
        %v1950 = vmax.f32 %v1816, %v1874
        %v1951 = vmax.f32 %v1817, %v1873
        %v1952 = vmax.f32 %v1818, %v1874
        %v1953 = vmax.f32 %v1819, %v1873
        %v1954 = vmax.f32 %v1820, %v1874
        %v1955 = vmax.f32 %v1821, %v1873
        %v1956 = vmax.f32 %v1822, %v1874
        %v1957 = vmax.f32 %v1823, %v1873
        %v1958 = vmax.f32 %v1824, %v1874
        %v1959 = vmax.f32 %v1825, %v1873
        %v1960 = vmax.f32 %v1826, %v1874
        %v1961 = vmax.f32 %v1827, %v1873
        %v1962 = vmax.f32 %v1828, %v1874
        %v1963 = vmax.f32 %v1829, %v1873
        %v1964 = vmax.f32 %v1830, %v1874
        %v1965 = vmax.f32 %v1831, %v1873
        %v1966 = vmax.f32 %v1832, %v1874
        %v1967 = vmax.f32 %v1833, %v1873
        %v1968 = vmax.f32 %v1834, %v1874
        %v1969 = vmax.f32 %v1835, %v1873
        %v1970 = vmax.f32 %v1836, %v1874
        %v1971 = vmax.f32 %v1837, %v1873
        %v1972 = vmax.f32 %v1838, %v1874
        %v1973 = vmax.f32 %v1839, %v1873
        %v1974 = vmax.f32 %v1840, %v1874
        %v1975 = vmax.f32 %v1841, %v1873
        %v1976 = vmax.f32 %v1842, %v1874
        %v1977 = vmax.f32 %v1843, %v1873
        %v1978 = vmax.f32 %v1844, %v1874
        %v1979 = vmax.f32 %v1845, %v1873
        %v1980 = vmax.f32 %v1846, %v1874
        %v1981 = vmax.f32 %v1847, %v1873
        %v1982 = vmax.f32 %v1848, %v1874
        %v1983 = vmax.f32 %v1849, %v1873
        %v1984 = vmax.f32 %v1850, %v1874
        %v1985 = vmax.f32 %v1851, %v1873
        %v1986 = vmax.f32 %v1852, %v1874
        %v1987 = vmax.f32 %v1853, %v1873
        %v1988 = vmax.f32 %v1854, %v1874
        %v1989 = vmax.f32 %v1855, %v1873
        %v1990 = vmax.f32 %v1856, %v1874
        %v1991 = vmax.f32 %v1857, %v1873
        %v1992 = vmax.f32 %v1858, %v1874
        %v1993 = vmax.f32 %v1859, %v1873
        %v1994 = vmax.f32 %v1860, %v1874
        %v1995 = vmax.f32 %v1861, %v1873
        %v1996 = vmax.f32 %v1862, %v1874
        %v1997 = vmax.f32 %v1863, %v1873
        %v1998 = vmax.f32 %v1864, %v1874
        %v1999 = vmax.f32 %v1865, %v1873
        %v2000 = vmax.f32 %v1866, %v1874
        %v2001 = vmax.f32 %v1867, %v1873
        %v2002 = vmax.f32 %v1868, %v1874
        %v2003 = vmax.f32 %v1869, %v1873
        %v2004 = vmax.f32 %v1870, %v1874
        %v2005 = vld [vmem:[%s2] sm:$0xff]
        %v2006 = vld [vmem:[%s2 + $0x8] sm:$0xff]
        %v2007 = vld [vmem:[%s2 + $0x10] sm:$0xff]
        %v2008 = vld [vmem:[%s2 + $0x18] sm:$0xff]
        %v2009 = vld [vmem:[%s2 + $0x20] sm:$0xff]
        %v2010 = vld [vmem:[%s2 + $0x28] sm:$0xff]
        %v2011 = vld [vmem:[%s2 + $0x30] sm:$0xff]
        %v2012 = vld [vmem:[%s2 + $0x38] sm:$0xff]
        %v2013 = vld [vmem:[%s2 + $0x40] sm:$0xff]
        %v2014 = vld [vmem:[%s2 + $0x48] sm:$0xff]
        %v2015 = vld [vmem:[%s2 + $0x50] sm:$0xff]
        %v2016 = vld [vmem:[%s2 + $0x58] sm:$0xff]
        %v2017 = vld [vmem:[%s2 + $0x60] sm:$0xff]
        %v2018 = vld [vmem:[%s2 + $0x68] sm:$0xff]
        %v2019 = vld [vmem:[%s2 + $0x70] sm:$0xff]
        %v2020 = vld [vmem:[%s2 + $0x78] sm:$0xff]
        %v2021 = vld [vmem:[%s2 + $0x80] sm:$0xff]
        %v2022 = vld [vmem:[%s2 + $0x88] sm:$0xff]
        %v2023 = vld [vmem:[%s2 + $0x90] sm:$0xff]
        %v2024 = vld [vmem:[%s2 + $0x98] sm:$0xff]
        %v2025 = vld [vmem:[%s2 + $0xa0] sm:$0xff]
        %v2026 = vld [vmem:[%s2 + $0xa8] sm:$0xff]
        %v2027 = vld [vmem:[%s2 + $0xb0] sm:$0xff]
        %v2028 = vld [vmem:[%s2 + $0xb8] sm:$0xff]
        %v2029 = vld [vmem:[%s2 + $0xc0] sm:$0xff]
        %v2030 = vld [vmem:[%s2 + $0xc8] sm:$0xff]
        %v2031 = vld [vmem:[%s2 + $0xd0] sm:$0xff]
        %v2032 = vld [vmem:[%s2 + $0xd8] sm:$0xff]
        %v2033 = vld [vmem:[%s2 + $0xe0] sm:$0xff]
        %v2034 = vld [vmem:[%s2 + $0xe8] sm:$0xff]
        %v2035 = vld [vmem:[%s2 + $0xf0] sm:$0xff]
        %v2036 = vld [vmem:[%s2 + $0xf8] sm:$0xff]
        %v2037 = vld [vmem:[%s2 + $0x100] sm:$0xff]
        %v2038 = vld [vmem:[%s2 + $0x108] sm:$0xff]
        %v2039 = vld [vmem:[%s2 + $0x110] sm:$0xff]
        %v2040 = vld [vmem:[%s2 + $0x118] sm:$0xff]
        %v2041 = vld [vmem:[%s2 + $0x120] sm:$0x3f]
        %v2042 = vld [vmem:[%s2 + $0x128] sm:$0x3f]
        %vm2043 = vcmask 179200
        %v2045 = vsel %vm2043, %v1878, 0
        %v2048 = vsel %vm2043, %v1880, 0
        %v2051 = vsel %vm2043, %v1882, 0
        %v2054 = vsel %vm2043, %v1884, 0
        %v2057 = vsel %vm2043, %v1886, 0
        %v2060 = vsel %vm2043, %v1888, 0
        %v2063 = vsel %vm2043, %v1890, 0
        %v2066 = vsel %vm2043, %v1892, 0
        %v2069 = vsel %vm2043, %v1894, 0
        %v2072 = vsel %vm2043, %v1896, 0
        %v2075 = vsel %vm2043, %v1898, 0
        %v2078 = vsel %vm2043, %v1900, 0
        %v2081 = vsel %vm2043, %v1902, 0
        %v2084 = vsel %vm2043, %v1904, 0
        %v2087 = vsel %vm2043, %v1906, 0
        %v2090 = vsel %vm2043, %v1908, 0
        %v2093 = vsel %vm2043, %v1910, 0
        %v2096 = vsel %vm2043, %v1912, 0
        %v2099 = vsel %vm2043, %v1914, 0
        %v2102 = vsel %vm2043, %v1916, 0
        %v2105 = vsel %vm2043, %v1918, 0
        %v2108 = vsel %vm2043, %v1920, 0
        %v2111 = vsel %vm2043, %v1922, 0
        %v2114 = vsel %vm2043, %v1924, 0
        %v2117 = vsel %vm2043, %v1926, 0
        %v2120 = vsel %vm2043, %v1928, 0
        %v2123 = vsel %vm2043, %v1930, 0
        %v2126 = vsel %vm2043, %v1932, 0
        %v2129 = vsel %vm2043, %v1934, 0
        %v2132 = vsel %vm2043, %v1936, 0
        %v2135 = vsel %vm2043, %v1938, 0
        %v2138 = vsel %vm2043, %v1940, 0
        %vm2140 = vcmask 1045504
        %v2142 = vsel %vm2140, %v2041, 0
        %v2145 = vsel %vm2140, %v2042, 0
        %2147 = vmatpush.msra.mxu0 %v2035
        %2148 = vmatpush.msra.mxu0 %v2033
        %2149 = vmatpush.msra.mxu0 %v2031
        %2150 = vmatpush.msra.mxu0 %v2029
        %2151 = vmatpush.msra.mxu0 %v2027
        %2152 = vmatpush.msra.mxu0 %v2025
        %2153 = vmatpush.msra.mxu0 %v2023
        %2154 = vmatpush.msra.mxu0 %v2021
        %2155 = vmatpush.msra.mxu0 %v2019
        %2156 = vmatpush.msra.mxu0 %v2017
        %2157 = vmatpush.msra.mxu0 %v2015
        %2158 = vmatpush.msra.mxu0 %v2013
        %2159 = vmatpush.msra.mxu0 %v2011
        %2160 = vmatpush.msra.mxu0 %v2009
        %2161 = vmatpush.msra.mxu0 %v2007
        %2162 = vmatpush.msra.mxu0 %v2005
        %2163 = vmatmul.f32.gmra.mxu0 %v1877
        %v2164 = vpop.f32.mrf.mxu0
        %v2165 = vadd.f32 0.0, %v2164
        %2166 = vmatmul.f32.gmra.mxu0 %v1879
        %v2167 = vpop.f32.mrf.mxu0
        %v2168 = vadd.f32 0.0, %v2167
        %2169 = vmatmul.f32.gmra.mxu0 %v1881
        %v2170 = vpop.f32.mrf.mxu0
        %v2171 = vadd.f32 0.0, %v2170
        %2172 = vmatmul.f32.gmra.mxu0 %v1883
        %v2173 = vpop.f32.mrf.mxu0
        %v2174 = vadd.f32 0.0, %v2173
        %2175 = vmatmul.f32.gmra.mxu0 %v1885
        %v2176 = vpop.f32.mrf.mxu0
        %v2177 = vadd.f32 0.0, %v2176
        %2178 = vmatmul.f32.gmra.mxu0 %v1887
        %v2179 = vpop.f32.mrf.mxu0
        %v2180 = vadd.f32 0.0, %v2179
        %2181 = vmatmul.f32.gmra.mxu0 %v1889
        %v2182 = vpop.f32.mrf.mxu0
        %v2183 = vadd.f32 0.0, %v2182
        %2184 = vmatmul.f32.gmra.mxu0 %v1891
        %v2185 = vpop.f32.mrf.mxu0
        %v2186 = vadd.f32 0.0, %v2185
        %2187 = vmatmul.f32.gmra.mxu0 %v1893
        %v2188 = vpop.f32.mrf.mxu0
        %v2189 = vadd.f32 0.0, %v2188
        %2190 = vmatmul.f32.gmra.mxu0 %v1895
        %v2191 = vpop.f32.mrf.mxu0
        %v2192 = vadd.f32 0.0, %v2191
        %2193 = vmatmul.f32.gmra.mxu0 %v1897
        %v2194 = vpop.f32.mrf.mxu0
        %v2195 = vadd.f32 0.0, %v2194
        %2196 = vmatmul.f32.gmra.mxu0 %v1899
        %v2197 = vpop.f32.mrf.mxu0
        %v2198 = vadd.f32 0.0, %v2197
        %2199 = vmatmul.f32.gmra.mxu0 %v1901
        %v2200 = vpop.f32.mrf.mxu0
        %v2201 = vadd.f32 0.0, %v2200
        %2202 = vmatmul.f32.gmra.mxu0 %v1903
        %v2203 = vpop.f32.mrf.mxu0
        %v2204 = vadd.f32 0.0, %v2203
        %2205 = vmatmul.f32.gmra.mxu0 %v1905
        %v2206 = vpop.f32.mrf.mxu0
        %v2207 = vadd.f32 0.0, %v2206
        %2208 = vmatmul.f32.gmra.mxu0 %v1907
        %v2209 = vpop.f32.mrf.mxu0
        %v2210 = vadd.f32 0.0, %v2209
        %2211 = vmatmul.f32.gmra.mxu0 %v1909
        %v2212 = vpop.f32.mrf.mxu0
        %v2213 = vadd.f32 0.0, %v2212
        %2214 = vmatmul.f32.gmra.mxu0 %v1911
        %v2215 = vpop.f32.mrf.mxu0
        %v2216 = vadd.f32 0.0, %v2215
        %2217 = vmatmul.f32.gmra.mxu0 %v1913
        %v2218 = vpop.f32.mrf.mxu0
        %v2219 = vadd.f32 0.0, %v2218
        %2220 = vmatmul.f32.gmra.mxu0 %v1915
        %v2221 = vpop.f32.mrf.mxu0
        %v2222 = vadd.f32 0.0, %v2221
        %2223 = vmatmul.f32.gmra.mxu0 %v1917
        %v2224 = vpop.f32.mrf.mxu0
        %v2225 = vadd.f32 0.0, %v2224
        %2226 = vmatmul.f32.gmra.mxu0 %v1919
        %v2227 = vpop.f32.mrf.mxu0
        %v2228 = vadd.f32 0.0, %v2227
        %2229 = vmatmul.f32.gmra.mxu0 %v1921
        %v2230 = vpop.f32.mrf.mxu0
        %v2231 = vadd.f32 0.0, %v2230
        %2232 = vmatmul.f32.gmra.mxu0 %v1923
        %v2233 = vpop.f32.mrf.mxu0
        %v2234 = vadd.f32 0.0, %v2233
        %2235 = vmatmul.f32.gmra.mxu0 %v1925
        %v2236 = vpop.f32.mrf.mxu0
        %v2237 = vadd.f32 0.0, %v2236
        %2238 = vmatmul.f32.gmra.mxu0 %v1927
        %v2239 = vpop.f32.mrf.mxu0
        %v2240 = vadd.f32 0.0, %v2239
        %2241 = vmatmul.f32.gmra.mxu0 %v1929
        %v2242 = vpop.f32.mrf.mxu0
        %v2243 = vadd.f32 0.0, %v2242
        %2244 = vmatmul.f32.gmra.mxu0 %v1931
        %v2245 = vpop.f32.mrf.mxu0
        %v2246 = vadd.f32 0.0, %v2245
        %2247 = vmatmul.f32.gmra.mxu0 %v1933
        %v2248 = vpop.f32.mrf.mxu0
        %v2249 = vadd.f32 0.0, %v2248
        %2250 = vmatmul.f32.gmra.mxu0 %v1935
        %v2251 = vpop.f32.mrf.mxu0
        %v2252 = vadd.f32 0.0, %v2251
        %2253 = vmatmul.f32.gmra.mxu0 %v1937
        %v2254 = vpop.f32.mrf.mxu0
        %v2255 = vadd.f32 0.0, %v2254
        %2256 = vmatmul.f32.gmra.mxu0 %v1939
        %v2257 = vpop.f32.mrf.mxu0
        %v2258 = vadd.f32 0.0, %v2257
        %2259 = vdwg.mxu0
        %2260 = vmatpush.msra.mxu0 0.0
        %2261 = vmatpush.msra.mxu0 0.0
        %2262 = vmatpush.msra.mxu0 0.0
        %2263 = vmatpush.msra.mxu0 0.0
        %2264 = vmatpush.msra.mxu0 0.0
        %2265 = vmatpush.msra.mxu0 0.0
        %2266 = vmatpush.msra.mxu0 0.0
        %2267 = vmatpush.msra.mxu0 0.0
        %2268 = vmatpush.msra.mxu0 0.0
        %2269 = vmatpush.msra.mxu0 0.0
        %2270 = vmatpush.msra.mxu0 0.0
        %2271 = vmatpush.msra.mxu0 0.0
        %2272 = vmatpush.msra.mxu0 0.0
        %2273 = vmatpush.msra.mxu0 %v2142
        %2274 = vmatpush.msra.mxu0 %v2039
        %2275 = vmatpush.msra.mxu0 %v2037
        %2276 = vmatmul.f32.gmra.mxu0 %v2045
        %v2277 = vpop.f32.mrf.mxu0
        %v2278 = vadd.f32 %v2165, %v2277
        %2279 = vmatmul.f32.gmra.mxu0 %v2048
        %v2280 = vpop.f32.mrf.mxu0
        %v2281 = vadd.f32 %v2168, %v2280
        %2282 = vmatmul.f32.gmra.mxu0 %v2051
        %v2283 = vpop.f32.mrf.mxu0
        %v2284 = vadd.f32 %v2171, %v2283
        %2285 = vmatmul.f32.gmra.mxu0 %v2054
        %v2286 = vpop.f32.mrf.mxu0
        %v2287 = vadd.f32 %v2174, %v2286
        %2288 = vmatmul.f32.gmra.mxu0 %v2057
        %v2289 = vpop.f32.mrf.mxu0
        %v2290 = vadd.f32 %v2177, %v2289
        %2291 = vmatmul.f32.gmra.mxu0 %v2060
        %v2292 = vpop.f32.mrf.mxu0
        %v2293 = vadd.f32 %v2180, %v2292
        %2294 = vmatmul.f32.gmra.mxu0 %v2063
        %v2295 = vpop.f32.mrf.mxu0
        %v2296 = vadd.f32 %v2183, %v2295
        %2297 = vmatmul.f32.gmra.mxu0 %v2066
        %v2298 = vpop.f32.mrf.mxu0
        %v2299 = vadd.f32 %v2186, %v2298
        %2300 = vmatmul.f32.gmra.mxu0 %v2069
        %v2301 = vpop.f32.mrf.mxu0
        %v2302 = vadd.f32 %v2189, %v2301
        %2303 = vmatmul.f32.gmra.mxu0 %v2072
        %v2304 = vpop.f32.mrf.mxu0
        %v2305 = vadd.f32 %v2192, %v2304
        %2306 = vmatmul.f32.gmra.mxu0 %v2075
        %v2307 = vpop.f32.mrf.mxu0
        %v2308 = vadd.f32 %v2195, %v2307
        %2309 = vmatmul.f32.gmra.mxu0 %v2078
        %v2310 = vpop.f32.mrf.mxu0
        %v2311 = vadd.f32 %v2198, %v2310
        %2312 = vmatmul.f32.gmra.mxu0 %v2081
        %v2313 = vpop.f32.mrf.mxu0
        %v2314 = vadd.f32 %v2201, %v2313
        %2315 = vmatmul.f32.gmra.mxu0 %v2084
        %v2316 = vpop.f32.mrf.mxu0
        %v2317 = vadd.f32 %v2204, %v2316
        %2318 = vmatmul.f32.gmra.mxu0 %v2087
        %v2319 = vpop.f32.mrf.mxu0
        %v2320 = vadd.f32 %v2207, %v2319
        %2321 = vmatmul.f32.gmra.mxu0 %v2090
        %v2322 = vpop.f32.mrf.mxu0
        %v2323 = vadd.f32 %v2210, %v2322
        %2324 = vmatmul.f32.gmra.mxu0 %v2093
        %v2325 = vpop.f32.mrf.mxu0
        %v2326 = vadd.f32 %v2213, %v2325
        %2327 = vmatmul.f32.gmra.mxu0 %v2096
        %v2328 = vpop.f32.mrf.mxu0
        %v2329 = vadd.f32 %v2216, %v2328
        %2330 = vmatmul.f32.gmra.mxu0 %v2099
        %v2331 = vpop.f32.mrf.mxu0
        %v2332 = vadd.f32 %v2219, %v2331
        %2333 = vmatmul.f32.gmra.mxu0 %v2102
        %v2334 = vpop.f32.mrf.mxu0
        %v2335 = vadd.f32 %v2222, %v2334
        %2336 = vmatmul.f32.gmra.mxu0 %v2105
        %v2337 = vpop.f32.mrf.mxu0
        %v2338 = vadd.f32 %v2225, %v2337
        %2339 = vmatmul.f32.gmra.mxu0 %v2108
        %v2340 = vpop.f32.mrf.mxu0
        %v2341 = vadd.f32 %v2228, %v2340
        %2342 = vmatmul.f32.gmra.mxu0 %v2111
        %v2343 = vpop.f32.mrf.mxu0
        %v2344 = vadd.f32 %v2231, %v2343
        %2345 = vmatmul.f32.gmra.mxu0 %v2114
        %v2346 = vpop.f32.mrf.mxu0
        %v2347 = vadd.f32 %v2234, %v2346
        %2348 = vmatmul.f32.gmra.mxu0 %v2117
        %v2349 = vpop.f32.mrf.mxu0
        %v2350 = vadd.f32 %v2237, %v2349
        %2351 = vmatmul.f32.gmra.mxu0 %v2120
        %v2352 = vpop.f32.mrf.mxu0
        %v2353 = vadd.f32 %v2240, %v2352
        %2354 = vmatmul.f32.gmra.mxu0 %v2123
        %v2355 = vpop.f32.mrf.mxu0
        %v2356 = vadd.f32 %v2243, %v2355
        %2357 = vmatmul.f32.gmra.mxu0 %v2126
        %v2358 = vpop.f32.mrf.mxu0
        %v2359 = vadd.f32 %v2246, %v2358
        %2360 = vmatmul.f32.gmra.mxu0 %v2129
        %v2361 = vpop.f32.mrf.mxu0
        %v2362 = vadd.f32 %v2249, %v2361
        %2363 = vmatmul.f32.gmra.mxu0 %v2132
        %v2364 = vpop.f32.mrf.mxu0
        %v2365 = vadd.f32 %v2252, %v2364
        %2366 = vmatmul.f32.gmra.mxu0 %v2135
        %v2367 = vpop.f32.mrf.mxu0
        %v2368 = vadd.f32 %v2255, %v2367
        %2369 = vmatmul.f32.gmra.mxu0 %v2138
        %v2370 = vpop.f32.mrf.mxu0
        %v2371 = vadd.f32 %v2258, %v2370
        %2372 = vdwg.mxu0
        %2373 = vmatpush.msra.mxu0 %v2036
        %2374 = vmatpush.msra.mxu0 %v2034
        %2375 = vmatpush.msra.mxu0 %v2032
        %2376 = vmatpush.msra.mxu0 %v2030
        %2377 = vmatpush.msra.mxu0 %v2028
        %2378 = vmatpush.msra.mxu0 %v2026
        %2379 = vmatpush.msra.mxu0 %v2024
        %2380 = vmatpush.msra.mxu0 %v2022
        %2381 = vmatpush.msra.mxu0 %v2020
        %2382 = vmatpush.msra.mxu0 %v2018
        %2383 = vmatpush.msra.mxu0 %v2016
        %2384 = vmatpush.msra.mxu0 %v2014
        %2385 = vmatpush.msra.mxu0 %v2012
        %2386 = vmatpush.msra.mxu0 %v2010
        %2387 = vmatpush.msra.mxu0 %v2008
        %2388 = vmatpush.msra.mxu0 %v2006
        %2389 = vmatmul.f32.gmra.mxu0 %v1877
        %v2390 = vpop.f32.mrf.mxu0
        %v2391 = vadd.f32 0.0, %v2390
        %2392 = vmatmul.f32.gmra.mxu0 %v1879
        %v2393 = vpop.f32.mrf.mxu0
        %v2394 = vadd.f32 0.0, %v2393
        %2395 = vmatmul.f32.gmra.mxu0 %v1881
        %v2396 = vpop.f32.mrf.mxu0
        %v2397 = vadd.f32 0.0, %v2396
        %2398 = vmatmul.f32.gmra.mxu0 %v1883
        %v2399 = vpop.f32.mrf.mxu0
        %v2400 = vadd.f32 0.0, %v2399
        %2401 = vmatmul.f32.gmra.mxu0 %v1885
        %v2402 = vpop.f32.mrf.mxu0
        %v2403 = vadd.f32 0.0, %v2402
        %2404 = vmatmul.f32.gmra.mxu0 %v1887
        %v2405 = vpop.f32.mrf.mxu0
        %v2406 = vadd.f32 0.0, %v2405
        %2407 = vmatmul.f32.gmra.mxu0 %v1889
        %v2408 = vpop.f32.mrf.mxu0
        %v2409 = vadd.f32 0.0, %v2408
        %2410 = vmatmul.f32.gmra.mxu0 %v1891
        %v2411 = vpop.f32.mrf.mxu0
        %v2412 = vadd.f32 0.0, %v2411
        %2413 = vmatmul.f32.gmra.mxu0 %v1893
        %v2414 = vpop.f32.mrf.mxu0
        %v2415 = vadd.f32 0.0, %v2414
        %2416 = vmatmul.f32.gmra.mxu0 %v1895
        %v2417 = vpop.f32.mrf.mxu0
        %v2418 = vadd.f32 0.0, %v2417
        %2419 = vmatmul.f32.gmra.mxu0 %v1897
        %v2420 = vpop.f32.mrf.mxu0
        %v2421 = vadd.f32 0.0, %v2420
        %2422 = vmatmul.f32.gmra.mxu0 %v1899
        %v2423 = vpop.f32.mrf.mxu0
        %v2424 = vadd.f32 0.0, %v2423
        %2425 = vmatmul.f32.gmra.mxu0 %v1901
        %v2426 = vpop.f32.mrf.mxu0
        %v2427 = vadd.f32 0.0, %v2426
        %2428 = vmatmul.f32.gmra.mxu0 %v1903
        %v2429 = vpop.f32.mrf.mxu0
        %v2430 = vadd.f32 0.0, %v2429
        %2431 = vmatmul.f32.gmra.mxu0 %v1905
        %v2432 = vpop.f32.mrf.mxu0
        %v2433 = vadd.f32 0.0, %v2432
        %2434 = vmatmul.f32.gmra.mxu0 %v1907
        %v2435 = vpop.f32.mrf.mxu0
        %v2436 = vadd.f32 0.0, %v2435
        %2437 = vmatmul.f32.gmra.mxu0 %v1909
        %v2438 = vpop.f32.mrf.mxu0
        %v2439 = vadd.f32 0.0, %v2438
        %2440 = vmatmul.f32.gmra.mxu0 %v1911
        %v2441 = vpop.f32.mrf.mxu0
        %v2442 = vadd.f32 0.0, %v2441
        %2443 = vmatmul.f32.gmra.mxu0 %v1913
        %v2444 = vpop.f32.mrf.mxu0
        %v2445 = vadd.f32 0.0, %v2444
        %2446 = vmatmul.f32.gmra.mxu0 %v1915
        %v2447 = vpop.f32.mrf.mxu0
        %v2448 = vadd.f32 0.0, %v2447
        %2449 = vmatmul.f32.gmra.mxu0 %v1917
        %v2450 = vpop.f32.mrf.mxu0
        %v2451 = vadd.f32 0.0, %v2450
        %2452 = vmatmul.f32.gmra.mxu0 %v1919
        %v2453 = vpop.f32.mrf.mxu0
        %v2454 = vadd.f32 0.0, %v2453
        %2455 = vmatmul.f32.gmra.mxu0 %v1921
        %v2456 = vpop.f32.mrf.mxu0
        %v2457 = vadd.f32 0.0, %v2456
        %2458 = vmatmul.f32.gmra.mxu0 %v1923
        %v2459 = vpop.f32.mrf.mxu0
        %v2460 = vadd.f32 0.0, %v2459
        %2461 = vmatmul.f32.gmra.mxu0 %v1925
        %v2462 = vpop.f32.mrf.mxu0
        %v2463 = vadd.f32 0.0, %v2462
        %2464 = vmatmul.f32.gmra.mxu0 %v1927
        %v2465 = vpop.f32.mrf.mxu0
        %v2466 = vadd.f32 0.0, %v2465
        %2467 = vmatmul.f32.gmra.mxu0 %v1929
        %v2468 = vpop.f32.mrf.mxu0
        %v2469 = vadd.f32 0.0, %v2468
        %2470 = vmatmul.f32.gmra.mxu0 %v1931
        %v2471 = vpop.f32.mrf.mxu0
        %v2472 = vadd.f32 0.0, %v2471
        %2473 = vmatmul.f32.gmra.mxu0 %v1933
        %v2474 = vpop.f32.mrf.mxu0
        %v2475 = vadd.f32 0.0, %v2474
        %2476 = vmatmul.f32.gmra.mxu0 %v1935
        %v2477 = vpop.f32.mrf.mxu0
        %v2478 = vadd.f32 0.0, %v2477
        %2479 = vmatmul.f32.gmra.mxu0 %v1937
        %v2480 = vpop.f32.mrf.mxu0
        %v2481 = vadd.f32 0.0, %v2480
        %2482 = vmatmul.f32.gmra.mxu0 %v1939
        %v2483 = vpop.f32.mrf.mxu0
        %v2484 = vadd.f32 0.0, %v2483
        %2485 = vdwg.mxu0
        %2486 = vmatpush.msra.mxu0 0.0
        %2487 = vmatpush.msra.mxu0 0.0
        %2488 = vmatpush.msra.mxu0 0.0
        %2489 = vmatpush.msra.mxu0 0.0
        %2490 = vmatpush.msra.mxu0 0.0
        %2491 = vmatpush.msra.mxu0 0.0
        %2492 = vmatpush.msra.mxu0 0.0
        %2493 = vmatpush.msra.mxu0 0.0
        %2494 = vmatpush.msra.mxu0 0.0
        %2495 = vmatpush.msra.mxu0 0.0
        %2496 = vmatpush.msra.mxu0 0.0
        %2497 = vmatpush.msra.mxu0 0.0
        %2498 = vmatpush.msra.mxu0 0.0
        %2499 = vmatpush.msra.mxu0 %v2145
        %2500 = vmatpush.msra.mxu0 %v2040
        %2501 = vmatpush.msra.mxu0 %v2038
        %2502 = vmatmul.f32.gmra.mxu0 %v2045
        %v2503 = vpop.f32.mrf.mxu0
        %v2504 = vadd.f32 %v2391, %v2503
        %2505 = vmatmul.f32.gmra.mxu0 %v2048
        %v2506 = vpop.f32.mrf.mxu0
        %v2507 = vadd.f32 %v2394, %v2506
        %2508 = vmatmul.f32.gmra.mxu0 %v2051
        %v2509 = vpop.f32.mrf.mxu0
        %v2510 = vadd.f32 %v2397, %v2509
        %2511 = vmatmul.f32.gmra.mxu0 %v2054
        %v2512 = vpop.f32.mrf.mxu0
        %v2513 = vadd.f32 %v2400, %v2512
        %2514 = vmatmul.f32.gmra.mxu0 %v2057
        %v2515 = vpop.f32.mrf.mxu0
        %v2516 = vadd.f32 %v2403, %v2515
        %2517 = vmatmul.f32.gmra.mxu0 %v2060
        %v2518 = vpop.f32.mrf.mxu0
        %v2519 = vadd.f32 %v2406, %v2518
        %2520 = vmatmul.f32.gmra.mxu0 %v2063
        %v2521 = vpop.f32.mrf.mxu0
        %v2522 = vadd.f32 %v2409, %v2521
        %2523 = vmatmul.f32.gmra.mxu0 %v2066
        %v2524 = vpop.f32.mrf.mxu0
        %v2525 = vadd.f32 %v2412, %v2524
        %2526 = vmatmul.f32.gmra.mxu0 %v2069
        %v2527 = vpop.f32.mrf.mxu0
        %v2528 = vadd.f32 %v2415, %v2527
        %2529 = vmatmul.f32.gmra.mxu0 %v2072
        %v2530 = vpop.f32.mrf.mxu0
        %v2531 = vadd.f32 %v2418, %v2530
        %2532 = vmatmul.f32.gmra.mxu0 %v2075
        %v2533 = vpop.f32.mrf.mxu0
        %v2534 = vadd.f32 %v2421, %v2533
        %2535 = vmatmul.f32.gmra.mxu0 %v2078
        %v2536 = vpop.f32.mrf.mxu0
        %v2537 = vadd.f32 %v2424, %v2536
        %2538 = vmatmul.f32.gmra.mxu0 %v2081
        %v2539 = vpop.f32.mrf.mxu0
        %v2540 = vadd.f32 %v2427, %v2539
        %2541 = vmatmul.f32.gmra.mxu0 %v2084
        %v2542 = vpop.f32.mrf.mxu0
        %v2543 = vadd.f32 %v2430, %v2542
        %2544 = vmatmul.f32.gmra.mxu0 %v2087
        %v2545 = vpop.f32.mrf.mxu0
        %v2546 = vadd.f32 %v2433, %v2545
        %2547 = vmatmul.f32.gmra.mxu0 %v2090
        %v2548 = vpop.f32.mrf.mxu0
        %v2549 = vadd.f32 %v2436, %v2548
        %2550 = vmatmul.f32.gmra.mxu0 %v2093
        %v2551 = vpop.f32.mrf.mxu0
        %v2552 = vadd.f32 %v2439, %v2551
        %2553 = vmatmul.f32.gmra.mxu0 %v2096
        %v2554 = vpop.f32.mrf.mxu0
        %v2555 = vadd.f32 %v2442, %v2554
        %2556 = vmatmul.f32.gmra.mxu0 %v2099
        %v2557 = vpop.f32.mrf.mxu0
        %v2558 = vadd.f32 %v2445, %v2557
        %2559 = vmatmul.f32.gmra.mxu0 %v2102
        %v2560 = vpop.f32.mrf.mxu0
        %v2561 = vadd.f32 %v2448, %v2560
        %2562 = vmatmul.f32.gmra.mxu0 %v2105
        %v2563 = vpop.f32.mrf.mxu0
        %v2564 = vadd.f32 %v2451, %v2563
        %2565 = vmatmul.f32.gmra.mxu0 %v2108
        %v2566 = vpop.f32.mrf.mxu0
        %v2567 = vadd.f32 %v2454, %v2566
        %2568 = vmatmul.f32.gmra.mxu0 %v2111
        %v2569 = vpop.f32.mrf.mxu0
        %v2570 = vadd.f32 %v2457, %v2569
        %2571 = vmatmul.f32.gmra.mxu0 %v2114
        %v2572 = vpop.f32.mrf.mxu0
        %v2573 = vadd.f32 %v2460, %v2572
        %2574 = vmatmul.f32.gmra.mxu0 %v2117
        %v2575 = vpop.f32.mrf.mxu0
        %v2576 = vadd.f32 %v2463, %v2575
        %2577 = vmatmul.f32.gmra.mxu0 %v2120
        %v2578 = vpop.f32.mrf.mxu0
        %v2579 = vadd.f32 %v2466, %v2578
        %2580 = vmatmul.f32.gmra.mxu0 %v2123
        %v2581 = vpop.f32.mrf.mxu0
        %v2582 = vadd.f32 %v2469, %v2581
        %2583 = vmatmul.f32.gmra.mxu0 %v2126
        %v2584 = vpop.f32.mrf.mxu0
        %v2585 = vadd.f32 %v2472, %v2584
        %2586 = vmatmul.f32.gmra.mxu0 %v2129
        %v2587 = vpop.f32.mrf.mxu0
        %v2588 = vadd.f32 %v2475, %v2587
        %2589 = vmatmul.f32.gmra.mxu0 %v2132
        %v2590 = vpop.f32.mrf.mxu0
        %v2591 = vadd.f32 %v2478, %v2590
        %2592 = vmatmul.f32.gmra.mxu0 %v2135
        %v2593 = vpop.f32.mrf.mxu0
        %v2594 = vadd.f32 %v2481, %v2593
        %2595 = vmatmul.f32.gmra.mxu0 %v2138
        %v2596 = vpop.f32.mrf.mxu0
        %v2597 = vadd.f32 %v2484, %v2596
        %2598 = vdwg.mxu0
        %v2600 = vsel %vm2043, %v1942, 0
        %v2603 = vsel %vm2043, %v1944, 0
        %v2606 = vsel %vm2043, %v1946, 0
        %v2609 = vsel %vm2043, %v1948, 0
        %v2612 = vsel %vm2043, %v1950, 0
        %v2615 = vsel %vm2043, %v1952, 0
        %v2618 = vsel %vm2043, %v1954, 0
        %v2621 = vsel %vm2043, %v1956, 0
        %v2624 = vsel %vm2043, %v1958, 0
        %v2627 = vsel %vm2043, %v1960, 0
        %v2630 = vsel %vm2043, %v1962, 0
        %v2633 = vsel %vm2043, %v1964, 0
        %v2636 = vsel %vm2043, %v1966, 0
        %v2639 = vsel %vm2043, %v1968, 0
        %v2642 = vsel %vm2043, %v1970, 0
        %v2645 = vsel %vm2043, %v1972, 0
        %v2648 = vsel %vm2043, %v1974, 0
        %v2651 = vsel %vm2043, %v1976, 0
        %v2654 = vsel %vm2043, %v1978, 0
        %v2657 = vsel %vm2043, %v1980, 0
        %v2660 = vsel %vm2043, %v1982, 0
        %v2663 = vsel %vm2043, %v1984, 0
        %v2666 = vsel %vm2043, %v1986, 0
        %v2669 = vsel %vm2043, %v1988, 0
        %v2672 = vsel %vm2043, %v1990, 0
        %v2675 = vsel %vm2043, %v1992, 0
        %v2678 = vsel %vm2043, %v1994, 0
        %v2681 = vsel %vm2043, %v1996, 0
        %v2684 = vsel %vm2043, %v1998, 0
        %v2687 = vsel %vm2043, %v2000, 0
        %v2690 = vsel %vm2043, %v2002, 0
        %v2693 = vsel %vm2043, %v2004, 0
        %2695 = vmatpush.msra.mxu0 %v2035
        %2696 = vmatpush.msra.mxu0 %v2033
        %2697 = vmatpush.msra.mxu0 %v2031
        %2698 = vmatpush.msra.mxu0 %v2029
        %2699 = vmatpush.msra.mxu0 %v2027
        %2700 = vmatpush.msra.mxu0 %v2025
        %2701 = vmatpush.msra.mxu0 %v2023
        %2702 = vmatpush.msra.mxu0 %v2021
        %2703 = vmatpush.msra.mxu0 %v2019
        %2704 = vmatpush.msra.mxu0 %v2017
        %2705 = vmatpush.msra.mxu0 %v2015
        %2706 = vmatpush.msra.mxu0 %v2013
        %2707 = vmatpush.msra.mxu0 %v2011
        %2708 = vmatpush.msra.mxu0 %v2009
        %2709 = vmatpush.msra.mxu0 %v2007
        %2710 = vmatpush.msra.mxu0 %v2005
        %2711 = vmatmul.f32.gmra.mxu0 %v1941
        %v2712 = vpop.f32.mrf.mxu0
        %v2713 = vadd.f32 0.0, %v2712
        %2714 = vmatmul.f32.gmra.mxu0 %v1943
        %v2715 = vpop.f32.mrf.mxu0
        %v2716 = vadd.f32 0.0, %v2715
        %2717 = vmatmul.f32.gmra.mxu0 %v1945
        %v2718 = vpop.f32.mrf.mxu0
        %v2719 = vadd.f32 0.0, %v2718
        %2720 = vmatmul.f32.gmra.mxu0 %v1947
        %v2721 = vpop.f32.mrf.mxu0
        %v2722 = vadd.f32 0.0, %v2721
        %2723 = vmatmul.f32.gmra.mxu0 %v1949
        %v2724 = vpop.f32.mrf.mxu0
        %v2725 = vadd.f32 0.0, %v2724
        %2726 = vmatmul.f32.gmra.mxu0 %v1951
        %v2727 = vpop.f32.mrf.mxu0
        %v2728 = vadd.f32 0.0, %v2727
        %2729 = vmatmul.f32.gmra.mxu0 %v1953
        %v2730 = vpop.f32.mrf.mxu0
        %v2731 = vadd.f32 0.0, %v2730
        %2732 = vmatmul.f32.gmra.mxu0 %v1955
        %v2733 = vpop.f32.mrf.mxu0
        %v2734 = vadd.f32 0.0, %v2733
        %2735 = vmatmul.f32.gmra.mxu0 %v1957
        %v2736 = vpop.f32.mrf.mxu0
        %v2737 = vadd.f32 0.0, %v2736
        %2738 = vmatmul.f32.gmra.mxu0 %v1959
        %v2739 = vpop.f32.mrf.mxu0
        %v2740 = vadd.f32 0.0, %v2739
        %2741 = vmatmul.f32.gmra.mxu0 %v1961
        %v2742 = vpop.f32.mrf.mxu0
        %v2743 = vadd.f32 0.0, %v2742
        %2744 = vmatmul.f32.gmra.mxu0 %v1963
        %v2745 = vpop.f32.mrf.mxu0
        %v2746 = vadd.f32 0.0, %v2745
        %2747 = vmatmul.f32.gmra.mxu0 %v1965
        %v2748 = vpop.f32.mrf.mxu0
        %v2749 = vadd.f32 0.0, %v2748
        %2750 = vmatmul.f32.gmra.mxu0 %v1967
        %v2751 = vpop.f32.mrf.mxu0
        %v2752 = vadd.f32 0.0, %v2751
        %2753 = vmatmul.f32.gmra.mxu0 %v1969
        %v2754 = vpop.f32.mrf.mxu0
        %v2755 = vadd.f32 0.0, %v2754
        %2756 = vmatmul.f32.gmra.mxu0 %v1971
        %v2757 = vpop.f32.mrf.mxu0
        %v2758 = vadd.f32 0.0, %v2757
        %2759 = vmatmul.f32.gmra.mxu0 %v1973
        %v2760 = vpop.f32.mrf.mxu0
        %v2761 = vadd.f32 0.0, %v2760
        %2762 = vmatmul.f32.gmra.mxu0 %v1975
        %v2763 = vpop.f32.mrf.mxu0
        %v2764 = vadd.f32 0.0, %v2763
        %2765 = vmatmul.f32.gmra.mxu0 %v1977
        %v2766 = vpop.f32.mrf.mxu0
        %v2767 = vadd.f32 0.0, %v2766
        %2768 = vmatmul.f32.gmra.mxu0 %v1979
        %v2769 = vpop.f32.mrf.mxu0
        %v2770 = vadd.f32 0.0, %v2769
        %2771 = vmatmul.f32.gmra.mxu0 %v1981
        %v2772 = vpop.f32.mrf.mxu0
        %v2773 = vadd.f32 0.0, %v2772
        %2774 = vmatmul.f32.gmra.mxu0 %v1983
        %v2775 = vpop.f32.mrf.mxu0
        %v2776 = vadd.f32 0.0, %v2775
        %2777 = vmatmul.f32.gmra.mxu0 %v1985
        %v2778 = vpop.f32.mrf.mxu0
        %v2779 = vadd.f32 0.0, %v2778
        %2780 = vmatmul.f32.gmra.mxu0 %v1987
        %v2781 = vpop.f32.mrf.mxu0
        %v2782 = vadd.f32 0.0, %v2781
        %2783 = vmatmul.f32.gmra.mxu0 %v1989
        %v2784 = vpop.f32.mrf.mxu0
        %v2785 = vadd.f32 0.0, %v2784
        %2786 = vmatmul.f32.gmra.mxu0 %v1991
        %v2787 = vpop.f32.mrf.mxu0
        %v2788 = vadd.f32 0.0, %v2787
        %2789 = vmatmul.f32.gmra.mxu0 %v1993
        %v2790 = vpop.f32.mrf.mxu0
        %v2791 = vadd.f32 0.0, %v2790
        %2792 = vmatmul.f32.gmra.mxu0 %v1995
        %v2793 = vpop.f32.mrf.mxu0
        %v2794 = vadd.f32 0.0, %v2793
        %2795 = vmatmul.f32.gmra.mxu0 %v1997
        %v2796 = vpop.f32.mrf.mxu0
        %v2797 = vadd.f32 0.0, %v2796
        %2798 = vmatmul.f32.gmra.mxu0 %v1999
        %v2799 = vpop.f32.mrf.mxu0
        %v2800 = vadd.f32 0.0, %v2799
        %2801 = vmatmul.f32.gmra.mxu0 %v2001
        %v2802 = vpop.f32.mrf.mxu0
        %v2803 = vadd.f32 0.0, %v2802
        %2804 = vmatmul.f32.gmra.mxu0 %v2003
        %v2805 = vpop.f32.mrf.mxu0
        %v2806 = vadd.f32 0.0, %v2805
        %2807 = vdwg.mxu0
        %2808 = vmatpush.msra.mxu0 0.0
        %2809 = vmatpush.msra.mxu0 0.0
        %2810 = vmatpush.msra.mxu0 0.0
        %2811 = vmatpush.msra.mxu0 0.0
        %2812 = vmatpush.msra.mxu0 0.0
        %2813 = vmatpush.msra.mxu0 0.0
        %2814 = vmatpush.msra.mxu0 0.0
        %2815 = vmatpush.msra.mxu0 0.0
        %2816 = vmatpush.msra.mxu0 0.0
        %2817 = vmatpush.msra.mxu0 0.0
        %2818 = vmatpush.msra.mxu0 0.0
        %2819 = vmatpush.msra.mxu0 0.0
        %2820 = vmatpush.msra.mxu0 0.0
        %2821 = vmatpush.msra.mxu0 %v2142
        %2822 = vmatpush.msra.mxu0 %v2039
        %2823 = vmatpush.msra.mxu0 %v2037
        %2824 = vmatmul.f32.gmra.mxu0 %v2600
        %v2825 = vpop.f32.mrf.mxu0
        %v2826 = vadd.f32 %v2713, %v2825
        %2827 = vmatmul.f32.gmra.mxu0 %v2603
        %v2828 = vpop.f32.mrf.mxu0
        %v2829 = vadd.f32 %v2716, %v2828
        %2830 = vmatmul.f32.gmra.mxu0 %v2606
        %v2831 = vpop.f32.mrf.mxu0
        %v2832 = vadd.f32 %v2719, %v2831
        %2833 = vmatmul.f32.gmra.mxu0 %v2609
        %v2834 = vpop.f32.mrf.mxu0
        %v2835 = vadd.f32 %v2722, %v2834
        %2836 = vmatmul.f32.gmra.mxu0 %v2612
        %v2837 = vpop.f32.mrf.mxu0
        %v2838 = vadd.f32 %v2725, %v2837
        %2839 = vmatmul.f32.gmra.mxu0 %v2615
        %v2840 = vpop.f32.mrf.mxu0
        %v2841 = vadd.f32 %v2728, %v2840
        %2842 = vmatmul.f32.gmra.mxu0 %v2618
        %v2843 = vpop.f32.mrf.mxu0
        %v2844 = vadd.f32 %v2731, %v2843
        %2845 = vmatmul.f32.gmra.mxu0 %v2621
        %v2846 = vpop.f32.mrf.mxu0
        %v2847 = vadd.f32 %v2734, %v2846
        %2848 = vmatmul.f32.gmra.mxu0 %v2624
        %v2849 = vpop.f32.mrf.mxu0
        %v2850 = vadd.f32 %v2737, %v2849
        %2851 = vmatmul.f32.gmra.mxu0 %v2627
        %v2852 = vpop.f32.mrf.mxu0
        %v2853 = vadd.f32 %v2740, %v2852
        %2854 = vmatmul.f32.gmra.mxu0 %v2630
        %v2855 = vpop.f32.mrf.mxu0
        %v2856 = vadd.f32 %v2743, %v2855
        %2857 = vmatmul.f32.gmra.mxu0 %v2633
        %v2858 = vpop.f32.mrf.mxu0
        %v2859 = vadd.f32 %v2746, %v2858
        %2860 = vmatmul.f32.gmra.mxu0 %v2636
        %v2861 = vpop.f32.mrf.mxu0
        %v2862 = vadd.f32 %v2749, %v2861
        %2863 = vmatmul.f32.gmra.mxu0 %v2639
        %v2864 = vpop.f32.mrf.mxu0
        %v2865 = vadd.f32 %v2752, %v2864
        %2866 = vmatmul.f32.gmra.mxu0 %v2642
        %v2867 = vpop.f32.mrf.mxu0
        %v2868 = vadd.f32 %v2755, %v2867
        %2869 = vmatmul.f32.gmra.mxu0 %v2645
        %v2870 = vpop.f32.mrf.mxu0
        %v2871 = vadd.f32 %v2758, %v2870
        %2872 = vmatmul.f32.gmra.mxu0 %v2648
        %v2873 = vpop.f32.mrf.mxu0
        %v2874 = vadd.f32 %v2761, %v2873
        %2875 = vmatmul.f32.gmra.mxu0 %v2651
        %v2876 = vpop.f32.mrf.mxu0
        %v2877 = vadd.f32 %v2764, %v2876
        %2878 = vmatmul.f32.gmra.mxu0 %v2654
        %v2879 = vpop.f32.mrf.mxu0
        %v2880 = vadd.f32 %v2767, %v2879
        %2881 = vmatmul.f32.gmra.mxu0 %v2657
        %v2882 = vpop.f32.mrf.mxu0
        %v2883 = vadd.f32 %v2770, %v2882
        %2884 = vmatmul.f32.gmra.mxu0 %v2660
        %v2885 = vpop.f32.mrf.mxu0
        %v2886 = vadd.f32 %v2773, %v2885
        %2887 = vmatmul.f32.gmra.mxu0 %v2663
        %v2888 = vpop.f32.mrf.mxu0
        %v2889 = vadd.f32 %v2776, %v2888
        %2890 = vmatmul.f32.gmra.mxu0 %v2666
        %v2891 = vpop.f32.mrf.mxu0
        %v2892 = vadd.f32 %v2779, %v2891
        %2893 = vmatmul.f32.gmra.mxu0 %v2669
        %v2894 = vpop.f32.mrf.mxu0
        %v2895 = vadd.f32 %v2782, %v2894
        %2896 = vmatmul.f32.gmra.mxu0 %v2672
        %v2897 = vpop.f32.mrf.mxu0
        %v2898 = vadd.f32 %v2785, %v2897
        %2899 = vmatmul.f32.gmra.mxu0 %v2675
        %v2900 = vpop.f32.mrf.mxu0
        %v2901 = vadd.f32 %v2788, %v2900
        %2902 = vmatmul.f32.gmra.mxu0 %v2678
        %v2903 = vpop.f32.mrf.mxu0
        %v2904 = vadd.f32 %v2791, %v2903
        %2905 = vmatmul.f32.gmra.mxu0 %v2681
        %v2906 = vpop.f32.mrf.mxu0
        %v2907 = vadd.f32 %v2794, %v2906
        %2908 = vmatmul.f32.gmra.mxu0 %v2684
        %v2909 = vpop.f32.mrf.mxu0
        %v2910 = vadd.f32 %v2797, %v2909
        %2911 = vmatmul.f32.gmra.mxu0 %v2687
        %v2912 = vpop.f32.mrf.mxu0
        %v2913 = vadd.f32 %v2800, %v2912
        %2914 = vmatmul.f32.gmra.mxu0 %v2690
        %v2915 = vpop.f32.mrf.mxu0
        %v2916 = vadd.f32 %v2803, %v2915
        %2917 = vmatmul.f32.gmra.mxu0 %v2693
        %v2918 = vpop.f32.mrf.mxu0
        %v2919 = vadd.f32 %v2806, %v2918
        %2920 = vdwg.mxu0
        %v2921 = vperm.slane %v528, 0
        %v2922 = vadd.f32 %v2278, %v2921
        %v2923 = vadd.f32 %v2281, %v2921
        %v2924 = vadd.f32 %v2284, %v2921
        %v2925 = vadd.f32 %v2287, %v2921
        %v2926 = vadd.f32 %v2290, %v2921
        %v2927 = vadd.f32 %v2293, %v2921
        %v2928 = vadd.f32 %v2296, %v2921
        %v2929 = vadd.f32 %v2299, %v2921
        %v2930 = vadd.f32 %v2302, %v2921
        %v2931 = vadd.f32 %v2305, %v2921
        %v2932 = vadd.f32 %v2308, %v2921
        %v2933 = vadd.f32 %v2311, %v2921
        %v2934 = vadd.f32 %v2314, %v2921
        %v2935 = vadd.f32 %v2317, %v2921
        %v2936 = vadd.f32 %v2320, %v2921
        %v2937 = vadd.f32 %v2323, %v2921
        %v2938 = vadd.f32 %v2326, %v2921
        %v2939 = vadd.f32 %v2329, %v2921
        %v2940 = vadd.f32 %v2332, %v2921
        %v2941 = vadd.f32 %v2335, %v2921
        %v2942 = vadd.f32 %v2338, %v2921
        %v2943 = vadd.f32 %v2341, %v2921
        %v2944 = vadd.f32 %v2344, %v2921
        %v2945 = vadd.f32 %v2347, %v2921
        %v2946 = vadd.f32 %v2350, %v2921
        %v2947 = vadd.f32 %v2353, %v2921
        %v2948 = vadd.f32 %v2356, %v2921
        %v2949 = vadd.f32 %v2359, %v2921
        %v2950 = vadd.f32 %v2362, %v2921
        %v2951 = vadd.f32 %v2365, %v2921
        %v2952 = vadd.f32 %v2368, %v2921
        %v2953 = vadd.f32 %v2371, %v2921
        %v2954 = vmax.f32 %v2922, 0.0
        %v2955 = vmax.f32 %v2923, 0.0
        %v2956 = vmax.f32 %v2924, 0.0
        %v2957 = vmax.f32 %v2925, 0.0
        %v2958 = vmax.f32 %v2926, 0.0
        %v2959 = vmax.f32 %v2927, 0.0
        %v2960 = vmax.f32 %v2928, 0.0
        %v2961 = vmax.f32 %v2929, 0.0
        %v2962 = vmax.f32 %v2930, 0.0
        %v2963 = vmax.f32 %v2931, 0.0
        %v2964 = vmax.f32 %v2932, 0.0
        %v2965 = vmax.f32 %v2933, 0.0
        %v2966 = vmax.f32 %v2934, 0.0
        %v2967 = vmax.f32 %v2935, 0.0
        %v2968 = vmax.f32 %v2936, 0.0
        %v2969 = vmax.f32 %v2937, 0.0
        %v2970 = vmax.f32 %v2938, 0.0
        %v2971 = vmax.f32 %v2939, 0.0
        %v2972 = vmax.f32 %v2940, 0.0
        %v2973 = vmax.f32 %v2941, 0.0
        %v2974 = vmax.f32 %v2942, 0.0
        %v2975 = vmax.f32 %v2943, 0.0
        %v2976 = vmax.f32 %v2944, 0.0
        %v2977 = vmax.f32 %v2945, 0.0
        %v2978 = vmax.f32 %v2946, 0.0
        %v2979 = vmax.f32 %v2947, 0.0
        %v2980 = vmax.f32 %v2948, 0.0
        %v2981 = vmax.f32 %v2949, 0.0
        %v2982 = vmax.f32 %v2950, 0.0
        %v2983 = vmax.f32 %v2951, 0.0
        %v2984 = vmax.f32 %v2952, 0.0
        %v2985 = vmax.f32 %v2953, 0.0
        %v2986 = vadd.f32 %v2504, %v2826
        %v2987 = vadd.f32 %v2507, %v2829
        %v2988 = vadd.f32 %v2510, %v2832
        %v2989 = vadd.f32 %v2513, %v2835
        %v2990 = vadd.f32 %v2516, %v2838
        %v2991 = vadd.f32 %v2519, %v2841
        %v2992 = vadd.f32 %v2522, %v2844
        %v2993 = vadd.f32 %v2525, %v2847
        %v2994 = vadd.f32 %v2528, %v2850
        %v2995 = vadd.f32 %v2531, %v2853
        %v2996 = vadd.f32 %v2534, %v2856
        %v2997 = vadd.f32 %v2537, %v2859
        %v2998 = vadd.f32 %v2540, %v2862
        %v2999 = vadd.f32 %v2543, %v2865
        %v3000 = vadd.f32 %v2546, %v2868
        %v3001 = vadd.f32 %v2549, %v2871
        %v3002 = vadd.f32 %v2552, %v2874
        %v3003 = vadd.f32 %v2555, %v2877
        %v3004 = vadd.f32 %v2558, %v2880
        %v3005 = vadd.f32 %v2561, %v2883
        %v3006 = vadd.f32 %v2564, %v2886
        %v3007 = vadd.f32 %v2567, %v2889
        %v3008 = vadd.f32 %v2570, %v2892
        %v3009 = vadd.f32 %v2573, %v2895
        %v3010 = vadd.f32 %v2576, %v2898
        %v3011 = vadd.f32 %v2579, %v2901
        %v3012 = vadd.f32 %v2582, %v2904
        %v3013 = vadd.f32 %v2585, %v2907
        %v3014 = vadd.f32 %v2588, %v2910
        %v3015 = vadd.f32 %v2591, %v2913
        %v3016 = vadd.f32 %v2594, %v2916
        %v3017 = vadd.f32 %v2597, %v2919
        %v3018 = vadd.f32 %v2986, %v2921
        %v3019 = vadd.f32 %v2987, %v2921
        %v3020 = vadd.f32 %v2988, %v2921
        %v3021 = vadd.f32 %v2989, %v2921
        %v3022 = vadd.f32 %v2990, %v2921
        %v3023 = vadd.f32 %v2991, %v2921
        %v3024 = vadd.f32 %v2992, %v2921
        %v3025 = vadd.f32 %v2993, %v2921
        %v3026 = vadd.f32 %v2994, %v2921
        %v3027 = vadd.f32 %v2995, %v2921
        %v3028 = vadd.f32 %v2996, %v2921
        %v3029 = vadd.f32 %v2997, %v2921
        %v3030 = vadd.f32 %v2998, %v2921
        %v3031 = vadd.f32 %v2999, %v2921
        %v3032 = vadd.f32 %v3000, %v2921
        %v3033 = vadd.f32 %v3001, %v2921
        %v3034 = vadd.f32 %v3002, %v2921
        %v3035 = vadd.f32 %v3003, %v2921
        %v3036 = vadd.f32 %v3004, %v2921
        %v3037 = vadd.f32 %v3005, %v2921
        %v3038 = vadd.f32 %v3006, %v2921
        %v3039 = vadd.f32 %v3007, %v2921
        %v3040 = vadd.f32 %v3008, %v2921
        %v3041 = vadd.f32 %v3009, %v2921
        %v3042 = vadd.f32 %v3010, %v2921
        %v3043 = vadd.f32 %v3011, %v2921
        %v3044 = vadd.f32 %v3012, %v2921
        %v3045 = vadd.f32 %v3013, %v2921
        %v3046 = vadd.f32 %v3014, %v2921
        %v3047 = vadd.f32 %v3015, %v2921
        %v3048 = vadd.f32 %v3016, %v2921
        %v3049 = vadd.f32 %v3017, %v2921
        %v3050 = vmax.f32 %v3018, 0.0
        %v3051 = vmax.f32 %v3019, 0.0
        %v3052 = vmax.f32 %v3020, 0.0
        %v3053 = vmax.f32 %v3021, 0.0
        %v3054 = vmax.f32 %v3022, 0.0
        %v3055 = vmax.f32 %v3023, 0.0
        %v3056 = vmax.f32 %v3024, 0.0
        %v3057 = vmax.f32 %v3025, 0.0
        %v3058 = vmax.f32 %v3026, 0.0
        %v3059 = vmax.f32 %v3027, 0.0
        %v3060 = vmax.f32 %v3028, 0.0
        %v3061 = vmax.f32 %v3029, 0.0
        %v3062 = vmax.f32 %v3030, 0.0
        %v3063 = vmax.f32 %v3031, 0.0
        %v3064 = vmax.f32 %v3032, 0.0
        %v3065 = vmax.f32 %v3033, 0.0
        %v3066 = vmax.f32 %v3034, 0.0
        %v3067 = vmax.f32 %v3035, 0.0
        %v3068 = vmax.f32 %v3036, 0.0
        %v3069 = vmax.f32 %v3037, 0.0
        %v3070 = vmax.f32 %v3038, 0.0
        %v3071 = vmax.f32 %v3039, 0.0
        %v3072 = vmax.f32 %v3040, 0.0
        %v3073 = vmax.f32 %v3041, 0.0
        %v3074 = vmax.f32 %v3042, 0.0
        %v3075 = vmax.f32 %v3043, 0.0
        %v3076 = vmax.f32 %v3044, 0.0
        %v3077 = vmax.f32 %v3045, 0.0
        %v3078 = vmax.f32 %v3046, 0.0
        %v3079 = vmax.f32 %v3047, 0.0
        %v3080 = vmax.f32 %v3048, 0.0
        %v3081 = vmax.f32 %v3049, 0.0
        %v3082 = vmax.f32 %v2954, %v3050
        %v3083 = vmax.f32 %v2955, %v3051
        %v3084 = vmax.f32 %v2956, %v3052
        %v3085 = vmax.f32 %v2957, %v3053
        %v3086 = vmax.f32 %v2958, %v3054
        %v3087 = vmax.f32 %v2959, %v3055
        %v3088 = vmax.f32 %v2960, %v3056
        %v3089 = vmax.f32 %v2961, %v3057
        %v3090 = vmax.f32 %v2962, %v3058
        %v3091 = vmax.f32 %v2963, %v3059
        %v3092 = vmax.f32 %v2964, %v3060
        %v3093 = vmax.f32 %v2965, %v3061
        %v3094 = vmax.f32 %v2966, %v3062
        %v3095 = vmax.f32 %v2967, %v3063
        %v3096 = vmax.f32 %v2968, %v3064
        %v3097 = vmax.f32 %v2969, %v3065
        %v3098 = vmax.f32 %v2970, %v3066
        %v3099 = vmax.f32 %v2971, %v3067
        %v3100 = vmax.f32 %v2972, %v3068
        %v3101 = vmax.f32 %v2973, %v3069
        %v3102 = vmax.f32 %v2974, %v3070
        %v3103 = vmax.f32 %v2975, %v3071
        %v3104 = vmax.f32 %v2976, %v3072
        %v3105 = vmax.f32 %v2977, %v3073
        %v3106 = vmax.f32 %v2978, %v3074
        %v3107 = vmax.f32 %v2979, %v3075
        %v3108 = vmax.f32 %v2980, %v3076
        %v3109 = vmax.f32 %v2981, %v3077
        %v3110 = vmax.f32 %v2982, %v3078
        %v3111 = vmax.f32 %v2983, %v3079
        %v3112 = vmax.f32 %v2984, %v3080
        %v3113 = vmax.f32 %v2985, %v3081
        %v3114 = vld [vmem:[%s3] sm:$0xff]
        %v3115 = vld [vmem:[%s3 + $0x8] sm:$0xff]
        %v3116 = vld [vmem:[%s3 + $0x10] sm:$0xff]
        %v3117 = vld [vmem:[%s3 + $0x18] sm:$0xff]
        %v3118 = vld [vmem:[%s3 + $0x20] sm:$0xff]
        %v3119 = vld [vmem:[%s3 + $0x28] sm:$0xff]
        %v3120 = vld [vmem:[%s3 + $0x30] sm:$0xff]
        %v3121 = vld [vmem:[%s3 + $0x38] sm:$0xff]
        %v3122 = vld [vmem:[%s3 + $0x40] sm:$0xff]
        %v3123 = vld [vmem:[%s3 + $0x48] sm:$0xff]
        %v3124 = vld [vmem:[%s3 + $0x50] sm:$0xff]
        %v3125 = vld [vmem:[%s3 + $0x58] sm:$0xff]
        %v3126 = vld [vmem:[%s3 + $0x60] sm:$0xff]
        %v3127 = vld [vmem:[%s3 + $0x68] sm:$0xff]
        %v3128 = vld [vmem:[%s3 + $0x70] sm:$0xff]
        %v3129 = vld [vmem:[%s3 + $0x78] sm:$0xff]
        %v3130 = vperm.slane %v529, 0
        %3131 = vmatpush.msra.mxu0 %v3129
        %3132 = vmatpush.msra.mxu0 %v3128
        %3133 = vmatpush.msra.mxu0 %v3127
        %3134 = vmatpush.msra.mxu0 %v3126
        %3135 = vmatpush.msra.mxu0 %v3125
        %3136 = vmatpush.msra.mxu0 %v3124
        %3137 = vmatpush.msra.mxu0 %v3123
        %3138 = vmatpush.msra.mxu0 %v3122
        %3139 = vmatpush.msra.mxu0 %v3121
        %3140 = vmatpush.msra.mxu0 %v3120
        %3141 = vmatpush.msra.mxu0 %v3119
        %3142 = vmatpush.msra.mxu0 %v3118
        %3143 = vmatpush.msra.mxu0 %v3117
        %3144 = vmatpush.msra.mxu0 %v3116
        %3145 = vmatpush.msra.mxu0 %v3115
        %3146 = vmatpush.msra.mxu0 %v3114
        %3147 = vmatmul.f32.gmra.mxu0 %v3082
        %v3148 = vpop.f32.mrf.mxu0
        %v3149 = vadd.f32 %v3130, %v3148
        %3150 = vmatmul.f32.gmra.mxu0 %v3083
        %v3151 = vpop.f32.mrf.mxu0
        %v3152 = vadd.f32 %v3130, %v3151
        %3153 = vmatmul.f32.gmra.mxu0 %v3084
        %v3154 = vpop.f32.mrf.mxu0
        %v3155 = vadd.f32 %v3130, %v3154
        %3156 = vmatmul.f32.gmra.mxu0 %v3085
        %v3157 = vpop.f32.mrf.mxu0
        %v3158 = vadd.f32 %v3130, %v3157
        %3159 = vmatmul.f32.gmra.mxu0 %v3086
        %v3160 = vpop.f32.mrf.mxu0
        %v3161 = vadd.f32 %v3130, %v3160
        %3162 = vmatmul.f32.gmra.mxu0 %v3087
        %v3163 = vpop.f32.mrf.mxu0
        %v3164 = vadd.f32 %v3130, %v3163
        %3165 = vmatmul.f32.gmra.mxu0 %v3088
        %v3166 = vpop.f32.mrf.mxu0
        %v3167 = vadd.f32 %v3130, %v3166
        %3168 = vmatmul.f32.gmra.mxu0 %v3089
        %v3169 = vpop.f32.mrf.mxu0
        %v3170 = vadd.f32 %v3130, %v3169
        %3171 = vmatmul.f32.gmra.mxu0 %v3090
        %v3172 = vpop.f32.mrf.mxu0
        %v3173 = vadd.f32 %v3130, %v3172
        %3174 = vmatmul.f32.gmra.mxu0 %v3091
        %v3175 = vpop.f32.mrf.mxu0
        %v3176 = vadd.f32 %v3130, %v3175
        %3177 = vmatmul.f32.gmra.mxu0 %v3092
        %v3178 = vpop.f32.mrf.mxu0
        %v3179 = vadd.f32 %v3130, %v3178
        %3180 = vmatmul.f32.gmra.mxu0 %v3093
        %v3181 = vpop.f32.mrf.mxu0
        %v3182 = vadd.f32 %v3130, %v3181
        %3183 = vmatmul.f32.gmra.mxu0 %v3094
        %v3184 = vpop.f32.mrf.mxu0
        %v3185 = vadd.f32 %v3130, %v3184
        %3186 = vmatmul.f32.gmra.mxu0 %v3095
        %v3187 = vpop.f32.mrf.mxu0
        %v3188 = vadd.f32 %v3130, %v3187
        %3189 = vmatmul.f32.gmra.mxu0 %v3096
        %v3190 = vpop.f32.mrf.mxu0
        %v3191 = vadd.f32 %v3130, %v3190
        %3192 = vmatmul.f32.gmra.mxu0 %v3097
        %v3193 = vpop.f32.mrf.mxu0
        %v3194 = vadd.f32 %v3130, %v3193
        %3195 = vmatmul.f32.gmra.mxu0 %v3098
        %v3196 = vpop.f32.mrf.mxu0
        %v3197 = vadd.f32 %v3130, %v3196
        %3198 = vmatmul.f32.gmra.mxu0 %v3099
        %v3199 = vpop.f32.mrf.mxu0
        %v3200 = vadd.f32 %v3130, %v3199
        %3201 = vmatmul.f32.gmra.mxu0 %v3100
        %v3202 = vpop.f32.mrf.mxu0
        %v3203 = vadd.f32 %v3130, %v3202
        %3204 = vmatmul.f32.gmra.mxu0 %v3101
        %v3205 = vpop.f32.mrf.mxu0
        %v3206 = vadd.f32 %v3130, %v3205
        %3207 = vmatmul.f32.gmra.mxu0 %v3102
        %v3208 = vpop.f32.mrf.mxu0
        %v3209 = vadd.f32 %v3130, %v3208
        %3210 = vmatmul.f32.gmra.mxu0 %v3103
        %v3211 = vpop.f32.mrf.mxu0
        %v3212 = vadd.f32 %v3130, %v3211
        %3213 = vmatmul.f32.gmra.mxu0 %v3104
        %v3214 = vpop.f32.mrf.mxu0
        %v3215 = vadd.f32 %v3130, %v3214
        %3216 = vmatmul.f32.gmra.mxu0 %v3105
        %v3217 = vpop.f32.mrf.mxu0
        %v3218 = vadd.f32 %v3130, %v3217
        %3219 = vmatmul.f32.gmra.mxu0 %v3106
        %v3220 = vpop.f32.mrf.mxu0
        %v3221 = vadd.f32 %v3130, %v3220
        %3222 = vmatmul.f32.gmra.mxu0 %v3107
        %v3223 = vpop.f32.mrf.mxu0
        %v3224 = vadd.f32 %v3130, %v3223
        %3225 = vmatmul.f32.gmra.mxu0 %v3108
        %v3226 = vpop.f32.mrf.mxu0
        %v3227 = vadd.f32 %v3130, %v3226
        %3228 = vmatmul.f32.gmra.mxu0 %v3109
        %v3229 = vpop.f32.mrf.mxu0
        %v3230 = vadd.f32 %v3130, %v3229
        %3231 = vmatmul.f32.gmra.mxu0 %v3110
        %v3232 = vpop.f32.mrf.mxu0
        %v3233 = vadd.f32 %v3130, %v3232
        %3234 = vmatmul.f32.gmra.mxu0 %v3111
        %v3235 = vpop.f32.mrf.mxu0
        %v3236 = vadd.f32 %v3130, %v3235
        %3237 = vmatmul.f32.gmra.mxu0 %v3112
        %v3238 = vpop.f32.mrf.mxu0
        %v3239 = vadd.f32 %v3130, %v3238
        %3240 = vmatmul.f32.gmra.mxu0 %v3113
        %v3241 = vpop.f32.mrf.mxu0
        %v3242 = vadd.f32 %v3130, %v3241
        %3243 = vdwg.mxu0
        %v3244 = vmax.f32 %v3149, 0.0
        %v3245 = vmax.f32 %v3152, 0.0
        %v3246 = vmax.f32 %v3155, 0.0
        %v3247 = vmax.f32 %v3158, 0.0
        %v3248 = vmax.f32 %v3161, 0.0
        %v3249 = vmax.f32 %v3164, 0.0
        %v3250 = vmax.f32 %v3167, 0.0
        %v3251 = vmax.f32 %v3170, 0.0
        %v3252 = vmax.f32 %v3173, 0.0
        %v3253 = vmax.f32 %v3176, 0.0
        %v3254 = vmax.f32 %v3179, 0.0
        %v3255 = vmax.f32 %v3182, 0.0
        %v3256 = vmax.f32 %v3185, 0.0
        %v3257 = vmax.f32 %v3188, 0.0
        %v3258 = vmax.f32 %v3191, 0.0
        %v3259 = vmax.f32 %v3194, 0.0
        %v3260 = vmax.f32 %v3197, 0.0
        %v3261 = vmax.f32 %v3200, 0.0
        %v3262 = vmax.f32 %v3203, 0.0
        %v3263 = vmax.f32 %v3206, 0.0
        %v3264 = vmax.f32 %v3209, 0.0
        %v3265 = vmax.f32 %v3212, 0.0
        %v3266 = vmax.f32 %v3215, 0.0
        %v3267 = vmax.f32 %v3218, 0.0
        %v3268 = vmax.f32 %v3221, 0.0
        %v3269 = vmax.f32 %v3224, 0.0
        %v3270 = vmax.f32 %v3227, 0.0
        %v3271 = vmax.f32 %v3230, 0.0
        %v3272 = vmax.f32 %v3233, 0.0
        %v3273 = vmax.f32 %v3236, 0.0
        %v3274 = vmax.f32 %v3239, 0.0
        %v3275 = vmax.f32 %v3242, 0.0
        %v3276 = vld [vmem:[%s4] sm:$0xff]
        %v3277 = vld [vmem:[%s4 + $0x8] sm:$0xff]
        %v3278 = vld [vmem:[%s4 + $0x10] sm:$0xff]
        %v3279 = vld [vmem:[%s4 + $0x18] sm:$0xff]
        %v3280 = vld [vmem:[%s4 + $0x20] sm:$0xff]
        %v3281 = vld [vmem:[%s4 + $0x28] sm:$0xff]
        %v3282 = vld [vmem:[%s4 + $0x30] sm:$0xff]
        %v3283 = vld [vmem:[%s4 + $0x38] sm:$0xff]
        %v3284 = vld [vmem:[%s4 + $0x40] sm:$0xff]
        %v3285 = vld [vmem:[%s4 + $0x48] sm:$0xff]
        %v3286 = vld [vmem:[%s4 + $0x50] sm:$0xff]
        %v3287 = vld [vmem:[%s4 + $0x58] sm:$0xff]
        %v3288 = vld [vmem:[%s4 + $0x60] sm:$0xff]
        %v3289 = vld [vmem:[%s4 + $0x68] sm:$0xff]
        %v3290 = vld [vmem:[%s4 + $0x70] sm:$0xff]
        %v3291 = vld [vmem:[%s4 + $0x78] sm:$0xff]
        %v3292 = vperm.slane %v530, 0
        %3293 = vmatpush.msra.mxu0 %v3291
        %3294 = vmatpush.msra.mxu0 %v3290
        %3295 = vmatpush.msra.mxu0 %v3289
        %3296 = vmatpush.msra.mxu0 %v3288
        %3297 = vmatpush.msra.mxu0 %v3287
        %3298 = vmatpush.msra.mxu0 %v3286
        %3299 = vmatpush.msra.mxu0 %v3285
        %3300 = vmatpush.msra.mxu0 %v3284
        %3301 = vmatpush.msra.mxu0 %v3283
        %3302 = vmatpush.msra.mxu0 %v3282
        %3303 = vmatpush.msra.mxu0 %v3281
        %3304 = vmatpush.msra.mxu0 %v3280
        %3305 = vmatpush.msra.mxu0 %v3279
        %3306 = vmatpush.msra.mxu0 %v3278
        %3307 = vmatpush.msra.mxu0 %v3277
        %3308 = vmatpush.msra.mxu0 %v3276
        %3309 = vmatmul.f32.gmra.mxu0 %v3244
        %v3310 = vpop.f32.mrf.mxu0
        %v3311 = vadd.f32 %v3292, %v3310
        %3312 = vmatmul.f32.gmra.mxu0 %v3245
        %v3313 = vpop.f32.mrf.mxu0
        %v3314 = vadd.f32 %v3292, %v3313
        %3315 = vmatmul.f32.gmra.mxu0 %v3246
        %v3316 = vpop.f32.mrf.mxu0
        %v3317 = vadd.f32 %v3292, %v3316
        %3318 = vmatmul.f32.gmra.mxu0 %v3247
        %v3319 = vpop.f32.mrf.mxu0
        %v3320 = vadd.f32 %v3292, %v3319
        %3321 = vmatmul.f32.gmra.mxu0 %v3248
        %v3322 = vpop.f32.mrf.mxu0
        %v3323 = vadd.f32 %v3292, %v3322
        %3324 = vmatmul.f32.gmra.mxu0 %v3249
        %v3325 = vpop.f32.mrf.mxu0
        %v3326 = vadd.f32 %v3292, %v3325
        %3327 = vmatmul.f32.gmra.mxu0 %v3250
        %v3328 = vpop.f32.mrf.mxu0
        %v3329 = vadd.f32 %v3292, %v3328
        %3330 = vmatmul.f32.gmra.mxu0 %v3251
        %v3331 = vpop.f32.mrf.mxu0
        %v3332 = vadd.f32 %v3292, %v3331
        %3333 = vmatmul.f32.gmra.mxu0 %v3252
        %v3334 = vpop.f32.mrf.mxu0
        %v3335 = vadd.f32 %v3292, %v3334
        %3336 = vmatmul.f32.gmra.mxu0 %v3253
        %v3337 = vpop.f32.mrf.mxu0
        %v3338 = vadd.f32 %v3292, %v3337
        %3339 = vmatmul.f32.gmra.mxu0 %v3254
        %v3340 = vpop.f32.mrf.mxu0
        %v3341 = vadd.f32 %v3292, %v3340
        %3342 = vmatmul.f32.gmra.mxu0 %v3255
        %v3343 = vpop.f32.mrf.mxu0
        %v3344 = vadd.f32 %v3292, %v3343
        %3345 = vmatmul.f32.gmra.mxu0 %v3256
        %v3346 = vpop.f32.mrf.mxu0
        %v3347 = vadd.f32 %v3292, %v3346
        %3348 = vmatmul.f32.gmra.mxu0 %v3257
        %v3349 = vpop.f32.mrf.mxu0
        %v3350 = vadd.f32 %v3292, %v3349
        %3351 = vmatmul.f32.gmra.mxu0 %v3258
        %v3352 = vpop.f32.mrf.mxu0
        %v3353 = vadd.f32 %v3292, %v3352
        %3354 = vmatmul.f32.gmra.mxu0 %v3259
        %v3355 = vpop.f32.mrf.mxu0
        %v3356 = vadd.f32 %v3292, %v3355
        %3357 = vmatmul.f32.gmra.mxu0 %v3260
        %v3358 = vpop.f32.mrf.mxu0
        %v3359 = vadd.f32 %v3292, %v3358
        %3360 = vmatmul.f32.gmra.mxu0 %v3261
        %v3361 = vpop.f32.mrf.mxu0
        %v3362 = vadd.f32 %v3292, %v3361
        %3363 = vmatmul.f32.gmra.mxu0 %v3262
        %v3364 = vpop.f32.mrf.mxu0
        %v3365 = vadd.f32 %v3292, %v3364
        %3366 = vmatmul.f32.gmra.mxu0 %v3263
        %v3367 = vpop.f32.mrf.mxu0
        %v3368 = vadd.f32 %v3292, %v3367
        %3369 = vmatmul.f32.gmra.mxu0 %v3264
        %v3370 = vpop.f32.mrf.mxu0
        %v3371 = vadd.f32 %v3292, %v3370
        %3372 = vmatmul.f32.gmra.mxu0 %v3265
        %v3373 = vpop.f32.mrf.mxu0
        %v3374 = vadd.f32 %v3292, %v3373
        %3375 = vmatmul.f32.gmra.mxu0 %v3266
        %v3376 = vpop.f32.mrf.mxu0
        %v3377 = vadd.f32 %v3292, %v3376
        %3378 = vmatmul.f32.gmra.mxu0 %v3267
        %v3379 = vpop.f32.mrf.mxu0
        %v3380 = vadd.f32 %v3292, %v3379
        %3381 = vmatmul.f32.gmra.mxu0 %v3268
        %v3382 = vpop.f32.mrf.mxu0
        %v3383 = vadd.f32 %v3292, %v3382
        %3384 = vmatmul.f32.gmra.mxu0 %v3269
        %v3385 = vpop.f32.mrf.mxu0
        %v3386 = vadd.f32 %v3292, %v3385
        %3387 = vmatmul.f32.gmra.mxu0 %v3270
        %v3388 = vpop.f32.mrf.mxu0
        %v3389 = vadd.f32 %v3292, %v3388
        %3390 = vmatmul.f32.gmra.mxu0 %v3271
        %v3391 = vpop.f32.mrf.mxu0
        %v3392 = vadd.f32 %v3292, %v3391
        %3393 = vmatmul.f32.gmra.mxu0 %v3272
        %v3394 = vpop.f32.mrf.mxu0
        %v3395 = vadd.f32 %v3292, %v3394
        %3396 = vmatmul.f32.gmra.mxu0 %v3273
        %v3397 = vpop.f32.mrf.mxu0
        %v3398 = vadd.f32 %v3292, %v3397
        %3399 = vmatmul.f32.gmra.mxu0 %v3274
        %v3400 = vpop.f32.mrf.mxu0
        %v3401 = vadd.f32 %v3292, %v3400
        %3402 = vmatmul.f32.gmra.mxu0 %v3275
        %v3403 = vpop.f32.mrf.mxu0
        %v3404 = vadd.f32 %v3292, %v3403
        %3405 = vdwg.mxu0
        %3406 = vst [vmem:[%s524] sm:$0xff] %v3311
        %3407 = vst [vmem:[%s524 + $0x8] sm:$0xff] %v3314
        %3408 = vst [vmem:[%s524 + $0x10] sm:$0xff] %v3317
        %3409 = vst [vmem:[%s524 + $0x18] sm:$0xff] %v3320
        %3410 = vst [vmem:[%s524 + $0x20] sm:$0xff] %v3323
        %3411 = vst [vmem:[%s524 + $0x28] sm:$0xff] %v3326
        %3412 = vst [vmem:[%s524 + $0x30] sm:$0xff] %v3329
        %3413 = vst [vmem:[%s524 + $0x38] sm:$0xff] %v3332
        %3414 = vst [vmem:[%s524 + $0x40] sm:$0xff] %v3335
        %3415 = vst [vmem:[%s524 + $0x48] sm:$0xff] %v3338
        %3416 = vst [vmem:[%s524 + $0x50] sm:$0xff] %v3341
        %3417 = vst [vmem:[%s524 + $0x58] sm:$0xff] %v3344
        %3418 = vst [vmem:[%s524 + $0x60] sm:$0xff] %v3347
        %3419 = vst [vmem:[%s524 + $0x68] sm:$0xff] %v3350
        %3420 = vst [vmem:[%s524 + $0x70] sm:$0xff] %v3353
        %3421 = vst [vmem:[%s524 + $0x78] sm:$0xff] %v3356
        %3422 = vst [vmem:[%s524 + $0x80] sm:$0xff] %v3359
        %3423 = vst [vmem:[%s524 + $0x88] sm:$0xff] %v3362
        %3424 = vst [vmem:[%s524 + $0x90] sm:$0xff] %v3365
        %3425 = vst [vmem:[%s524 + $0x98] sm:$0xff] %v3368
        %3426 = vst [vmem:[%s524 + $0xa0] sm:$0xff] %v3371
        %3427 = vst [vmem:[%s524 + $0xa8] sm:$0xff] %v3374
        %3428 = vst [vmem:[%s524 + $0xb0] sm:$0xff] %v3377
        %3429 = vst [vmem:[%s524 + $0xb8] sm:$0xff] %v3380
        %3430 = vst [vmem:[%s524 + $0xc0] sm:$0xff] %v3383
        %3431 = vst [vmem:[%s524 + $0xc8] sm:$0xff] %v3386
        %3432 = vst [vmem:[%s524 + $0xd0] sm:$0xff] %v3389
        %3433 = vst [vmem:[%s524 + $0xd8] sm:$0xff] %v3392
        %3434 = vst [vmem:[%s524 + $0xe0] sm:$0xff] %v3395
        %3435 = vst [vmem:[%s524 + $0xe8] sm:$0xff] %v3398
        %3436 = vst [vmem:[%s524 + $0xf0] sm:$0xff] %v3401
        %3437 = vst [vmem:[%s524 + $0xf8] sm:$0xff] %v3404
        %s3438 = sand.u32 %s159, 1
        %s3439 = scalar_lea.sflag [#allocation4], %s3438
        %s3440 = sand.u32 %s159, 1
        %s3441 = smul.addr %s3440, 256
        %s3442 = scalar_lea.vmem [#allocation3], %s3441
        // Predicated region
        $region68: #{tpu_custom_call.1} parent=62 // pred_check
          %p3443 = pneg %p169
        $region69: #{tpu_custom_call.1} parent=62 // pred_check_branch
          %3445 = sbr.rel (%p3443) target = $region71
        $region70: #{tpu_custom_call.1} parent=62 // pred_region
          %s3446 = smul.u32 32, %s20
          %3448 = vsyncadd %s3439, 0
          %s3449 = smul.addr %s3446, 8
          %s3450 = scalar_lea.hbm %s6, %s3449
          %s3451 = sshll.u32 %s3442, 4
          %s3452 = int_to_ptr.vmem [resolvable:$true] %s3451
          %s3453 = sshll.u32 %s3450, 4
          %s3454 = int_to_ptr.hbm [resolvable:$true] %s3453
          %3459 = dma.vmem_to_hbm [thread:$0]  %s3452, 4096, %s3454, %s3439, 128, 128, 8
        $region71: #{tpu_custom_call.1} parent=62 // pred_fallthru
          _
      $region63: #{tpu_custom_call.1} parent=5 // pred_fallthru
        _
      %p3460 = scmp.le.s32.totalorder 2, %s15
      // Predicated region
      $region72: #{tpu_custom_call.1} parent=5 // pred_check
        %p3461 = pneg %p3460
      $region73: #{tpu_custom_call.1} parent=5 // pred_check_branch
        %3463 = sbr.rel (%p3461) target = $region75
      $region74: #{tpu_custom_call.1} parent=5 // pred_region
        %s3464 = ssub.s32 %s15, 2
        // Predicated region
        $region76: #{tpu_custom_call.1} parent=74 // pred_check
          %p3465 = pneg %p175
        $region77: #{tpu_custom_call.1} parent=74 // pred_check_branch
          %3467 = sbr.rel (%p3465) target = $region79
        $region78: #{tpu_custom_call.1} parent=74 // pred_region
          %s3468 = sand.u32 %s160, 1
          %s3469 = scalar_lea.sflag [#allocation4], %s3468
          %s3470 = sand.u32 %s160, 1
          %s3471 = smul.addr %s3470, 256
          %s3472 = scalar_lea.vmem [#allocation3], %s3471
          %3474 = dma.done %s3469, 4096
        $region79: #{tpu_custom_call.1} parent=74 // pred_fallthru
          _
      $region75: #{tpu_custom_call.1} parent=5 // pred_fallthru
        _
    $region6: #{tpu_custom_call.1} parent=1 // loop_footer
      %s19 = sadd.s32 1, %s15
    $region7: #{tpu_custom_call.1} parent=1 // loop_footer_branch
      %14 = sbr.rel target = $region3
    $region8: #{tpu_custom_call.1} parent=1 // loop_exit
      _
    %3475 = vsyncpa [#allocation4], 1
    %s3476 = scalar_lea.sflag [#allocation4], 1
    %3477 = vsyncpa %s3476, 1

</llo_original>
